<compile_context>
chip_gen: v5e
topology: v5e:2x2
jax: 0.10.0
libtpu: 0.0.40
codegen_flags: <defaults>
</compile_context>

<pallas_src>
import functools
import math

import jax
import jax.numpy as jnp
import numpy as np
from jax.experimental import pallas as pl
from jax.experimental.pallas import tpu as pltpu

BN_EPS = 1e-5
LANE = 128
SUBLANE = 16   # bf16 sublane packing (stricter than f32's 8, valid for both)


def _round_up(x, m):
    return (x + m - 1) // m * m


# ---------------------------------------------------------------------------
# Optional single-buffering of the (grid-invariant) weight operands.
# Probed once at runtime so the script still runs on JAX versions where
# BlockSpec has no pipeline_mode / pl.Buffered.
# ---------------------------------------------------------------------------
_SINGLE_BUFFER_WEIGHTS = None


def _single_buffer_weights_supported():
    global _SINGLE_BUFFER_WEIGHTS
    if _SINGLE_BUFFER_WEIGHTS is None:
        try:
            def probe_kernel(x_ref, w_ref, o_ref):
                o_ref[...] = x_ref[...] + w_ref[...]

            probe = pl.pallas_call(
                probe_kernel,
                out_shape=jax.ShapeDtypeStruct((16, 128), jnp.float32),
                grid=(2,),
                in_specs=[
                    pl.BlockSpec((8, 128), lambda i: (i, 0)),
                    pl.BlockSpec((8, 128), lambda i: (0, 0),
                                 pipeline_mode=pl.Buffered(1)),
                ],
                out_specs=pl.BlockSpec((8, 128), lambda i: (i, 0)),
            )
            jax.block_until_ready(
                probe(jnp.ones((16, 128), jnp.float32),
                      jnp.ones((8, 128), jnp.float32)))
            _SINGLE_BUFFER_WEIGHTS = True
        except Exception:
            _SINGLE_BUFFER_WEIGHTS = False
    return _SINGLE_BUFFER_WEIGHTS


# ---------------------------------------------------------------------------
# Pallas kernel: one tile of rows, all channels resident.
#   out = (x @ Wl) * sigmoid(cup @ Wa) + (cup @ We)
# BN scales pre-folded into weight columns.  cls rows pass x through; rows
# beyond the real row count (ragged last tile) are masked before the store.
# ---------------------------------------------------------------------------
def _interactive_kernel(x_ref, cup_ref, wl_ref, wa_ref, we_ref, out_ref, *,
                        tile_p, n_rows, seq_len, batch, batch_first,
                        has_cls_token):
    x = x_ref[...]                      # (tp, C)   bf16
    c = cup_ref[...]                    # (tp, Dc)  bf16

    # MXU matmuls with f32 accumulation (3 pushes, no wide intermediate).
    local = jnp.dot(x, wl_ref[...], preferred_element_type=jnp.float32)  # (tp, C_pad)
    ga = jnp.dot(c, wa_ref[...], preferred_element_type=jnp.float32)     # (tp, C_pad)
    gf = jnp.dot(c, we_ref[...], preferred_element_type=jnp.float32)     # (tp, C_pad)

    # Elementwise combine in f32 (safe on v5e which lacks bf16 VPU/EUP).
    out = local * jax.nn.sigmoid(ga) + gf

    ragged = (n_rows % tile_p) != 0
    if has_cls_token or ragged:
        row = (pl.program_id(0) * tile_p
               + jax.lax.broadcasted_iota(jnp.int32, (tile_p, 1), 0))

    if has_cls_token:
        # cls passthrough: row layout is b*S + s (batch_first) or s*B + b.
        if batch_first:
            is_cls = (row % seq_len) == 0
        else:
            is_cls = row < batch
        cp = out.shape[1]
        x32 = x.astype(jnp.float32)
        if cp != x.shape[1]:            # pad columns only matter up to C; junk OK
            x32 = jnp.concatenate(
                [x32, jnp.zeros((x.shape[0], cp - x.shape[1]), jnp.float32)],
                axis=-1)
        out = jnp.where(is_cls, x32, out)

    if ragged:                          # mask OOB rows of the partial last tile
        out = jnp.where(row < n_rows, out, 0.0)

    out_ref[...] = out.astype(out_ref.dtype)


def _interactive_pallas(x_rows, cup_rows, wl, wa, we, *, seq_len, batch,
                        batch_first, has_cls_token, tile_p=1024,
                        out_dtype=None):
    """x_rows: (P, C), cup_rows: (P, Dc). Returns (P, C_pad)."""
    P, C = x_rows.shape
    Dc = cup_rows.shape[1]
    C_pad = wl.shape[1]
    assert wl.shape == (C, C_pad)
    assert wa.shape == (Dc, C_pad) and we.shape == (Dc, C_pad)
    out_dtype = x_rows.dtype if out_dtype is None else out_dtype

    # Sublane-aligned row tiles; ragged remainder handled by a partial last
    # block + in-kernel masking (no jnp.pad of the wide activation).
    tp = min(max(tile_p, SUBLANE), _round_up(P, SUBLANE))
    tp = _round_up(tp, SUBLANE)
    grid = (pl.cdiv(P, tp),)

    kernel = functools.partial(
        _interactive_kernel, tile_p=tp, n_rows=P, seq_len=seq_len, batch=batch,
        batch_first=batch_first, has_cls_token=has_cls_token)

    w_kwargs = ({"pipeline_mode": pl.Buffered(1)}
                if _single_buffer_weights_supported() else {})

    out = pl.pallas_call(
        kernel,
        out_shape=jax.ShapeDtypeStruct((P, C_pad), out_dtype),
        grid=grid,
        in_specs=[
            pl.BlockSpec((tp, C), lambda i: (i, 0)),               # x rows
            pl.BlockSpec((tp, Dc), lambda i: (i, 0)),              # cup rows
            pl.BlockSpec((C, C_pad), lambda i: (0, 0), **w_kwargs),   # Wl
            pl.BlockSpec((Dc, C_pad), lambda i: (0, 0), **w_kwargs),  # Wa
            pl.BlockSpec((Dc, C_pad), lambda i: (0, 0), **w_kwargs),  # We
        ],
        out_specs=pl.BlockSpec((tp, C_pad), lambda i: (i, 0)),
        compiler_params=pltpu.CompilerParams(
            dimension_semantics=("parallel",),          # megacore on v7x
            vmem_limit_bytes=64 * 1024 * 1024),
    )(x_rows, cup_rows, wl, wa, we)
    return out


# ---------------------------------------------------------------------------
# Parameter construction (mirrors _init_weight_goog + fresh BatchNorm2d, eval)
# ---------------------------------------------------------------------------
def _grouped_to_dense(w, groups):
    """w: (Cout, Cin_per_group) grouped 1x1 conv weight -> dense (Cout, Cin)."""
    cout, cin_g = w.shape
    cout_g = cout // groups
    dense = jnp.zeros((cout, cin_g * groups), dtype=w.dtype)
    for g in range(groups):
        dense = dense.at[g * cout_g:(g + 1) * cout_g,
                         g * cin_g:(g + 1) * cin_g].set(w[g * cout_g:(g + 1) * cout_g])
    return dense


def init_interactive_params(key, emd_dim, context_dim, local_groups,
                            global_groups, dtype=jnp.bfloat16):
    C, Dc = emd_dim, context_dim
    C_pad = _round_up(C, LANE)
    k1, k2, k3 = jax.random.split(key, 3)

    # Conv init: normal(0, sqrt(2 / (k*k*out_channels/groups))), bias-free.
    fan_out_l = (1 * 1 * C) // local_groups
    fan_out_g = (1 * 1 * C) // global_groups
    wl = jax.random.normal(k1, (C, C // local_groups), jnp.float32) * math.sqrt(2.0 / fan_out_l)
    wa = jax.random.normal(k2, (C, Dc // global_groups), jnp.float32) * math.sqrt(2.0 / fan_out_g)
    we = jax.random.normal(k3, (C, Dc // global_groups), jnp.float32) * math.sqrt(2.0 / fan_out_g)

    wl_d = _grouped_to_dense(wl, local_groups)     # (C, C)
    wa_d = _grouped_to_dense(wa, global_groups)    # (C, Dc)
    we_d = _grouped_to_dense(we, global_groups)    # (C, Dc)

    # Eval-mode BatchNorm2d with freshly initialised params/stats:
    #   y = (x - 0) / sqrt(1 + eps) * 1 + 0  -> pure per-channel scale, no shift.
    bn_scale = 1.0 / math.sqrt(1.0 + BN_EPS)

    def pad_cols(w):                               # lane-dense output columns
        return jnp.pad(w, ((0, 0), (0, C_pad - C)))

    wl_p = pad_cols(wl_d.T * bn_scale)             # (C,  C_pad)
    wa_p = pad_cols(wa_d.T * bn_scale)             # (Dc, C_pad)
    we_p = pad_cols(we_d.T * bn_scale)             # (Dc, C_pad)
    return {"wl": wl_p.astype(dtype),
            "wa": wa_p.astype(dtype),
            "we": we_p.astype(dtype)}


# ---------------------------------------------------------------------------
# JAX glue (cheap, narrow-tensor ops only) + Pallas hot path
# ---------------------------------------------------------------------------
def _nearest_upsample_to_tokens(cache, H, W):
    """cache: (B, Dc, Hc, Wc) NCHW -> (B, H*W, Dc); token n = h*W + w.
    Matches F.interpolate(mode='nearest'): src = floor(dst * in/out)."""
    B, Dc, Hc, Wc = cache.shape
    h_idx = (jnp.arange(H) * Hc) // H
    w_idx = (jnp.arange(W) * Wc) // W
    cache_t = jnp.transpose(cache, (0, 2, 3, 1))      # (B, Hc, Wc, Dc)  (narrow)
    up = cache_t[:, h_idx][:, :, w_idx]               # (B, H, W, Dc)
    return up.reshape(B, H * W, Dc)


def pmaa_adapter_forward(feats, layer_params, cache, *, layer,
                         batch_first=True, has_cls_token=True, tile_p=1024):
    """Mirrors PMAAAdapter.forward. feats: (B,S,C) if batch_first else (S,B,C)."""
    p = layer_params[layer]
    if batch_first:
        B, S, C = feats.shape
    else:
        S, B, C = feats.shape
    N = S - 1 if has_cls_token else S
    H = W = int(round(math.sqrt(N)))
    assert H * W == N, "token count (minus cls) must be a perfect square"
    Dc = cache.shape[1]

    # Upsample-first (commutes with the pointwise convs); keep cup in the same
    # row order as feats so the kernel never transposes the wide tensor.
    cup = _nearest_upsample_to_tokens(cache, H, W)          # (B, N, Dc)
    if has_cls_token:
        cup = jnp.pad(cup, ((0, 0), (1, 0), (0, 0)))        # dummy row for cls (narrow)
    if not batch_first:
        cup = jnp.transpose(cup, (1, 0, 2))                 # (S, B, Dc)   (narrow)

    x_rows = feats.reshape(-1, C)                           # free reshape
    cup_rows = cup.reshape(-1, Dc)
    out_rows = _interactive_pallas(
        x_rows, cup_rows, p["wl"], p["wa"], p["we"],
        seq_len=S, batch=B, batch_first=batch_first,
        has_cls_token=has_cls_token, tile_p=tile_p, out_dtype=feats.dtype)

    C_pad = out_rows.shape[1]
    out_rows = out_rows if C_pad == C else out_rows[:, :C]
    return out_rows.reshape(feats.shape)


# ---------------------------------------------------------------------------
def _reference_forward(feats, layer_params, cache, *, layer,
                       batch_first=True, has_cls_token=True):
    """Pure-JAX f32 reference of the same math (same bf16 params), for checking."""
    p = layer_params[layer]
    wl = p["wl"].astype(jnp.float32)
    wa = p["wa"].astype(jnp.float32)
    we = p["we"].astype(jnp.float32)
    if batch_first:
        B, S, C = feats.shape
    else:
        S, B, C = feats.shape
    N = S - 1 if has_cls_token else S
    H = W = int(round(math.sqrt(N)))
    Dc = cache.shape[1]

    cup = _nearest_upsample_to_tokens(cache, H, W).astype(jnp.float32)
    if has_cls_token:
        cup = jnp.pad(cup, ((0, 0), (1, 0), (0, 0)))
    if not batch_first:
        cup = jnp.transpose(cup, (1, 0, 2))

    x = feats.astype(jnp.float32).reshape(-1, C)
    c = cup.reshape(-1, Dc)
    local = x @ wl[:, :C]
    ga = c @ wa[:, :C]
    gf = c @ we[:, :C]
    out = (local * jax.nn.sigmoid(ga) + gf).astype(feats.dtype).reshape(feats.shape)
    if has_cls_token:
        if batch_first:
            out = out.at[:, 0, :].set(feats[:, 0, :])
        else:
            out = out.at[0].set(feats[0])
    return out


if __name__ == "__main__":
    # Small config consistent with the module's constructor arguments.
    num_layers = 2
    emd_dim = 128        # C (multiple of 128 -> lane-dense, no channel padding)
    context_dim = 64     # Dc
    local_groups = 4
    global_groups = 2
    B, H, W = 2, 16, 16
    Hc, Wc = 8, 8
    S = 1 + H * W        # cls token + tokens = 257

    dtype = jnp.bfloat16
    key = jax.random.PRNGKey(0)
    kf, kc, *kp = jax.random.split(key, 2 + num_layers)

    feats = jax.random.normal(kf, (B, S, emd_dim), jnp.float32).astype(dtype)
    cache = jax.random.normal(kc, (B, context_dim, Hc, Wc), jnp.float32).astype(dtype)

    layer_params = [
        init_interactive_params(kp[i], emd_dim, context_dim,
                                local_groups, global_groups, dtype=dtype)
        for i in range(num_layers)
    ]

    # Warm the single-buffer-weights probe eagerly (outside any jit trace).
    _single_buffer_weights_supported()

    layer = 1
    fwd = jax.jit(pmaa_adapter_forward,
                  static_argnames=("layer", "batch_first", "has_cls_token", "tile_p"))
    # tile_p=256 at this toy size exercises the multi-tile grid, the partial
    # (ragged) last block, and the in-kernel cls passthrough; production sizes
    # use the default 1024.
    out = fwd(feats, layer_params, cache, layer=layer,
              batch_first=True, has_cls_token=True, tile_p=256)
    out = jax.block_until_ready(out)

    ref = _reference_forward(feats, layer_params, cache, layer=layer,
                             batch_first=True, has_cls_token=True)
    np.testing.assert_allclose(np.asarray(out.astype(jnp.float32)),
                               np.asarray(ref.astype(jnp.float32)),
                               rtol=2e-2, atol=2e-2)
    assert out.shape == feats.shape and out.dtype == feats.dtype
    print("KERNEL_OK")
</pallas_src>

<mosaic_0001>
module attributes {stable_mosaic.version = 11 : i64} {
  func.func @probe_kernel(%arg0: i32, %arg1: memref<8x128xf32, #tpu.memory_space<vmem>>, %arg2: memref<8x128xf32, #tpu.memory_space<vmem>>, %arg3: memref<8x128xf32, #tpu.memory_space<vmem>>) attributes {dimension_semantics = [#tpu.dimension_semantics<arbitrary>], iteration_bounds = array<i64: 2>, scalar_prefetch = 0 : i64, scratch_operands = 0 : i64, tpu.core_type = #tpu.core_type<tc>, window_params = [{transform_indices = @transform_0, window_bounds = array<i64: 8, 128>}, {pipeline_mode = #tpu.pipeline_mode<synchronous>, transform_indices = @transform_1, window_bounds = array<i64: 8, 128>}, {transform_indices = @transform_2, window_bounds = array<i64: 8, 128>}]} {
    %c0 = arith.constant 0 : index
    %c0_0 = arith.constant 0 : index
    %0 = vector.load %arg1[%c0, %c0_0] : memref<8x128xf32, #tpu.memory_space<vmem>>, vector<8x128xf32>
    %c0_1 = arith.constant 0 : index
    %c0_2 = arith.constant 0 : index
    %1 = vector.load %arg2[%c0_1, %c0_2] : memref<8x128xf32, #tpu.memory_space<vmem>>, vector<8x128xf32>
    %2 = arith.addf %0, %1 : vector<8x128xf32>
    %c0_3 = arith.constant 0 : index
    %c0_4 = arith.constant 0 : index
    %3 = vector.load %arg3[%c0_3, %c0_4] : memref<8x128xf32, #tpu.memory_space<vmem>>, vector<8x128xf32>
    tpu.vector_store %arg3[%c0_3, %c0_4], %2 {strides = array<i32>} : memref<8x128xf32, #tpu.memory_space<vmem>>, vector<8x128xf32>,
    return
  }
  func.func @transform_0(%arg0: i32) -> (i32, i32) {
    %c0_i32 = arith.constant 0 : i32
    %c0_i32_0 = arith.constant 0 : i32
    return %arg0, %c0_i32 : i32, i32
  }
  func.func @transform_1(%arg0: i32) -> (i32, i32) {
    %c0_i32 = arith.constant 0 : i32
    %c0_i32_0 = arith.constant 0 : i32
    %c0_i32_1 = arith.constant 0 : i32
    return %c0_i32, %c0_i32_0 : i32, i32
  }
  func.func @transform_2(%arg0: i32) -> (i32, i32) {
    %c0_i32 = arith.constant 0 : i32
    %c0_i32_0 = arith.constant 0 : i32
    return %arg0, %c0_i32 : i32, i32
  }
}

module attributes {stable_mosaic.version = 11 : i64} {
  func.func @_interactive_kernel(%arg0: i32, %arg1: memref<256x128xbf16, #tpu.memory_space<vmem>>, %arg2: memref<256x64xbf16, #tpu.memory_space<vmem>>, %arg3: memref<128x128xbf16, #tpu.memory_space<vmem>>, %arg4: memref<64x128xbf16, #tpu.memory_space<vmem>>, %arg5: memref<64x128xbf16, #tpu.memory_space<vmem>>, %arg6: memref<256x128xbf16, #tpu.memory_space<vmem>>) attributes {dimension_semantics = [#tpu.dimension_semantics<parallel>], iteration_bounds = array<i64: 3>, scalar_prefetch = 0 : i64, scratch_operands = 0 : i64, tpu.core_type = #tpu.core_type<tc>, window_params = [{transform_indices = @transform_0, window_bounds = array<i64: 256, 128>}, {transform_indices = @transform_1, window_bounds = array<i64: 256, 64>}, {pipeline_mode = #tpu.pipeline_mode<synchronous>, transform_indices = @transform_2, window_bounds = array<i64: 128, 128>}, {pipeline_mode = #tpu.pipeline_mode<synchronous>, transform_indices = @transform_3, window_bounds = array<i64: 64, 128>}, {pipeline_mode = #tpu.pipeline_mode<synchronous>, transform_indices = @transform_4, window_bounds = array<i64: 64, 128>}, {transform_indices = @transform_5, window_bounds = array<i64: 256, 128>}]} {
    %c0 = arith.constant 0 : index
    %c0_0 = arith.constant 0 : index
    %0 = vector.load %arg1[%c0, %c0_0] : memref<256x128xbf16, #tpu.memory_space<vmem>>, vector<256x128xbf16>
    %c0_1 = arith.constant 0 : index
    %c0_2 = arith.constant 0 : index
    %1 = vector.load %arg2[%c0_1, %c0_2] : memref<256x64xbf16, #tpu.memory_space<vmem>>, vector<256x64xbf16>
    %c0_3 = arith.constant 0 : index
    %c0_4 = arith.constant 0 : index
    %2 = vector.load %arg3[%c0_3, %c0_4] : memref<128x128xbf16, #tpu.memory_space<vmem>>, vector<128x128xbf16>
    %cst = arith.constant dense<0.000000e+00> : vector<256x128xf32>
    %3 = tpu.matmul %0, %2, %cst {dimension_numbers = #tpu.dot_dimension_numbers<[1], [0], [0], [1], [0, 0, 1, 1], [], []>} : vector<256x128xbf16>, vector<128x128xbf16>, vector<256x128xf32> -> vector<256x128xf32>
    %c0_5 = arith.constant 0 : index
    %c0_6 = arith.constant 0 : index
    %4 = vector.load %arg4[%c0_5, %c0_6] : memref<64x128xbf16, #tpu.memory_space<vmem>>, vector<64x128xbf16>
    %cst_7 = arith.constant dense<0.000000e+00> : vector<256x128xf32>
    %5 = tpu.matmul %1, %4, %cst_7 {dimension_numbers = #tpu.dot_dimension_numbers<[1], [0], [0], [1], [0, 0, 1, 1], [], []>} : vector<256x64xbf16>, vector<64x128xbf16>, vector<256x128xf32> -> vector<256x128xf32>
    %c0_8 = arith.constant 0 : index
    %c0_9 = arith.constant 0 : index
    %6 = vector.load %arg5[%c0_8, %c0_9] : memref<64x128xbf16, #tpu.memory_space<vmem>>, vector<64x128xbf16>
    %cst_10 = arith.constant dense<0.000000e+00> : vector<256x128xf32>
    %7 = tpu.matmul %1, %6, %cst_10 {dimension_numbers = #tpu.dot_dimension_numbers<[1], [0], [0], [1], [0, 0, 1, 1], [], []>} : vector<256x64xbf16>, vector<64x128xbf16>, vector<256x128xf32> -> vector<256x128xf32>
    %8 = arith.negf %5 : vector<256x128xf32>
    %9 = math.exp %8 : vector<256x128xf32>
    %cst_11 = arith.constant 1.000000e+00 : f32
    %10 = vector.broadcast %cst_11 : f32 to vector<256x128xf32>
    %11 = arith.addf %10, %9 : vector<256x128xf32>
    %12 = arith.divf %10, %11 : vector<256x128xf32>
    %13 = arith.mulf %3, %12 : vector<256x128xf32>
    %14 = arith.addf %13, %7 : vector<256x128xf32>
    %c256_i32 = arith.constant 256 : i32
    %15 = arith.muli %arg0, %c256_i32 : i32
    %16 = tpu.iota {dimensions = array<i32: 0>} : vector<256x1xi32>
    %17 = vector.broadcast %15 : i32 to vector<256x1xi32>
    %18 = arith.addi %17, %16 : vector<256x1xi32>
    %c257_i32 = arith.constant 257 : i32
    %c0_i32 = arith.constant 0 : i32
    %19 = arith.cmpi eq, %c257_i32, %c0_i32 : i32
    %c1_i32 = arith.constant 1 : i32
    %20 = arith.select %19, %c1_i32, %c257_i32 : i32
    %21 = vector.broadcast %20 : i32 to vector<256x1xi32>
    %22 = arith.remsi %18, %21 : vector<256x1xi32>
    %c0_i32_12 = arith.constant 0 : i32
    %23 = vector.broadcast %c0_i32_12 : i32 to vector<256x1xi32>
    %24 = arith.cmpi ne, %22, %23 : vector<256x1xi32>
    %c0_i32_13 = arith.constant 0 : i32
    %25 = vector.broadcast %c0_i32_13 : i32 to vector<256x1xi32>
    %26 = arith.cmpi slt, %22, %25 : vector<256x1xi32>
    %c0_i32_14 = arith.constant 0 : i32
    %27 = arith.cmpi slt, %20, %c0_i32_14 : i32
    %28 = vector.broadcast %27 : i1 to vector<256x1xi1>
    %29 = vector.broadcast %28 : vector<256x1xi1> to vector<256x1xi1>
    %30 = arith.xori %26, %29 : vector<256x1xi1>
    %31 = arith.andi %30, %24 : vector<256x1xi1>
    %32 = vector.broadcast %20 : i32 to vector<256x1xi32>
    %33 = arith.addi %22, %32 : vector<256x1xi32>
    %34 = arith.select %31, %33, %22 : vector<256x1xi1>, vector<256x1xi32>
    %c0_i32_15 = arith.constant 0 : i32
    %35 = vector.broadcast %c0_i32_15 : i32 to vector<256x1xi32>
    %36 = arith.cmpi eq, %34, %35 : vector<256x1xi32>
    %37 = arith.extf %0 : vector<256x128xbf16> to vector<256x128xf32>
    %38 = vector.shape_cast %36 : vector<256x1xi1> to vector<256x1xi1>
    %39 = vector.broadcast %38 : vector<256x1xi1> to vector<256x128xi1>
    %40 = arith.select %39, %37, %14 : vector<256x128xi1>, vector<256x128xf32>
    %c514_i32 = arith.constant 514 : i32
    %41 = vector.broadcast %c514_i32 : i32 to vector<256x1xi32>
    %42 = arith.cmpi slt, %18, %41 : vector<256x1xi32>
    %cst_16 = arith.constant 0.000000e+00 : f32
    %43 = vector.shape_cast %42 : vector<256x1xi1> to vector<256x1xi1>
    %44 = vector.broadcast %43 : vector<256x1xi1> to vector<256x128xi1>
    %45 = vector.broadcast %cst_16 : f32 to vector<256x128xf32>
    %46 = arith.select %44, %40, %45 : vector<256x128xi1>, vector<256x128xf32>
    %47 = arith.truncf %46 : vector<256x128xf32> to vector<256x128xbf16>
    %c0_17 = arith.constant 0 : index
    %c0_18 = arith.constant 0 : index
    %48 = vector.load %arg6[%c0_17, %c0_18] : memref<256x128xbf16, #tpu.memory_space<vmem>>, vector<256x128xbf16>
    tpu.vector_store %arg6[%c0_17, %c0_18], %47 {strides = array<i32>} : memref<256x128xbf16, #tpu.memory_space<vmem>>, vector<256x128xbf16>,
    return
  }
  func.func @transform_0(%arg0: i32) -> (i32, i32) {
    %c0_i32 = arith.constant 0 : i32
    %c0_i32_0 = arith.constant 0 : i32
    return %arg0, %c0_i32 : i32, i32
  }
  func.func @transform_1(%arg0: i32) -> (i32, i32) {
    %c0_i32 = arith.constant 0 : i32
    %c0_i32_0 = arith.constant 0 : i32
    return %arg0, %c0_i32 : i32, i32
  }
  func.func @transform_2(%arg0: i32) -> (i32, i32) {
    %c0_i32 = arith.constant 0 : i32
    %c0_i32_0 = arith.constant 0 : i32
    %c0_i32_1 = arith.constant 0 : i32
    return %c0_i32, %c0_i32_0 : i32, i32
  }
  func.func @transform_3(%arg0: i32) -> (i32, i32) {
    %c0_i32 = arith.constant 0 : i32
    %c0_i32_0 = arith.constant 0 : i32
    %c0_i32_1 = arith.constant 0 : i32
    return %c0_i32, %c0_i32_0 : i32, i32
  }
  func.func @transform_4(%arg0: i32) -> (i32, i32) {
    %c0_i32 = arith.constant 0 : i32
    %c0_i32_0 = arith.constant 0 : i32
    %c0_i32_1 = arith.constant 0 : i32
    return %c0_i32, %c0_i32_0 : i32, i32
  }
  func.func @transform_5(%arg0: i32) -> (i32, i32) {
    %c0_i32 = arith.constant 0 : i32
    %c0_i32_0 = arith.constant 0 : i32
    return %arg0, %c0_i32 : i32, i32
  }
}

</mosaic_0001>

<llo_original>
// kernel: tpu_custom_call.1
$region0: #{tpu_custom_call.1}
  #allocation0 [shape = 'u32[]', space=smem, size = 0x4, offset = 0x4, fixed_abs, tag = 'smem constant byte address 0x4 - core index']
  #allocation1 [shape = 'u32[72,128]{1,0:T(1,128)}', space=vmem, size = 0x9000, scoped, tag = 'internal scratch']
  %s0 = inlined_call_operand.hbm [shape: f32[16,128], index: 0, kind: input, shape index: {}]
  %s1 = inlined_call_operand.hbm [shape: f32[8,128], index: 1, kind: input, shape index: {}]
  %s2 = inlined_call_operand.hbm [shape: f32[16,128], index: 2, kind: output, shape index: {}]
  %s3 = sld [smem:[#allocation0]]
  $region49: #{tpu_custom_call.1} parent=0
    _
  %s5 = ssub.s32 1, %s3
  %s6 = scalar_select 0, %s5, %s3
  $region1: #{tpu_custom_call.1} parent=0
    #allocation2 [shape = 'u8[8192]{0}', space=vmem, size = 0x2000, scoped, tag = 'input window, operand 0']
    #allocation3 [shape = 's32[2]{0}', space=sflag, size = 0x8, scoped, tag = 'scoped memory for tpu_custom_call.1']
    #allocation4 [shape = 's32[2]{0}', space=sflag, size = 0x8, scoped, tag = 'scoped memory for tpu_custom_call.1']
    #allocation5 [shape = 'u8[4096]{0}', space=vmem, size = 0x1000, scoped, tag = 'input window, operand 1, single buffered']
    #allocation6 [shape = 's32[1]{0}', space=sflag, size = 0x4, scoped, tag = 'scoped memory for tpu_custom_call.1']
    #allocation7 [shape = 'u8[8192]{0}', space=vmem, size = 0x2000, scoped, tag = 'output window, operand 0']
    %7 = vsyncpa [#allocation3], 0
    %s8 = scalar_lea.sflag [#allocation3], 1
    %9 = vsyncpa %s8, 0
    %10 = vsyncpa [#allocation6], 0
    %11 = vsyncpa [#allocation4], 0
    %s12 = scalar_lea.sflag [#allocation4], 1
    %13 = vsyncpa %s12, 0
    loop: start=0, step=1, limit=4
    $region2: #{tpu_custom_call.1} parent=1 // loop_pre_header
      _
    $region3: #{tpu_custom_call.1} parent=1 // loop_header
      %s15 = sphi 0, %s19
      %p16 = scmp.ge.s32.totalorder %s15, 4
      %s25 = sphi 0, %s27
      %s28 = sphi 0, %s25
      %s29 = sphi 0, %s28
      %s45 = sphi 0, %s29
      %s49 = sphi 0, %s49
      %s51 = sphi 0, %s49
      %s52 = sphi 0, %s51
      %s66 = sphi 0, %s52
      %s72 = sphi 0, %s74
      %s75 = sphi 0, %s72
      %s76 = sphi 0, %s75
      %s92 = sphi 0, %s76
    $region4: #{tpu_custom_call.1} parent=1 // loop_header_branch
      %18 = sbr.rel (%p16) target = $region8
    $region5: #{tpu_custom_call.1} parent=1 // loop_body
      %s20 = ssub.s32 %s15, 1
      %s21 = ssub.s32 %s15, 2
      %s22 = sadd.s32 %s15, 1
      %s23 = ssub.s32 %s15, %s22
      %p24 = scmp.eq.s32.totalorder %s23, 0
      %s26 = sadd.s32 %s25, 1
      %s27 = scalar_select %p24, %s25, %s26
      %p30 = pneg %p24
      %p31 = scmp.eq.s32.totalorder %s15, 1
      %p32 = por %p30, %p31
      %p33 = scmp.ne.s32.totalorder %s25, %s28
      %p34 = scmp.eq.s32.totalorder %s15, 0
      %p35 = por %p33, %p34
      %p36 = scmp.ne.s32.totalorder %s25, %s28
      %p37 = scmp.eq.s32.totalorder %s20, 1
      %p38 = por %p36, %p37
      %p39 = scmp.ne.s32.totalorder %s28, %s29
      %p40 = scmp.eq.s32.totalorder %s20, 0
      %p41 = por %p39, %p40
      %p42 = scmp.ne.s32.totalorder %s28, %s29
      %p43 = scmp.eq.s32.totalorder %s21, 1
      %p44 = por %p42, %p43
      %p46 = scmp.ne.s32.totalorder %s29, %s45
      %p47 = scmp.eq.s32.totalorder %s21, 0
      %p48 = por %p46, %p47
      %s50 = sadd.s32 %s49, 1
      %p53 = scmp.eq.s32.totalorder %s15, 1
      %p54 = scmp.ne.s32.totalorder %s49, %s51
      %p55 = scmp.eq.s32.totalorder %s15, 0
      %p56 = por %p54, %p55
      %p57 = scmp.ne.s32.totalorder %s49, %s51
      %p58 = scmp.eq.s32.totalorder %s20, 1
      %p59 = por %p57, %p58
      %p60 = scmp.ne.s32.totalorder %s51, %s52
      %p61 = scmp.eq.s32.totalorder %s20, 0
      %p62 = por %p60, %p61
      %p63 = scmp.ne.s32.totalorder %s51, %s52
      %p64 = scmp.eq.s32.totalorder %s21, 1
      %p65 = por %p63, %p64
      %p67 = scmp.ne.s32.totalorder %s52, %s66
      %p68 = scmp.eq.s32.totalorder %s21, 0
      %p69 = por %p67, %p68
      %s70 = ssub.s32 %s15, %s22
      %p71 = scmp.eq.s32.totalorder %s70, 0
      %s73 = sadd.s32 %s72, 1
      %s74 = scalar_select %p71, %s72, %s73
      %p77 = pneg %p71
      %p78 = scmp.eq.s32.totalorder %s15, 1
      %p79 = por %p77, %p78
      %p80 = scmp.ne.s32.totalorder %s72, %s75
      %p81 = scmp.eq.s32.totalorder %s15, 0
      %p82 = por %p80, %p81
      %p83 = scmp.ne.s32.totalorder %s72, %s75
      %p84 = scmp.eq.s32.totalorder %s20, 1
      %p85 = por %p83, %p84
      %p86 = scmp.ne.s32.totalorder %s75, %s76
      %p87 = scmp.eq.s32.totalorder %s20, 0
      %p88 = por %p86, %p87
      %p89 = scmp.ne.s32.totalorder %s75, %s76
      %p90 = scmp.eq.s32.totalorder %s21, 1
      %p91 = por %p89, %p90
      %p93 = scmp.ne.s32.totalorder %s76, %s92
      %p94 = scmp.eq.s32.totalorder %s21, 0
      %p95 = por %p93, %p94
      %p96 = scmp.le.s32.totalorder 1, %s15
      %p97 = scmp.lt.s32.totalorder %s15, 3
      %p98 = pnand %p96, %p97
      %p99 = pneg %p98
      // Predicated region
      $region9: #{tpu_custom_call.1} parent=5 // pred_check
        _
      $region10: #{tpu_custom_call.1} parent=5 // pred_check_branch
        %101 = sbr.rel (%p98) target = $region12
      $region11: #{tpu_custom_call.1} parent=5 // pred_region
        %s102 = ssub.s32 %s15, 1
        // Predicated region
        $region13: #{tpu_custom_call.1} parent=11 // pred_check
          %p103 = pneg %p62
        $region14: #{tpu_custom_call.1} parent=11 // pred_check_branch
          %105 = sbr.rel (%p103) target = $region16
        $region15: #{tpu_custom_call.1} parent=11 // pred_region
          %107 = vsyncadd [#allocation6], 0
          %s109 = sshll.u32 %s1, 4
          %s110 = int_to_ptr.hbm [resolvable:$true] %s109
          %s111 = sshll.u32 [#allocation5], 4
          %s112 = int_to_ptr.vmem [resolvable:$true] %s111
          %114 = dma.hbm_to_vmem [thread:$0]  %s110, 128, %s112, [#allocation6]
        $region16: #{tpu_custom_call.1} parent=11 // pred_fallthru
          _
      $region12: #{tpu_custom_call.1} parent=5 // pred_fallthru
        _
      %p115 = scmp.lt.s32.totalorder %s15, 2
      // Predicated region
      $region17: #{tpu_custom_call.1} parent=5 // pred_check
        %p116 = pneg %p115
      $region18: #{tpu_custom_call.1} parent=5 // pred_check_branch
        %118 = sbr.rel (%p116) target = $region20
      $region19: #{tpu_custom_call.1} parent=5 // pred_region
        // Predicated region
        $region21: #{tpu_custom_call.1} parent=19 // pred_check
          %p119 = pneg %p35
        $region22: #{tpu_custom_call.1} parent=19 // pred_check_branch
          %121 = sbr.rel (%p119) target = $region24
        $region23: #{tpu_custom_call.1} parent=19 // pred_region
          %s122 = sand.u32 %s25, 1
          %s123 = scalar_lea.sflag [#allocation3], %s122
          %s124 = sand.u32 %s25, 1
          %s125 = smul.addr %s124, 8
          %s126 = scalar_lea.vmem [#allocation2], %s125
          %128 = vsyncadd %s123, 0
          %s129 = smul.addr %s15, 8
          %s130 = scalar_lea.hbm %s0, %s129
          %s132 = sshll.u32 %s130, 4
          %s133 = int_to_ptr.hbm [resolvable:$true] %s132
          %s134 = sshll.u32 %s126, 4
          %s135 = int_to_ptr.vmem [resolvable:$true] %s134
          %137 = dma.hbm_to_vmem [thread:$0]  %s133, 128, %s135, %s123
        $region24: #{tpu_custom_call.1} parent=19 // pred_fallthru
          _
      $region20: #{tpu_custom_call.1} parent=5 // pred_fallthru
        _
      %p138 = scmp.le.s32.totalorder 1, %s15
      %p139 = scmp.lt.s32.totalorder %s15, 3
      %p140 = pnand %p138, %p139
      %p141 = pneg %p140
      // Predicated region
      $region25: #{tpu_custom_call.1} parent=5 // pred_check
        _
      $region26: #{tpu_custom_call.1} parent=5 // pred_check_branch
        %143 = sbr.rel (%p140) target = $region28
      $region27: #{tpu_custom_call.1} parent=5 // pred_region
        %s144 = ssub.s32 %s15, 1
        %s145 = sand.u32 %s28, 1
        %s146 = scalar_lea.sflag [#allocation3], %s145
        %s147 = sand.u32 %s28, 1
        %s148 = smul.addr %s147, 8
        %s149 = scalar_lea.vmem [#allocation2], %s148
        // Predicated region
        $region29: #{tpu_custom_call.1} parent=27 // pred_check
          %p150 = pneg %p41
        $region30: #{tpu_custom_call.1} parent=27 // pred_check_branch
          %152 = sbr.rel (%p150) target = $region32
        $region31: #{tpu_custom_call.1} parent=27 // pred_region
          %154 = dma.done %s146, 128
        $region32: #{tpu_custom_call.1} parent=27 // pred_fallthru
          _
        // Predicated region
        $region33: #{tpu_custom_call.1} parent=27 // pred_check
          %p155 = pneg %p62
        $region34: #{tpu_custom_call.1} parent=27 // pred_check_branch
          %157 = sbr.rel (%p155) target = $region36
        $region35: #{tpu_custom_call.1} parent=27 // pred_region
          %159 = dma.done [#allocation6], 128
        $region36: #{tpu_custom_call.1} parent=27 // pred_fallthru
          _
        %s160 = sand.u32 %s28, 1
        %s161 = scalar_lea.sflag [#allocation3], %s160
        %s162 = sand.u32 %s28, 1
        %s163 = smul.addr %s162, 8
        %s164 = scalar_lea.vmem [#allocation2], %s163
        %p165 = pneg %p41
        %p166 = pneg %p38
        %p167 = pneg %p62
        %p168 = pneg %p59
        %p169 = pneg %p88
        %p170 = pneg %p85
        %s171 = sand.u32 %s75, 1
        %s172 = scalar_lea.sflag [#allocation4], %s171
        %s173 = sand.u32 %s75, 1
        %s174 = smul.addr %s173, 8
        %s175 = scalar_lea.vmem [#allocation7], %s174
        %v176 = vld [vmem:[%s149] sm:$0xff]
        %v177 = vld [vmem:[#allocation5] sm:$0xff]
        %v178 = vadd.f32 %v176, %v177
        %179 = vst [vmem:[%s175] sm:$0xff] %v178
        %s180 = sand.u32 %s75, 1
        %s181 = scalar_lea.sflag [#allocation4], %s180
        %s182 = sand.u32 %s75, 1
        %s183 = smul.addr %s182, 8
        %s184 = scalar_lea.vmem [#allocation7], %s183
        // Predicated region
        $region37: #{tpu_custom_call.1} parent=27 // pred_check
          %p185 = pneg %p85
        $region38: #{tpu_custom_call.1} parent=27 // pred_check_branch
          %187 = sbr.rel (%p185) target = $region40
        $region39: #{tpu_custom_call.1} parent=27 // pred_region
          %189 = vsyncadd %s181, 0
          %s190 = smul.addr %s20, 8
          %s191 = scalar_lea.hbm %s2, %s190
          %s193 = sshll.u32 %s184, 4
          %s194 = int_to_ptr.vmem [resolvable:$true] %s193
          %s195 = sshll.u32 %s191, 4
          %s196 = int_to_ptr.hbm [resolvable:$true] %s195
          %198 = dma.vmem_to_hbm [thread:$0]  %s194, 128, %s196, %s181
        $region40: #{tpu_custom_call.1} parent=27 // pred_fallthru
          _
      $region28: #{tpu_custom_call.1} parent=5 // pred_fallthru
        _
      %p199 = scmp.le.s32.totalorder 2, %s15
      // Predicated region
      $region41: #{tpu_custom_call.1} parent=5 // pred_check
        %p200 = pneg %p199
      $region42: #{tpu_custom_call.1} parent=5 // pred_check_branch
        %202 = sbr.rel (%p200) target = $region44
      $region43: #{tpu_custom_call.1} parent=5 // pred_region
        %s203 = ssub.s32 %s15, 2
        // Predicated region
        $region45: #{tpu_custom_call.1} parent=43 // pred_check
          %p204 = pneg %p91
        $region46: #{tpu_custom_call.1} parent=43 // pred_check_branch
          %206 = sbr.rel (%p204) target = $region48
        $region47: #{tpu_custom_call.1} parent=43 // pred_region
          %s207 = sand.u32 %s76, 1
          %s208 = scalar_lea.sflag [#allocation4], %s207
          %s209 = sand.u32 %s76, 1
          %s210 = smul.addr %s209, 8
          %s211 = scalar_lea.vmem [#allocation7], %s210
          %213 = dma.done %s208, 128
        $region48: #{tpu_custom_call.1} parent=43 // pred_fallthru
          _
      $region44: #{tpu_custom_call.1} parent=5 // pred_fallthru
        _
    $region6: #{tpu_custom_call.1} parent=1 // loop_footer
      %s19 = sadd.s32 1, %s15
    $region7: #{tpu_custom_call.1} parent=1 // loop_footer_branch
      %14 = sbr.rel target = $region3
    $region8: #{tpu_custom_call.1} parent=1 // loop_exit
      _
    %214 = vsyncpa [#allocation3], 1
    %s215 = scalar_lea.sflag [#allocation3], 1
    %216 = vsyncpa %s215, 1
    %217 = vsyncpa [#allocation6], 1
    %218 = vsyncpa [#allocation4], 1
    %s219 = scalar_lea.sflag [#allocation4], 1
    %220 = vsyncpa %s219, 1

// kernel: pmaa_adapter_forward.1
$region0: #{pmaa_adapter_forward.1}
  #allocation0 [shape = 'u32[]', space=smem, size = 0x4, offset = 0x4, fixed_abs, tag = 'smem constant byte address 0x4 - core index']
  #allocation1 [shape = 'u32[72,128]{1,0:T(1,128)}', space=vmem, size = 0x9000, scoped, tag = 'internal scratch']
  %s0 = inlined_call_operand.vmem [shape: bf16[514,128], index: 0, kind: input, shape index: {}]
  %s1 = inlined_call_operand.vmem [shape: bf16[514,64], index: 1, kind: input, shape index: {}]
  %s2 = inlined_call_operand.vmem [shape: bf16[128,128], index: 2, kind: input, shape index: {}]
  %s3 = inlined_call_operand.vmem [shape: bf16[64,128], index: 3, kind: input, shape index: {}]
  %s4 = inlined_call_operand.vmem [shape: bf16[64,128], index: 4, kind: input, shape index: {}]
  %s5 = inlined_call_operand.vmem [shape: bf16[514,128], index: 5, kind: output, shape index: {}]
  %s6 = sld [smem:[#allocation0]]
  $region97: #{pmaa_adapter_forward.1} parent=0
    _
  %s8 = ssub.s32 1, %s6
  %s9 = scalar_select 0, %s8, %s6
  $region1: #{pmaa_adapter_forward.1} parent=0
    #allocation2 [shape = 'u8[131072]{0}', space=vmem, size = 0x20000, scoped, tag = 'output window, operand 0']
    loop: start=0, step=1, limit=5
    $region2: #{pmaa_adapter_forward.1} parent=1 // loop_pre_header
      _
    $region3: #{pmaa_adapter_forward.1} parent=1 // loop_header
      %s11 = sphi 0, %s15
      %p12 = scmp.ge.s32.totalorder %s11, 5
      %s21 = sphi 0, %s23
      %s24 = sphi 0, %s21
      %s25 = sphi 0, %s24
      %s41 = sphi 0, %s25
      %s47 = sphi 0, %s49
      %s50 = sphi 0, %s47
      %s51 = sphi 0, %s50
      %s67 = sphi 0, %s51
      %s71 = sphi 0, %s71
      %s73 = sphi 0, %s71
      %s74 = sphi 0, %s73
      %s88 = sphi 0, %s74
      %s92 = sphi 0, %s92
      %s94 = sphi 0, %s92
      %s95 = sphi 0, %s94
      %s109 = sphi 0, %s95
      %s113 = sphi 0, %s113
      %s115 = sphi 0, %s113
      %s116 = sphi 0, %s115
      %s130 = sphi 0, %s116
      %s136 = sphi 0, %s138
      %s139 = sphi 0, %s136
      %s140 = sphi 0, %s139
      %s156 = sphi 0, %s140
    $region4: #{pmaa_adapter_forward.1} parent=1 // loop_header_branch
      %14 = sbr.rel (%p12) target = $region8
    $region5: #{pmaa_adapter_forward.1} parent=1 // loop_body
      %s16 = ssub.s32 %s11, 1
      %s17 = ssub.s32 %s11, 2
      %s18 = sadd.s32 %s11, 1
      %s19 = ssub.s32 %s11, %s18
      %p20 = scmp.eq.s32.totalorder %s19, 0
      %s22 = sadd.s32 %s21, 1
      %s23 = scalar_select %p20, %s21, %s22
      %p26 = pneg %p20
      %p27 = scmp.eq.s32.totalorder %s11, 2
      %p28 = por %p26, %p27
      %p29 = scmp.ne.s32.totalorder %s21, %s24
      %p30 = scmp.eq.s32.totalorder %s11, 0
      %p31 = por %p29, %p30
      %p32 = scmp.ne.s32.totalorder %s21, %s24
      %p33 = scmp.eq.s32.totalorder %s16, 2
      %p34 = por %p32, %p33
      %p35 = scmp.ne.s32.totalorder %s24, %s25
      %p36 = scmp.eq.s32.totalorder %s16, 0
      %p37 = por %p35, %p36
      %p38 = scmp.ne.s32.totalorder %s24, %s25
      %p39 = scmp.eq.s32.totalorder %s17, 2
      %p40 = por %p38, %p39
      %p42 = scmp.ne.s32.totalorder %s25, %s41
      %p43 = scmp.eq.s32.totalorder %s17, 0
      %p44 = por %p42, %p43
      %s45 = ssub.s32 %s11, %s18
      %p46 = scmp.eq.s32.totalorder %s45, 0
      %s48 = sadd.s32 %s47, 1
      %s49 = scalar_select %p46, %s47, %s48
      %p52 = pneg %p46
      %p53 = scmp.eq.s32.totalorder %s11, 2
      %p54 = por %p52, %p53
      %p55 = scmp.ne.s32.totalorder %s47, %s50
      %p56 = scmp.eq.s32.totalorder %s11, 0
      %p57 = por %p55, %p56
      %p58 = scmp.ne.s32.totalorder %s47, %s50
      %p59 = scmp.eq.s32.totalorder %s16, 2
      %p60 = por %p58, %p59
      %p61 = scmp.ne.s32.totalorder %s50, %s51
      %p62 = scmp.eq.s32.totalorder %s16, 0
      %p63 = por %p61, %p62
      %p64 = scmp.ne.s32.totalorder %s50, %s51
      %p65 = scmp.eq.s32.totalorder %s17, 2
      %p66 = por %p64, %p65
      %p68 = scmp.ne.s32.totalorder %s51, %s67
      %p69 = scmp.eq.s32.totalorder %s17, 0
      %p70 = por %p68, %p69
      %s72 = sadd.s32 %s71, 1
      %p75 = scmp.eq.s32.totalorder %s11, 2
      %p76 = scmp.ne.s32.totalorder %s71, %s73
      %p77 = scmp.eq.s32.totalorder %s11, 0
      %p78 = por %p76, %p77
      %p79 = scmp.ne.s32.totalorder %s71, %s73
      %p80 = scmp.eq.s32.totalorder %s16, 2
      %p81 = por %p79, %p80
      %p82 = scmp.ne.s32.totalorder %s73, %s74
      %p83 = scmp.eq.s32.totalorder %s16, 0
      %p84 = por %p82, %p83
      %p85 = scmp.ne.s32.totalorder %s73, %s74
      %p86 = scmp.eq.s32.totalorder %s17, 2
      %p87 = por %p85, %p86
      %p89 = scmp.ne.s32.totalorder %s74, %s88
      %p90 = scmp.eq.s32.totalorder %s17, 0
      %p91 = por %p89, %p90
      %s93 = sadd.s32 %s92, 1
      %p96 = scmp.eq.s32.totalorder %s11, 2
      %p97 = scmp.ne.s32.totalorder %s92, %s94
      %p98 = scmp.eq.s32.totalorder %s11, 0
      %p99 = por %p97, %p98
      %p100 = scmp.ne.s32.totalorder %s92, %s94
      %p101 = scmp.eq.s32.totalorder %s16, 2
      %p102 = por %p100, %p101
      %p103 = scmp.ne.s32.totalorder %s94, %s95
      %p104 = scmp.eq.s32.totalorder %s16, 0
      %p105 = por %p103, %p104
      %p106 = scmp.ne.s32.totalorder %s94, %s95
      %p107 = scmp.eq.s32.totalorder %s17, 2
      %p108 = por %p106, %p107
      %p110 = scmp.ne.s32.totalorder %s95, %s109
      %p111 = scmp.eq.s32.totalorder %s17, 0
      %p112 = por %p110, %p111
      %s114 = sadd.s32 %s113, 1
      %p117 = scmp.eq.s32.totalorder %s11, 2
      %p118 = scmp.ne.s32.totalorder %s113, %s115
      %p119 = scmp.eq.s32.totalorder %s11, 0
      %p120 = por %p118, %p119
      %p121 = scmp.ne.s32.totalorder %s113, %s115
      %p122 = scmp.eq.s32.totalorder %s16, 2
      %p123 = por %p121, %p122
      %p124 = scmp.ne.s32.totalorder %s115, %s116
      %p125 = scmp.eq.s32.totalorder %s16, 0
      %p126 = por %p124, %p125
      %p127 = scmp.ne.s32.totalorder %s115, %s116
      %p128 = scmp.eq.s32.totalorder %s17, 2
      %p129 = por %p127, %p128
      %p131 = scmp.ne.s32.totalorder %s116, %s130
      %p132 = scmp.eq.s32.totalorder %s17, 0
      %p133 = por %p131, %p132
      %s134 = ssub.s32 %s11, %s18
      %p135 = scmp.eq.s32.totalorder %s134, 0
      %s137 = sadd.s32 %s136, 1
      %s138 = scalar_select %p135, %s136, %s137
      %p141 = pneg %p135
      %p142 = scmp.eq.s32.totalorder %s11, 2
      %p143 = por %p141, %p142
      %p144 = scmp.ne.s32.totalorder %s136, %s139
      %p145 = scmp.eq.s32.totalorder %s11, 0
      %p146 = por %p144, %p145
      %p147 = scmp.ne.s32.totalorder %s136, %s139
      %p148 = scmp.eq.s32.totalorder %s16, 2
      %p149 = por %p147, %p148
      %p150 = scmp.ne.s32.totalorder %s139, %s140
      %p151 = scmp.eq.s32.totalorder %s16, 0
      %p152 = por %p150, %p151
      %p153 = scmp.ne.s32.totalorder %s139, %s140
      %p154 = scmp.eq.s32.totalorder %s17, 2
      %p155 = por %p153, %p154
      %p157 = scmp.ne.s32.totalorder %s140, %s156
      %p158 = scmp.eq.s32.totalorder %s17, 0
      %p159 = por %p157, %p158
      %p160 = scmp.le.s32.totalorder 1, %s11
      %p161 = scmp.lt.s32.totalorder %s11, 4
      %p162 = pnand %p160, %p161
      %p163 = pneg %p162
      // Predicated region
      $region9: #{pmaa_adapter_forward.1} parent=5 // pred_check
        _
      $region10: #{pmaa_adapter_forward.1} parent=5 // pred_check_branch
        %165 = sbr.rel (%p162) target = $region12
      $region11: #{pmaa_adapter_forward.1} parent=5 // pred_region
        %s166 = ssub.s32 %s11, 1
        // Predicated region
        $region13: #{pmaa_adapter_forward.1} parent=11 // pred_check
          %p167 = pneg %p84
        $region14: #{pmaa_adapter_forward.1} parent=11 // pred_check_branch
          %169 = sbr.rel (%p167) target = $region16
        $region15: #{pmaa_adapter_forward.1} parent=11 // pred_region
          _
        $region16: #{pmaa_adapter_forward.1} parent=11 // pred_fallthru
          _
        // Predicated region
        $region17: #{pmaa_adapter_forward.1} parent=11 // pred_check
          %p170 = pneg %p105
        $region18: #{pmaa_adapter_forward.1} parent=11 // pred_check_branch
          %172 = sbr.rel (%p170) target = $region20
        $region19: #{pmaa_adapter_forward.1} parent=11 // pred_region
          _
        $region20: #{pmaa_adapter_forward.1} parent=11 // pred_fallthru
          _
        // Predicated region
        $region21: #{pmaa_adapter_forward.1} parent=11 // pred_check
          %p173 = pneg %p126
        $region22: #{pmaa_adapter_forward.1} parent=11 // pred_check_branch
          %175 = sbr.rel (%p173) target = $region24
        $region23: #{pmaa_adapter_forward.1} parent=11 // pred_region
          _
        $region24: #{pmaa_adapter_forward.1} parent=11 // pred_fallthru
          _
      $region12: #{pmaa_adapter_forward.1} parent=5 // pred_fallthru
        _
      %p176 = scmp.lt.s32.totalorder %s11, 3
      // Predicated region
      $region25: #{pmaa_adapter_forward.1} parent=5 // pred_check
        %p177 = pneg %p176
      $region26: #{pmaa_adapter_forward.1} parent=5 // pred_check_branch
        %179 = sbr.rel (%p177) target = $region28
      $region27: #{pmaa_adapter_forward.1} parent=5 // pred_region
        // Predicated region
        $region29: #{pmaa_adapter_forward.1} parent=27 // pred_check
          %p180 = pneg %p31
        $region30: #{pmaa_adapter_forward.1} parent=27 // pred_check_branch
          %182 = sbr.rel (%p180) target = $region32
        $region31: #{pmaa_adapter_forward.1} parent=27 // pred_region
          %s183 = smul.u32 32, %s11
          %s184 = ssub.s32 65, %s183
          %p185 = scmp.lt.s32.totalorder %s184, 32
          %s186 = scalar_select %p185, %s184, 32
          %s187 = smul.u32 4, %s186
          %p188 = scmp.lt.s32.totalorder %s183, 64
          %s189 = scalar_select %p188, %s183, 64
          %s190 = smul.addr %s189, 4
          %s191 = scalar_lea.vmem %s0, %s190
          %s192 = smul.u32 32, %s11
          %s193 = ssub.s32 65, %s192
          %p194 = scmp.lt.s32.totalorder %s193, 32
          %s195 = scalar_select %p194, %s193, 32
          %s196 = smul.u32 4, %s195
        $region32: #{pmaa_adapter_forward.1} parent=27 // pred_fallthru
          _
        // Predicated region
        $region33: #{pmaa_adapter_forward.1} parent=27 // pred_check
          %p197 = pneg %p57
        $region34: #{pmaa_adapter_forward.1} parent=27 // pred_check_branch
          %199 = sbr.rel (%p197) target = $region36
        $region35: #{pmaa_adapter_forward.1} parent=27 // pred_region
          %s200 = smul.u32 32, %s11
          %s201 = ssub.s32 65, %s200
          %p202 = scmp.lt.s32.totalorder %s201, 32
          %s203 = scalar_select %p202, %s201, 32
          %s204 = smul.u32 4, %s203
          %p205 = scmp.lt.s32.totalorder %s200, 64
          %s206 = scalar_select %p205, %s200, 64
          %s207 = smul.addr %s206, 4
          %s208 = scalar_lea.vmem %s1, %s207
          %s209 = smul.u32 32, %s11
          %s210 = ssub.s32 65, %s209
          %p211 = scmp.lt.s32.totalorder %s210, 32
          %s212 = scalar_select %p211, %s210, 32
          %s213 = smul.u32 4, %s212
        $region36: #{pmaa_adapter_forward.1} parent=27 // pred_fallthru
          _
      $region28: #{pmaa_adapter_forward.1} parent=5 // pred_fallthru
        _
      %p214 = scmp.le.s32.totalorder 1, %s11
      %p215 = scmp.lt.s32.totalorder %s11, 4
      %p216 = pnand %p214, %p215
      %p217 = pneg %p216
      // Predicated region
      $region37: #{pmaa_adapter_forward.1} parent=5 // pred_check
        _
      $region38: #{pmaa_adapter_forward.1} parent=5 // pred_check_branch
        %219 = sbr.rel (%p216) target = $region40
      $region39: #{pmaa_adapter_forward.1} parent=5 // pred_region
        %s220 = ssub.s32 %s11, 1
        %s221 = smul.u32 32, %s16
        %s222 = ssub.s32 65, %s221
        %p223 = scmp.lt.s32.totalorder %s222, 32
        %s224 = scalar_select %p223, %s222, 32
        %s225 = smul.u32 4, %s224
        %p226 = scmp.lt.s32.totalorder %s221, 64
        %s227 = scalar_select %p226, %s221, 64
        %s228 = smul.addr %s227, 4
        %s229 = scalar_lea.vmem %s0, %s228
        %p230 = pneg %p37
        %p231 = pneg %p34
        %s232 = smul.u32 32, %s16
        %s233 = ssub.s32 65, %s232
        %p234 = scmp.lt.s32.totalorder %s233, 32
        %s235 = scalar_select %p234, %s233, 32
        %s236 = smul.u32 4, %s235
        %p237 = scmp.lt.s32.totalorder %s232, 64
        %s238 = scalar_select %p237, %s232, 64
        %s239 = smul.addr %s238, 4
        %s240 = scalar_lea.vmem %s1, %s239
        %p241 = pneg %p63
        %p242 = pneg %p60
        %p243 = pneg %p84
        %p244 = pneg %p81
        %p245 = pneg %p105
        %p246 = pneg %p102
        %p247 = pneg %p126
        %p248 = pneg %p123
        %p249 = pneg %p152
        %p250 = pneg %p149
        %s251 = sand.u32 %s139, 1
        %s252 = sand.u32 %s139, 1
        %s253 = smul.addr %s252, 128
        %s254 = scalar_lea.vmem [#allocation2], %s253
        %s255 = smul.u32 32, %s16
        %s256 = ssub.s32 65, %s255
        %p257 = scmp.lt.s32.totalorder %s256, 32
        %s258 = scalar_select %p257, %s256, 32
        %s259 = smul.u32 4, %s258
        %p260 = scmp.lt.s32.totalorder %s255, 64
        %s261 = scalar_select %p260, %s255, 64
        %s262 = smul.addr %s261, 4
        %s263 = scalar_lea.vmem %s0, %s262
        %s264 = smul.u32 32, %s16
        %s265 = ssub.s32 65, %s264
        %p266 = scmp.lt.s32.totalorder %s265, 32
        %s267 = scalar_select %p266, %s265, 32
        %s268 = smul.u32 4, %s267
        %s269 = smul.u32 32, %s16
        %s270 = ssub.s32 65, %s269
        %p271 = scmp.lt.s32.totalorder %s270, 32
        %s272 = scalar_select %p271, %s270, 32
        %s273 = smul.u32 4, %s272
        %p274 = scmp.lt.s32.totalorder %s269, 64
        %s275 = scalar_select %p274, %s269, 64
        %s276 = smul.addr %s275, 4
        %s277 = scalar_lea.vmem %s1, %s276
        %s278 = smul.u32 32, %s16
        %s279 = ssub.s32 65, %s278
        %p280 = scmp.lt.s32.totalorder %s279, 32
        %s281 = scalar_select %p280, %s279, 32
        %s282 = smul.u32 4, %s281
        %s283 = smul.u32 32, %s16
        %s284 = ssub.s32 65, %s283
        %p285 = scmp.lt.s32.totalorder %s284, 32
        %s286 = scalar_select %p285, %s284, 32
        %s287 = smul.u32 4, %s286
        %v289 = vld [vmem:[%s263] sm:$0xf]
        %v290 = vld [vmem:[%s263 + $0x4] sm:$0xf]
        %v291 = vld [vmem:[%s263 + $0x8] sm:$0xf]
        %v292 = vld [vmem:[%s263 + $0xc] sm:$0xf]
        %v293 = vld [vmem:[%s263 + $0x10] sm:$0xf]
        %v294 = vld [vmem:[%s263 + $0x14] sm:$0xf]
        %v295 = vld [vmem:[%s263 + $0x18] sm:$0xf]
        %v296 = vld [vmem:[%s263 + $0x1c] sm:$0xf]
        %v297 = vld [vmem:[%s263 + $0x20] sm:$0xf]
        %v298 = vld [vmem:[%s263 + $0x24] sm:$0xf]
        %v299 = vld [vmem:[%s263 + $0x28] sm:$0xf]
        %v300 = vld [vmem:[%s263 + $0x2c] sm:$0xf]
        %v301 = vld [vmem:[%s263 + $0x30] sm:$0xf]
        %v302 = vld [vmem:[%s263 + $0x34] sm:$0xf]
        %v303 = vld [vmem:[%s263 + $0x38] sm:$0xf]
        %v304 = vld [vmem:[%s263 + $0x3c] sm:$0xf]
        %v305 = vld [vmem:[%s263 + $0x40] sm:$0xf]
        %v306 = vld [vmem:[%s263 + $0x44] sm:$0xf]
        %v307 = vld [vmem:[%s263 + $0x48] sm:$0xf]
        %v308 = vld [vmem:[%s263 + $0x4c] sm:$0xf]
        %v309 = vld [vmem:[%s263 + $0x50] sm:$0xf]
        %v310 = vld [vmem:[%s263 + $0x54] sm:$0xf]
        %v311 = vld [vmem:[%s263 + $0x58] sm:$0xf]
        %v312 = vld [vmem:[%s263 + $0x5c] sm:$0xf]
        %v313 = vld [vmem:[%s263 + $0x60] sm:$0xf]
        %v314 = vld [vmem:[%s263 + $0x64] sm:$0xf]
        %v315 = vld [vmem:[%s263 + $0x68] sm:$0xf]
        %v316 = vld [vmem:[%s263 + $0x6c] sm:$0xf]
        %v317 = vld [vmem:[%s263 + $0x70] sm:$0xf]
        %v318 = vld [vmem:[%s263 + $0x74] sm:$0xf]
        %v319 = vld [vmem:[%s263 + $0x78] sm:$0xf]
        %v320 = vld [vmem:[%s263 + $0x7c] sm:$0xf]
        %v321 = vld [vmem:[%s277] sm:$0xf]
        %v322 = vld [vmem:[%s277 + $0x4] sm:$0xf]
        %v323 = vld [vmem:[%s277 + $0x8] sm:$0xf]
        %v324 = vld [vmem:[%s277 + $0xc] sm:$0xf]
        %v325 = vld [vmem:[%s277 + $0x10] sm:$0xf]
        %v326 = vld [vmem:[%s277 + $0x14] sm:$0xf]
        %v327 = vld [vmem:[%s277 + $0x18] sm:$0xf]
        %v328 = vld [vmem:[%s277 + $0x1c] sm:$0xf]
        %v329 = vld [vmem:[%s277 + $0x20] sm:$0xf]
        %v330 = vld [vmem:[%s277 + $0x24] sm:$0xf]
        %v331 = vld [vmem:[%s277 + $0x28] sm:$0xf]
        %v332 = vld [vmem:[%s277 + $0x2c] sm:$0xf]
        %v333 = vld [vmem:[%s277 + $0x30] sm:$0xf]
        %v334 = vld [vmem:[%s277 + $0x34] sm:$0xf]
        %v335 = vld [vmem:[%s277 + $0x38] sm:$0xf]
        %v336 = vld [vmem:[%s277 + $0x3c] sm:$0xf]
        %v337 = vld [vmem:[%s277 + $0x40] sm:$0xf]
        %v338 = vld [vmem:[%s277 + $0x44] sm:$0xf]
        %v339 = vld [vmem:[%s277 + $0x48] sm:$0xf]
        %v340 = vld [vmem:[%s277 + $0x4c] sm:$0xf]
        %v341 = vld [vmem:[%s277 + $0x50] sm:$0xf]
        %v342 = vld [vmem:[%s277 + $0x54] sm:$0xf]
        %v343 = vld [vmem:[%s277 + $0x58] sm:$0xf]
        %v344 = vld [vmem:[%s277 + $0x5c] sm:$0xf]
        %v345 = vld [vmem:[%s277 + $0x60] sm:$0xf]
        %v346 = vld [vmem:[%s277 + $0x64] sm:$0xf]
        %v347 = vld [vmem:[%s277 + $0x68] sm:$0xf]
        %v348 = vld [vmem:[%s277 + $0x6c] sm:$0xf]
        %v349 = vld [vmem:[%s277 + $0x70] sm:$0xf]
        %v350 = vld [vmem:[%s277 + $0x74] sm:$0xf]
        %v351 = vld [vmem:[%s277 + $0x78] sm:$0xf]
        %v352 = vld [vmem:[%s277 + $0x7c] sm:$0xf]
        %v353 = vld [vmem:[%s2] sm:$0xf]
        %v354 = vld [vmem:[%s2 + $0x4] sm:$0xf]
        %v355 = vld [vmem:[%s2 + $0x8] sm:$0xf]
        %v356 = vld [vmem:[%s2 + $0xc] sm:$0xf]
        %v357 = vld [vmem:[%s2 + $0x10] sm:$0xf]
        %v358 = vld [vmem:[%s2 + $0x14] sm:$0xf]
        %v359 = vld [vmem:[%s2 + $0x18] sm:$0xf]
        %v360 = vld [vmem:[%s2 + $0x1c] sm:$0xf]
        %v361 = vld [vmem:[%s2 + $0x20] sm:$0xf]
        %v362 = vld [vmem:[%s2 + $0x24] sm:$0xf]
        %v363 = vld [vmem:[%s2 + $0x28] sm:$0xf]
        %v364 = vld [vmem:[%s2 + $0x2c] sm:$0xf]
        %v365 = vld [vmem:[%s2 + $0x30] sm:$0xf]
        %v366 = vld [vmem:[%s2 + $0x34] sm:$0xf]
        %v367 = vld [vmem:[%s2 + $0x38] sm:$0xf]
        %v368 = vld [vmem:[%s2 + $0x3c] sm:$0xf]
        %v401 = vunpack.c.l.b16 %v289
        %v402 = vunpack.c.l.b16 %v290
        %v403 = vunpack.c.l.b16 %v291
        %v404 = vunpack.c.l.b16 %v292
        %v405 = vunpack.c.l.b16 %v293
        %v406 = vunpack.c.l.b16 %v294
        %v407 = vunpack.c.l.b16 %v295
        %v408 = vunpack.c.l.b16 %v296
        %v409 = vunpack.c.l.b16 %v297
        %v410 = vunpack.c.l.b16 %v298
        %v411 = vunpack.c.l.b16 %v299
        %v412 = vunpack.c.l.b16 %v300
        %v413 = vunpack.c.l.b16 %v301
        %v414 = vunpack.c.l.b16 %v302
        %v415 = vunpack.c.l.b16 %v303
        %v416 = vunpack.c.l.b16 %v304
        %v417 = vunpack.c.l.b16 %v305
        %v418 = vunpack.c.l.b16 %v306
        %v419 = vunpack.c.l.b16 %v307
        %v420 = vunpack.c.l.b16 %v308
        %v421 = vunpack.c.l.b16 %v309
        %v422 = vunpack.c.l.b16 %v310
        %v423 = vunpack.c.l.b16 %v311
        %v424 = vunpack.c.l.b16 %v312
        %v425 = vunpack.c.l.b16 %v313
        %v426 = vunpack.c.l.b16 %v314
        %v427 = vunpack.c.l.b16 %v315
        %v428 = vunpack.c.l.b16 %v316
        %v429 = vunpack.c.l.b16 %v317
        %v430 = vunpack.c.l.b16 %v318
        %v431 = vunpack.c.l.b16 %v319
        %v432 = vunpack.c.l.b16 %v320
        %v433 = vpack.c.b16 %v402, %v401
        %v434 = vpack.c.b16 %v404, %v403
        %v435 = vpack.c.b16 %v406, %v405
        %v436 = vpack.c.b16 %v408, %v407
        %v437 = vpack.c.b16 %v410, %v409
        %v438 = vpack.c.b16 %v412, %v411
        %v439 = vpack.c.b16 %v414, %v413
        %v440 = vpack.c.b16 %v416, %v415
        %v441 = vpack.c.b16 %v418, %v417
        %v442 = vpack.c.b16 %v420, %v419
        %v443 = vpack.c.b16 %v422, %v421
        %v444 = vpack.c.b16 %v424, %v423
        %v445 = vpack.c.b16 %v426, %v425
        %v446 = vpack.c.b16 %v428, %v427
        %v447 = vpack.c.b16 %v430, %v429
        %v448 = vpack.c.b16 %v432, %v431
        %v481 = vunpack.c.l.b16 %v353
        %v482 = vunpack.c.l.b16 %v354
        %v483 = vunpack.c.l.b16 %v355
        %v484 = vunpack.c.l.b16 %v356
        %v485 = vunpack.c.l.b16 %v357
        %v486 = vunpack.c.l.b16 %v358
        %v487 = vunpack.c.l.b16 %v359
        %v488 = vunpack.c.l.b16 %v360
        %v489 = vunpack.c.l.b16 %v361
        %v490 = vunpack.c.l.b16 %v362
        %v491 = vunpack.c.l.b16 %v363
        %v492 = vunpack.c.l.b16 %v364
        %v493 = vunpack.c.l.b16 %v365
        %v494 = vunpack.c.l.b16 %v366
        %v495 = vunpack.c.l.b16 %v367
        %v496 = vunpack.c.l.b16 %v368
        %v497 = vpack.c.b16 %v482, %v481
        %v498 = vpack.c.b16 %v484, %v483
        %v499 = vpack.c.b16 %v486, %v485
        %v500 = vpack.c.b16 %v488, %v487
        %v501 = vpack.c.b16 %v490, %v489
        %v502 = vpack.c.b16 %v492, %v491
        %v503 = vpack.c.b16 %v494, %v493
        %v504 = vpack.c.b16 %v496, %v495
        %513 = vmatpush.bf16.msra.mxu0 %v504
        %514 = vmatpush.bf16.msra.mxu0 %v503
        %515 = vmatpush.bf16.msra.mxu0 %v502
        %516 = vmatpush.bf16.msra.mxu0 %v501
        %517 = vmatpush.bf16.msra.mxu0 %v500
        %518 = vmatpush.bf16.msra.mxu0 %v499
        %519 = vmatpush.bf16.msra.mxu0 %v498
        %520 = vmatpush.bf16.msra.mxu0 %v497
        %521 = vmatmul.bf16.gmra.mxu0 %v433
        %v522 = vpop.f32.mrf.mxu0
        %v523 = vadd.f32 0.0, %v522
        %v524 = vpop.f32.mrf.mxu0
        %v525 = vadd.f32 0.0, %v524
        %526 = vmatmul.bf16.gmra.mxu0 %v434
        %v527 = vpop.f32.mrf.mxu0
        %v528 = vadd.f32 0.0, %v527
        %v529 = vpop.f32.mrf.mxu0
        %v530 = vadd.f32 0.0, %v529
        %531 = vmatmul.bf16.gmra.mxu0 %v435
        %v532 = vpop.f32.mrf.mxu0
        %v533 = vadd.f32 0.0, %v532
        %v534 = vpop.f32.mrf.mxu0
        %v535 = vadd.f32 0.0, %v534
        %536 = vmatmul.bf16.gmra.mxu0 %v436
        %v537 = vpop.f32.mrf.mxu0
        %v538 = vadd.f32 0.0, %v537
        %v539 = vpop.f32.mrf.mxu0
        %v540 = vadd.f32 0.0, %v539
        %541 = vmatmul.bf16.gmra.mxu0 %v437
        %v542 = vpop.f32.mrf.mxu0
        %v543 = vadd.f32 0.0, %v542
        %v544 = vpop.f32.mrf.mxu0
        %v545 = vadd.f32 0.0, %v544
        %546 = vmatmul.bf16.gmra.mxu0 %v438
        %v547 = vpop.f32.mrf.mxu0
        %v548 = vadd.f32 0.0, %v547
        %v549 = vpop.f32.mrf.mxu0
        %v550 = vadd.f32 0.0, %v549
        %551 = vmatmul.bf16.gmra.mxu0 %v439
        %v552 = vpop.f32.mrf.mxu0
        %v553 = vadd.f32 0.0, %v552
        %v554 = vpop.f32.mrf.mxu0
        %v555 = vadd.f32 0.0, %v554
        %556 = vmatmul.bf16.gmra.mxu0 %v440
        %v557 = vpop.f32.mrf.mxu0
        %v558 = vadd.f32 0.0, %v557
        %v559 = vpop.f32.mrf.mxu0
        %v560 = vadd.f32 0.0, %v559
        %561 = vmatmul.bf16.gmra.mxu0 %v441
        %v562 = vpop.f32.mrf.mxu0
        %v563 = vadd.f32 0.0, %v562
        %v564 = vpop.f32.mrf.mxu0
        %v565 = vadd.f32 0.0, %v564
        %566 = vmatmul.bf16.gmra.mxu0 %v442
        %v567 = vpop.f32.mrf.mxu0
        %v568 = vadd.f32 0.0, %v567
        %v569 = vpop.f32.mrf.mxu0
        %v570 = vadd.f32 0.0, %v569
        %571 = vmatmul.bf16.gmra.mxu0 %v443
        %v572 = vpop.f32.mrf.mxu0
        %v573 = vadd.f32 0.0, %v572
        %v574 = vpop.f32.mrf.mxu0
        %v575 = vadd.f32 0.0, %v574
        %576 = vmatmul.bf16.gmra.mxu0 %v444
        %v577 = vpop.f32.mrf.mxu0
        %v578 = vadd.f32 0.0, %v577
        %v579 = vpop.f32.mrf.mxu0
        %v580 = vadd.f32 0.0, %v579
        %581 = vmatmul.bf16.gmra.mxu0 %v445
        %v582 = vpop.f32.mrf.mxu0
        %v583 = vadd.f32 0.0, %v582
        %v584 = vpop.f32.mrf.mxu0
        %v585 = vadd.f32 0.0, %v584
        %586 = vmatmul.bf16.gmra.mxu0 %v446
        %v587 = vpop.f32.mrf.mxu0
        %v588 = vadd.f32 0.0, %v587
        %v589 = vpop.f32.mrf.mxu0
        %v590 = vadd.f32 0.0, %v589
        %591 = vmatmul.bf16.gmra.mxu0 %v447
        %v592 = vpop.f32.mrf.mxu0
        %v593 = vadd.f32 0.0, %v592
        %v594 = vpop.f32.mrf.mxu0
        %v595 = vadd.f32 0.0, %v594
        %596 = vmatmul.bf16.gmra.mxu0 %v448
        %v597 = vpop.f32.mrf.mxu0
        %v598 = vadd.f32 0.0, %v597
        %v599 = vpop.f32.mrf.mxu0
        %v600 = vadd.f32 0.0, %v599
        %601 = vdwg.mxu0
        %v602 = vld [vmem:[%s3] sm:$0xf]
        %v603 = vld [vmem:[%s3 + $0x4] sm:$0xf]
        %v604 = vld [vmem:[%s3 + $0x8] sm:$0xf]
        %v605 = vld [vmem:[%s3 + $0xc] sm:$0xf]
        %v606 = vld [vmem:[%s3 + $0x10] sm:$0xf]
        %v607 = vld [vmem:[%s3 + $0x14] sm:$0xf]
        %v608 = vld [vmem:[%s3 + $0x18] sm:$0xf]
        %v609 = vld [vmem:[%s3 + $0x1c] sm:$0xf]
        %v642 = vunpack.c.l.b16 %v321
        %v643 = vunpack.c.l.b16 %v322
        %v644 = vunpack.c.l.b16 %v323
        %v645 = vunpack.c.l.b16 %v324
        %v646 = vunpack.c.l.b16 %v325
        %v647 = vunpack.c.l.b16 %v326
        %v648 = vunpack.c.l.b16 %v327
        %v649 = vunpack.c.l.b16 %v328
        %v650 = vunpack.c.l.b16 %v329
        %v651 = vunpack.c.l.b16 %v330
        %v652 = vunpack.c.l.b16 %v331
        %v653 = vunpack.c.l.b16 %v332
        %v654 = vunpack.c.l.b16 %v333
        %v655 = vunpack.c.l.b16 %v334
        %v656 = vunpack.c.l.b16 %v335
        %v657 = vunpack.c.l.b16 %v336
        %v658 = vunpack.c.l.b16 %v337
        %v659 = vunpack.c.l.b16 %v338
        %v660 = vunpack.c.l.b16 %v339
        %v661 = vunpack.c.l.b16 %v340
        %v662 = vunpack.c.l.b16 %v341
        %v663 = vunpack.c.l.b16 %v342
        %v664 = vunpack.c.l.b16 %v343
        %v665 = vunpack.c.l.b16 %v344
        %v666 = vunpack.c.l.b16 %v345
        %v667 = vunpack.c.l.b16 %v346
        %v668 = vunpack.c.l.b16 %v347
        %v669 = vunpack.c.l.b16 %v348
        %v670 = vunpack.c.l.b16 %v349
        %v671 = vunpack.c.l.b16 %v350
        %v672 = vunpack.c.l.b16 %v351
        %v673 = vunpack.c.l.b16 %v352
        %v674 = vpack.c.b16 %v643, %v642
        %v675 = vpack.c.b16 %v645, %v644
        %v676 = vpack.c.b16 %v647, %v646
        %v677 = vpack.c.b16 %v649, %v648
        %v678 = vpack.c.b16 %v651, %v650
        %v679 = vpack.c.b16 %v653, %v652
        %v680 = vpack.c.b16 %v655, %v654
        %v681 = vpack.c.b16 %v657, %v656
        %v682 = vpack.c.b16 %v659, %v658
        %v683 = vpack.c.b16 %v661, %v660
        %v684 = vpack.c.b16 %v663, %v662
        %v685 = vpack.c.b16 %v665, %v664
        %v686 = vpack.c.b16 %v667, %v666
        %v687 = vpack.c.b16 %v669, %v668
        %v688 = vpack.c.b16 %v671, %v670
        %v689 = vpack.c.b16 %v673, %v672
        %v698 = vunpack.c.l.b16 %v602
        %v699 = vunpack.c.l.b16 %v603
        %v700 = vunpack.c.l.b16 %v604
        %v701 = vunpack.c.l.b16 %v605
        %v702 = vunpack.c.l.b16 %v606
        %v703 = vunpack.c.l.b16 %v607
        %v704 = vunpack.c.l.b16 %v608
        %v705 = vunpack.c.l.b16 %v609
        %v706 = vpack.c.b16 %v699, %v698
        %v707 = vpack.c.b16 %v701, %v700
        %v708 = vpack.c.b16 %v703, %v702
        %v709 = vpack.c.b16 %v705, %v704
        %vm714 = vcmask 523264
        %v716 = vsel %vm714, %v674, 0
        %v719 = vsel %vm714, %v675, 0
        %v722 = vsel %vm714, %v676, 0
        %v725 = vsel %vm714, %v677, 0
        %v728 = vsel %vm714, %v678, 0
        %v731 = vsel %vm714, %v679, 0
        %v734 = vsel %vm714, %v680, 0
        %v737 = vsel %vm714, %v681, 0
        %v740 = vsel %vm714, %v682, 0
        %v743 = vsel %vm714, %v683, 0
        %v746 = vsel %vm714, %v684, 0
        %v749 = vsel %vm714, %v685, 0
        %v752 = vsel %vm714, %v686, 0
        %v755 = vsel %vm714, %v687, 0
        %v758 = vsel %vm714, %v688, 0
        %v761 = vsel %vm714, %v689, 0
        %763 = vmatpush.bf16.msra.mxu0 0
        %764 = vmatpush.bf16.msra.mxu0 0
        %765 = vmatpush.bf16.msra.mxu0 0
        %766 = vmatpush.bf16.msra.mxu0 0
        %767 = vmatpush.bf16.msra.mxu0 %v709
        %768 = vmatpush.bf16.msra.mxu0 %v708
        %769 = vmatpush.bf16.msra.mxu0 %v707
        %770 = vmatpush.bf16.msra.mxu0 %v706
        %771 = vmatmul.bf16.gmra.mxu0 %v716
        %v772 = vpop.f32.mrf.mxu0
        %v773 = vadd.f32 0.0, %v772
        %v774 = vpop.f32.mrf.mxu0
        %v775 = vadd.f32 0.0, %v774
        %776 = vmatmul.bf16.gmra.mxu0 %v719
        %v777 = vpop.f32.mrf.mxu0
        %v778 = vadd.f32 0.0, %v777
        %v779 = vpop.f32.mrf.mxu0
        %v780 = vadd.f32 0.0, %v779
        %781 = vmatmul.bf16.gmra.mxu0 %v722
        %v782 = vpop.f32.mrf.mxu0
        %v783 = vadd.f32 0.0, %v782
        %v784 = vpop.f32.mrf.mxu0
        %v785 = vadd.f32 0.0, %v784
        %786 = vmatmul.bf16.gmra.mxu0 %v725
        %v787 = vpop.f32.mrf.mxu0
        %v788 = vadd.f32 0.0, %v787
        %v789 = vpop.f32.mrf.mxu0
        %v790 = vadd.f32 0.0, %v789
        %791 = vmatmul.bf16.gmra.mxu0 %v728
        %v792 = vpop.f32.mrf.mxu0
        %v793 = vadd.f32 0.0, %v792
        %v794 = vpop.f32.mrf.mxu0
        %v795 = vadd.f32 0.0, %v794
        %796 = vmatmul.bf16.gmra.mxu0 %v731
        %v797 = vpop.f32.mrf.mxu0
        %v798 = vadd.f32 0.0, %v797
        %v799 = vpop.f32.mrf.mxu0
        %v800 = vadd.f32 0.0, %v799
        %801 = vmatmul.bf16.gmra.mxu0 %v734
        %v802 = vpop.f32.mrf.mxu0
        %v803 = vadd.f32 0.0, %v802
        %v804 = vpop.f32.mrf.mxu0
        %v805 = vadd.f32 0.0, %v804
        %806 = vmatmul.bf16.gmra.mxu0 %v737
        %v807 = vpop.f32.mrf.mxu0
        %v808 = vadd.f32 0.0, %v807
        %v809 = vpop.f32.mrf.mxu0
        %v810 = vadd.f32 0.0, %v809
        %811 = vmatmul.bf16.gmra.mxu0 %v740
        %v812 = vpop.f32.mrf.mxu0
        %v813 = vadd.f32 0.0, %v812
        %v814 = vpop.f32.mrf.mxu0
        %v815 = vadd.f32 0.0, %v814
        %816 = vmatmul.bf16.gmra.mxu0 %v743
        %v817 = vpop.f32.mrf.mxu0
        %v818 = vadd.f32 0.0, %v817
        %v819 = vpop.f32.mrf.mxu0
        %v820 = vadd.f32 0.0, %v819
        %821 = vmatmul.bf16.gmra.mxu0 %v746
        %v822 = vpop.f32.mrf.mxu0
        %v823 = vadd.f32 0.0, %v822
        %v824 = vpop.f32.mrf.mxu0
        %v825 = vadd.f32 0.0, %v824
        %826 = vmatmul.bf16.gmra.mxu0 %v749
        %v827 = vpop.f32.mrf.mxu0
        %v828 = vadd.f32 0.0, %v827
        %v829 = vpop.f32.mrf.mxu0
        %v830 = vadd.f32 0.0, %v829
        %831 = vmatmul.bf16.gmra.mxu0 %v752
        %v832 = vpop.f32.mrf.mxu0
        %v833 = vadd.f32 0.0, %v832
        %v834 = vpop.f32.mrf.mxu0
        %v835 = vadd.f32 0.0, %v834
        %836 = vmatmul.bf16.gmra.mxu0 %v755
        %v837 = vpop.f32.mrf.mxu0
        %v838 = vadd.f32 0.0, %v837
        %v839 = vpop.f32.mrf.mxu0
        %v840 = vadd.f32 0.0, %v839
        %841 = vmatmul.bf16.gmra.mxu0 %v758
        %v842 = vpop.f32.mrf.mxu0
        %v843 = vadd.f32 0.0, %v842
        %v844 = vpop.f32.mrf.mxu0
        %v845 = vadd.f32 0.0, %v844
        %846 = vmatmul.bf16.gmra.mxu0 %v761
        %v847 = vpop.f32.mrf.mxu0
        %v848 = vadd.f32 0.0, %v847
        %v849 = vpop.f32.mrf.mxu0
        %v850 = vadd.f32 0.0, %v849
        %851 = vdwg.mxu0
        %v852 = vld [vmem:[%s4] sm:$0xf]
        %v853 = vld [vmem:[%s4 + $0x4] sm:$0xf]
        %v854 = vld [vmem:[%s4 + $0x8] sm:$0xf]
        %v855 = vld [vmem:[%s4 + $0xc] sm:$0xf]
        %v856 = vld [vmem:[%s4 + $0x10] sm:$0xf]
        %v857 = vld [vmem:[%s4 + $0x14] sm:$0xf]
        %v858 = vld [vmem:[%s4 + $0x18] sm:$0xf]
        %v859 = vld [vmem:[%s4 + $0x1c] sm:$0xf]
        %v868 = vunpack.c.l.b16 %v852
        %v869 = vunpack.c.l.b16 %v853
        %v870 = vunpack.c.l.b16 %v854
        %v871 = vunpack.c.l.b16 %v855
        %v872 = vunpack.c.l.b16 %v856
        %v873 = vunpack.c.l.b16 %v857
        %v874 = vunpack.c.l.b16 %v858
        %v875 = vunpack.c.l.b16 %v859
        %v876 = vpack.c.b16 %v869, %v868
        %v877 = vpack.c.b16 %v871, %v870
        %v878 = vpack.c.b16 %v873, %v872
        %v879 = vpack.c.b16 %v875, %v874
        %884 = vmatpush.bf16.msra.mxu0 0
        %885 = vmatpush.bf16.msra.mxu0 0
        %886 = vmatpush.bf16.msra.mxu0 0
        %887 = vmatpush.bf16.msra.mxu0 0
        %888 = vmatpush.bf16.msra.mxu0 %v879
        %889 = vmatpush.bf16.msra.mxu0 %v878
        %890 = vmatpush.bf16.msra.mxu0 %v877
        %891 = vmatpush.bf16.msra.mxu0 %v876
        %892 = vmatmul.bf16.gmra.mxu0 %v716
        %v893 = vpop.f32.mrf.mxu0
        %v894 = vadd.f32 0.0, %v893
        %v895 = vpop.f32.mrf.mxu0
        %v896 = vadd.f32 0.0, %v895
        %897 = vmatmul.bf16.gmra.mxu0 %v719
        %v898 = vpop.f32.mrf.mxu0
        %v899 = vadd.f32 0.0, %v898
        %v900 = vpop.f32.mrf.mxu0
        %v901 = vadd.f32 0.0, %v900
        %902 = vmatmul.bf16.gmra.mxu0 %v722
        %v903 = vpop.f32.mrf.mxu0
        %v904 = vadd.f32 0.0, %v903
        %v905 = vpop.f32.mrf.mxu0
        %v906 = vadd.f32 0.0, %v905
        %907 = vmatmul.bf16.gmra.mxu0 %v725
        %v908 = vpop.f32.mrf.mxu0
        %v909 = vadd.f32 0.0, %v908
        %v910 = vpop.f32.mrf.mxu0
        %v911 = vadd.f32 0.0, %v910
        %912 = vmatmul.bf16.gmra.mxu0 %v728
        %v913 = vpop.f32.mrf.mxu0
        %v914 = vadd.f32 0.0, %v913
        %v915 = vpop.f32.mrf.mxu0
        %v916 = vadd.f32 0.0, %v915
        %917 = vmatmul.bf16.gmra.mxu0 %v731
        %v918 = vpop.f32.mrf.mxu0
        %v919 = vadd.f32 0.0, %v918
        %v920 = vpop.f32.mrf.mxu0
        %v921 = vadd.f32 0.0, %v920
        %922 = vmatmul.bf16.gmra.mxu0 %v734
        %v923 = vpop.f32.mrf.mxu0
        %v924 = vadd.f32 0.0, %v923
        %v925 = vpop.f32.mrf.mxu0
        %v926 = vadd.f32 0.0, %v925
        %927 = vmatmul.bf16.gmra.mxu0 %v737
        %v928 = vpop.f32.mrf.mxu0
        %v929 = vadd.f32 0.0, %v928
        %v930 = vpop.f32.mrf.mxu0
        %v931 = vadd.f32 0.0, %v930
        %932 = vmatmul.bf16.gmra.mxu0 %v740
        %v933 = vpop.f32.mrf.mxu0
        %v934 = vadd.f32 0.0, %v933
        %v935 = vpop.f32.mrf.mxu0
        %v936 = vadd.f32 0.0, %v935
        %937 = vmatmul.bf16.gmra.mxu0 %v743
        %v938 = vpop.f32.mrf.mxu0
        %v939 = vadd.f32 0.0, %v938
        %v940 = vpop.f32.mrf.mxu0
        %v941 = vadd.f32 0.0, %v940
        %942 = vmatmul.bf16.gmra.mxu0 %v746
        %v943 = vpop.f32.mrf.mxu0
        %v944 = vadd.f32 0.0, %v943
        %v945 = vpop.f32.mrf.mxu0
        %v946 = vadd.f32 0.0, %v945
        %947 = vmatmul.bf16.gmra.mxu0 %v749
        %v948 = vpop.f32.mrf.mxu0
        %v949 = vadd.f32 0.0, %v948
        %v950 = vpop.f32.mrf.mxu0
        %v951 = vadd.f32 0.0, %v950
        %952 = vmatmul.bf16.gmra.mxu0 %v752
        %v953 = vpop.f32.mrf.mxu0
        %v954 = vadd.f32 0.0, %v953
        %v955 = vpop.f32.mrf.mxu0
        %v956 = vadd.f32 0.0, %v955
        %957 = vmatmul.bf16.gmra.mxu0 %v755
        %v958 = vpop.f32.mrf.mxu0
        %v959 = vadd.f32 0.0, %v958
        %v960 = vpop.f32.mrf.mxu0
        %v961 = vadd.f32 0.0, %v960
        %962 = vmatmul.bf16.gmra.mxu0 %v758
        %v963 = vpop.f32.mrf.mxu0
        %v964 = vadd.f32 0.0, %v963
        %v965 = vpop.f32.mrf.mxu0
        %v966 = vadd.f32 0.0, %v965
        %967 = vmatmul.bf16.gmra.mxu0 %v761
        %v968 = vpop.f32.mrf.mxu0
        %v969 = vadd.f32 0.0, %v968
        %v970 = vpop.f32.mrf.mxu0
        %v971 = vadd.f32 0.0, %v970
        %972 = vdwg.mxu0
        %v973 = vxor.u32 %v773, 2147483648
        %v974 = vxor.u32 %v775, 2147483648
        %v975 = vxor.u32 %v778, 2147483648
        %v976 = vxor.u32 %v780, 2147483648
        %v977 = vxor.u32 %v783, 2147483648
        %v978 = vxor.u32 %v785, 2147483648
        %v979 = vxor.u32 %v788, 2147483648
        %v980 = vxor.u32 %v790, 2147483648
        %v981 = vxor.u32 %v793, 2147483648
        %v982 = vxor.u32 %v795, 2147483648
        %v983 = vxor.u32 %v798, 2147483648
        %v984 = vxor.u32 %v800, 2147483648
        %v985 = vxor.u32 %v803, 2147483648
        %v986 = vxor.u32 %v805, 2147483648
        %v987 = vxor.u32 %v808, 2147483648
        %v988 = vxor.u32 %v810, 2147483648
        %v989 = vxor.u32 %v813, 2147483648
        %v990 = vxor.u32 %v815, 2147483648
        %v991 = vxor.u32 %v818, 2147483648
        %v992 = vxor.u32 %v820, 2147483648
        %v993 = vxor.u32 %v823, 2147483648
        %v994 = vxor.u32 %v825, 2147483648
        %v995 = vxor.u32 %v828, 2147483648
        %v996 = vxor.u32 %v830, 2147483648
        %v997 = vxor.u32 %v833, 2147483648
        %v998 = vxor.u32 %v835, 2147483648
        %v999 = vxor.u32 %v838, 2147483648
        %v1000 = vxor.u32 %v840, 2147483648
        %v1001 = vxor.u32 %v843, 2147483648
        %v1002 = vxor.u32 %v845, 2147483648
        %v1003 = vxor.u32 %v848, 2147483648
        %v1004 = vxor.u32 %v850, 2147483648
        %v1005 = vmul.f32 %v973, 1.442695
        %v1006 = vpow.pop %v1005
        %v1007 = vmul.f32 %v974, 1.442695
        %v1008 = vpow.pop %v1007
        %v1009 = vmul.f32 %v975, 1.442695
        %v1010 = vpow.pop %v1009
        %v1011 = vmul.f32 %v976, 1.442695
        %v1012 = vpow.pop %v1011
        %v1013 = vmul.f32 %v977, 1.442695
        %v1014 = vpow.pop %v1013
        %v1015 = vmul.f32 %v978, 1.442695
        %v1016 = vpow.pop %v1015
        %v1017 = vmul.f32 %v979, 1.442695
        %v1018 = vpow.pop %v1017
        %v1019 = vmul.f32 %v980, 1.442695
        %v1020 = vpow.pop %v1019
        %v1021 = vmul.f32 %v981, 1.442695
        %v1022 = vpow.pop %v1021
        %v1023 = vmul.f32 %v982, 1.442695
        %v1024 = vpow.pop %v1023
        %v1025 = vmul.f32 %v983, 1.442695
        %v1026 = vpow.pop %v1025
        %v1027 = vmul.f32 %v984, 1.442695
        %v1028 = vpow.pop %v1027
        %v1029 = vmul.f32 %v985, 1.442695
        %v1030 = vpow.pop %v1029
        %v1031 = vmul.f32 %v986, 1.442695
        %v1032 = vpow.pop %v1031
        %v1033 = vmul.f32 %v987, 1.442695
        %v1034 = vpow.pop %v1033
        %v1035 = vmul.f32 %v988, 1.442695
        %v1036 = vpow.pop %v1035
        %v1037 = vmul.f32 %v989, 1.442695
        %v1038 = vpow.pop %v1037
        %v1039 = vmul.f32 %v990, 1.442695
        %v1040 = vpow.pop %v1039
        %v1041 = vmul.f32 %v991, 1.442695
        %v1042 = vpow.pop %v1041
        %v1043 = vmul.f32 %v992, 1.442695
        %v1044 = vpow.pop %v1043
        %v1045 = vmul.f32 %v993, 1.442695
        %v1046 = vpow.pop %v1045
        %v1047 = vmul.f32 %v994, 1.442695
        %v1048 = vpow.pop %v1047
        %v1049 = vmul.f32 %v995, 1.442695
        %v1050 = vpow.pop %v1049
        %v1051 = vmul.f32 %v996, 1.442695
        %v1052 = vpow.pop %v1051
        %v1053 = vmul.f32 %v997, 1.442695
        %v1054 = vpow.pop %v1053
        %v1055 = vmul.f32 %v998, 1.442695
        %v1056 = vpow.pop %v1055
        %v1057 = vmul.f32 %v999, 1.442695
        %v1058 = vpow.pop %v1057
        %v1059 = vmul.f32 %v1000, 1.442695
        %v1060 = vpow.pop %v1059
        %v1061 = vmul.f32 %v1001, 1.442695
        %v1062 = vpow.pop %v1061
        %v1063 = vmul.f32 %v1002, 1.442695
        %v1064 = vpow.pop %v1063
        %v1065 = vmul.f32 %v1003, 1.442695
        %v1066 = vpow.pop %v1065
        %v1067 = vmul.f32 %v1004, 1.442695
        %v1068 = vpow.pop %v1067
        %v1069 = vadd.f32 %v1006, 1.0
        %v1070 = vadd.f32 %v1008, 1.0
        %v1071 = vadd.f32 %v1010, 1.0
        %v1072 = vadd.f32 %v1012, 1.0
        %v1073 = vadd.f32 %v1014, 1.0
        %v1074 = vadd.f32 %v1016, 1.0
        %v1075 = vadd.f32 %v1018, 1.0
        %v1076 = vadd.f32 %v1020, 1.0
        %v1077 = vadd.f32 %v1022, 1.0
        %v1078 = vadd.f32 %v1024, 1.0
        %v1079 = vadd.f32 %v1026, 1.0
        %v1080 = vadd.f32 %v1028, 1.0
        %v1081 = vadd.f32 %v1030, 1.0
        %v1082 = vadd.f32 %v1032, 1.0
        %v1083 = vadd.f32 %v1034, 1.0
        %v1084 = vadd.f32 %v1036, 1.0
        %v1085 = vadd.f32 %v1038, 1.0
        %v1086 = vadd.f32 %v1040, 1.0
        %v1087 = vadd.f32 %v1042, 1.0
        %v1088 = vadd.f32 %v1044, 1.0
        %v1089 = vadd.f32 %v1046, 1.0
        %v1090 = vadd.f32 %v1048, 1.0
        %v1091 = vadd.f32 %v1050, 1.0
        %v1092 = vadd.f32 %v1052, 1.0
        %v1093 = vadd.f32 %v1054, 1.0
        %v1094 = vadd.f32 %v1056, 1.0
        %v1095 = vadd.f32 %v1058, 1.0
        %v1096 = vadd.f32 %v1060, 1.0
        %v1097 = vadd.f32 %v1062, 1.0
        %v1098 = vadd.f32 %v1064, 1.0
        %v1099 = vadd.f32 %v1066, 1.0
        %v1100 = vadd.f32 %v1068, 1.0
        %v1101 = vrcp.pop %v1069
        %v1102 = vmul.f32 %v1069, %v1101
        %v1103 = vsub.f32 1.0, %v1102
        %v1104 = vmul.f32 %v1101, %v1103
        %v1105 = vadd.f32 %v1101, %v1104
        %vm1106 = vweird.f32 %v1069
        %vm1107 = vweird.f32 %v1101
        %vm1108 = vmor %vm1106, %vm1107
        %v1109 = vsel %vm1108, %v1101, %v1105
        %v1110 = vand.u32 2147483647, %v1069
        %vm1111 = vcmp.eq.f32.partialorder %v1110, 8.507059e+37
        %v1112 = vand.u32 %v1069, 2147483648
        %v1113 = vor.u32 1.1754944e-38, %v1112
        %v1114 = vsel %vm1111, %v1113, %v1109
        %v1115 = vmul.f32 1.0, %v1114
        %v1116 = vrcp.pop %v1070
        %v1117 = vmul.f32 %v1070, %v1116
        %v1118 = vsub.f32 1.0, %v1117
        %v1119 = vmul.f32 %v1116, %v1118
        %v1120 = vadd.f32 %v1116, %v1119
        %vm1121 = vweird.f32 %v1070
        %vm1122 = vweird.f32 %v1116
        %vm1123 = vmor %vm1121, %vm1122
        %v1124 = vsel %vm1123, %v1116, %v1120
        %v1125 = vand.u32 2147483647, %v1070
        %vm1126 = vcmp.eq.f32.partialorder %v1125, 8.507059e+37
        %v1127 = vand.u32 %v1070, 2147483648
        %v1128 = vor.u32 1.1754944e-38, %v1127
        %v1129 = vsel %vm1126, %v1128, %v1124
        %v1130 = vmul.f32 1.0, %v1129
        %v1131 = vrcp.pop %v1071
        %v1132 = vmul.f32 %v1071, %v1131
        %v1133 = vsub.f32 1.0, %v1132
        %v1134 = vmul.f32 %v1131, %v1133
        %v1135 = vadd.f32 %v1131, %v1134
        %vm1136 = vweird.f32 %v1071
        %vm1137 = vweird.f32 %v1131
        %vm1138 = vmor %vm1136, %vm1137
        %v1139 = vsel %vm1138, %v1131, %v1135
        %v1140 = vand.u32 2147483647, %v1071
        %vm1141 = vcmp.eq.f32.partialorder %v1140, 8.507059e+37
        %v1142 = vand.u32 %v1071, 2147483648
        %v1143 = vor.u32 1.1754944e-38, %v1142
        %v1144 = vsel %vm1141, %v1143, %v1139
        %v1145 = vmul.f32 1.0, %v1144
        %v1146 = vrcp.pop %v1072
        %v1147 = vmul.f32 %v1072, %v1146
        %v1148 = vsub.f32 1.0, %v1147
        %v1149 = vmul.f32 %v1146, %v1148
        %v1150 = vadd.f32 %v1146, %v1149
        %vm1151 = vweird.f32 %v1072
        %vm1152 = vweird.f32 %v1146
        %vm1153 = vmor %vm1151, %vm1152
        %v1154 = vsel %vm1153, %v1146, %v1150
        %v1155 = vand.u32 2147483647, %v1072
        %vm1156 = vcmp.eq.f32.partialorder %v1155, 8.507059e+37
        %v1157 = vand.u32 %v1072, 2147483648
        %v1158 = vor.u32 1.1754944e-38, %v1157
        %v1159 = vsel %vm1156, %v1158, %v1154
        %v1160 = vmul.f32 1.0, %v1159
        %v1161 = vrcp.pop %v1073
        %v1162 = vmul.f32 %v1073, %v1161
        %v1163 = vsub.f32 1.0, %v1162
        %v1164 = vmul.f32 %v1161, %v1163
        %v1165 = vadd.f32 %v1161, %v1164
        %vm1166 = vweird.f32 %v1073
        %vm1167 = vweird.f32 %v1161
        %vm1168 = vmor %vm1166, %vm1167
        %v1169 = vsel %vm1168, %v1161, %v1165
        %v1170 = vand.u32 2147483647, %v1073
        %vm1171 = vcmp.eq.f32.partialorder %v1170, 8.507059e+37
        %v1172 = vand.u32 %v1073, 2147483648
        %v1173 = vor.u32 1.1754944e-38, %v1172
        %v1174 = vsel %vm1171, %v1173, %v1169
        %v1175 = vmul.f32 1.0, %v1174
        %v1176 = vrcp.pop %v1074
        %v1177 = vmul.f32 %v1074, %v1176
        %v1178 = vsub.f32 1.0, %v1177
        %v1179 = vmul.f32 %v1176, %v1178
        %v1180 = vadd.f32 %v1176, %v1179
        %vm1181 = vweird.f32 %v1074
        %vm1182 = vweird.f32 %v1176
        %vm1183 = vmor %vm1181, %vm1182
        %v1184 = vsel %vm1183, %v1176, %v1180
        %v1185 = vand.u32 2147483647, %v1074
        %vm1186 = vcmp.eq.f32.partialorder %v1185, 8.507059e+37
        %v1187 = vand.u32 %v1074, 2147483648
        %v1188 = vor.u32 1.1754944e-38, %v1187
        %v1189 = vsel %vm1186, %v1188, %v1184
        %v1190 = vmul.f32 1.0, %v1189
        %v1191 = vrcp.pop %v1075
        %v1192 = vmul.f32 %v1075, %v1191
        %v1193 = vsub.f32 1.0, %v1192
        %v1194 = vmul.f32 %v1191, %v1193
        %v1195 = vadd.f32 %v1191, %v1194
        %vm1196 = vweird.f32 %v1075
        %vm1197 = vweird.f32 %v1191
        %vm1198 = vmor %vm1196, %vm1197
        %v1199 = vsel %vm1198, %v1191, %v1195
        %v1200 = vand.u32 2147483647, %v1075
        %vm1201 = vcmp.eq.f32.partialorder %v1200, 8.507059e+37
        %v1202 = vand.u32 %v1075, 2147483648
        %v1203 = vor.u32 1.1754944e-38, %v1202
        %v1204 = vsel %vm1201, %v1203, %v1199
        %v1205 = vmul.f32 1.0, %v1204
        %v1206 = vrcp.pop %v1076
        %v1207 = vmul.f32 %v1076, %v1206
        %v1208 = vsub.f32 1.0, %v1207
        %v1209 = vmul.f32 %v1206, %v1208
        %v1210 = vadd.f32 %v1206, %v1209
        %vm1211 = vweird.f32 %v1076
        %vm1212 = vweird.f32 %v1206
        %vm1213 = vmor %vm1211, %vm1212
        %v1214 = vsel %vm1213, %v1206, %v1210
        %v1215 = vand.u32 2147483647, %v1076
        %vm1216 = vcmp.eq.f32.partialorder %v1215, 8.507059e+37
        %v1217 = vand.u32 %v1076, 2147483648
        %v1218 = vor.u32 1.1754944e-38, %v1217
        %v1219 = vsel %vm1216, %v1218, %v1214
        %v1220 = vmul.f32 1.0, %v1219
        %v1221 = vrcp.pop %v1077
        %v1222 = vmul.f32 %v1077, %v1221
        %v1223 = vsub.f32 1.0, %v1222
        %v1224 = vmul.f32 %v1221, %v1223
        %v1225 = vadd.f32 %v1221, %v1224
        %vm1226 = vweird.f32 %v1077
        %vm1227 = vweird.f32 %v1221
        %vm1228 = vmor %vm1226, %vm1227
        %v1229 = vsel %vm1228, %v1221, %v1225
        %v1230 = vand.u32 2147483647, %v1077
        %vm1231 = vcmp.eq.f32.partialorder %v1230, 8.507059e+37
        %v1232 = vand.u32 %v1077, 2147483648
        %v1233 = vor.u32 1.1754944e-38, %v1232
        %v1234 = vsel %vm1231, %v1233, %v1229
        %v1235 = vmul.f32 1.0, %v1234
        %v1236 = vrcp.pop %v1078
        %v1237 = vmul.f32 %v1078, %v1236
        %v1238 = vsub.f32 1.0, %v1237
        %v1239 = vmul.f32 %v1236, %v1238
        %v1240 = vadd.f32 %v1236, %v1239
        %vm1241 = vweird.f32 %v1078
        %vm1242 = vweird.f32 %v1236
        %vm1243 = vmor %vm1241, %vm1242
        %v1244 = vsel %vm1243, %v1236, %v1240
        %v1245 = vand.u32 2147483647, %v1078
        %vm1246 = vcmp.eq.f32.partialorder %v1245, 8.507059e+37
        %v1247 = vand.u32 %v1078, 2147483648
        %v1248 = vor.u32 1.1754944e-38, %v1247
        %v1249 = vsel %vm1246, %v1248, %v1244
        %v1250 = vmul.f32 1.0, %v1249
        %v1251 = vrcp.pop %v1079
        %v1252 = vmul.f32 %v1079, %v1251
        %v1253 = vsub.f32 1.0, %v1252
        %v1254 = vmul.f32 %v1251, %v1253
        %v1255 = vadd.f32 %v1251, %v1254
        %vm1256 = vweird.f32 %v1079
        %vm1257 = vweird.f32 %v1251
        %vm1258 = vmor %vm1256, %vm1257
        %v1259 = vsel %vm1258, %v1251, %v1255
        %v1260 = vand.u32 2147483647, %v1079
        %vm1261 = vcmp.eq.f32.partialorder %v1260, 8.507059e+37
        %v1262 = vand.u32 %v1079, 2147483648
        %v1263 = vor.u32 1.1754944e-38, %v1262
        %v1264 = vsel %vm1261, %v1263, %v1259
        %v1265 = vmul.f32 1.0, %v1264
        %v1266 = vrcp.pop %v1080
        %v1267 = vmul.f32 %v1080, %v1266
        %v1268 = vsub.f32 1.0, %v1267
        %v1269 = vmul.f32 %v1266, %v1268
        %v1270 = vadd.f32 %v1266, %v1269
        %vm1271 = vweird.f32 %v1080
        %vm1272 = vweird.f32 %v1266
        %vm1273 = vmor %vm1271, %vm1272
        %v1274 = vsel %vm1273, %v1266, %v1270
        %v1275 = vand.u32 2147483647, %v1080
        %vm1276 = vcmp.eq.f32.partialorder %v1275, 8.507059e+37
        %v1277 = vand.u32 %v1080, 2147483648
        %v1278 = vor.u32 1.1754944e-38, %v1277
        %v1279 = vsel %vm1276, %v1278, %v1274
        %v1280 = vmul.f32 1.0, %v1279
        %v1281 = vrcp.pop %v1081
        %v1282 = vmul.f32 %v1081, %v1281
        %v1283 = vsub.f32 1.0, %v1282
        %v1284 = vmul.f32 %v1281, %v1283
        %v1285 = vadd.f32 %v1281, %v1284
        %vm1286 = vweird.f32 %v1081
        %vm1287 = vweird.f32 %v1281
        %vm1288 = vmor %vm1286, %vm1287
        %v1289 = vsel %vm1288, %v1281, %v1285
        %v1290 = vand.u32 2147483647, %v1081
        %vm1291 = vcmp.eq.f32.partialorder %v1290, 8.507059e+37
        %v1292 = vand.u32 %v1081, 2147483648
        %v1293 = vor.u32 1.1754944e-38, %v1292
        %v1294 = vsel %vm1291, %v1293, %v1289
        %v1295 = vmul.f32 1.0, %v1294
        %v1296 = vrcp.pop %v1082
        %v1297 = vmul.f32 %v1082, %v1296
        %v1298 = vsub.f32 1.0, %v1297
        %v1299 = vmul.f32 %v1296, %v1298
        %v1300 = vadd.f32 %v1296, %v1299
        %vm1301 = vweird.f32 %v1082
        %vm1302 = vweird.f32 %v1296
        %vm1303 = vmor %vm1301, %vm1302
        %v1304 = vsel %vm1303, %v1296, %v1300
        %v1305 = vand.u32 2147483647, %v1082
        %vm1306 = vcmp.eq.f32.partialorder %v1305, 8.507059e+37
        %v1307 = vand.u32 %v1082, 2147483648
        %v1308 = vor.u32 1.1754944e-38, %v1307
        %v1309 = vsel %vm1306, %v1308, %v1304
        %v1310 = vmul.f32 1.0, %v1309
        %v1311 = vrcp.pop %v1083
        %v1312 = vmul.f32 %v1083, %v1311
        %v1313 = vsub.f32 1.0, %v1312
        %v1314 = vmul.f32 %v1311, %v1313
        %v1315 = vadd.f32 %v1311, %v1314
        %vm1316 = vweird.f32 %v1083
        %vm1317 = vweird.f32 %v1311
        %vm1318 = vmor %vm1316, %vm1317
        %v1319 = vsel %vm1318, %v1311, %v1315
        %v1320 = vand.u32 2147483647, %v1083
        %vm1321 = vcmp.eq.f32.partialorder %v1320, 8.507059e+37
        %v1322 = vand.u32 %v1083, 2147483648
        %v1323 = vor.u32 1.1754944e-38, %v1322
        %v1324 = vsel %vm1321, %v1323, %v1319
        %v1325 = vmul.f32 1.0, %v1324
        %v1326 = vrcp.pop %v1084
        %v1327 = vmul.f32 %v1084, %v1326
        %v1328 = vsub.f32 1.0, %v1327
        %v1329 = vmul.f32 %v1326, %v1328
        %v1330 = vadd.f32 %v1326, %v1329
        %vm1331 = vweird.f32 %v1084
        %vm1332 = vweird.f32 %v1326
        %vm1333 = vmor %vm1331, %vm1332
        %v1334 = vsel %vm1333, %v1326, %v1330
        %v1335 = vand.u32 2147483647, %v1084
        %vm1336 = vcmp.eq.f32.partialorder %v1335, 8.507059e+37
        %v1337 = vand.u32 %v1084, 2147483648
        %v1338 = vor.u32 1.1754944e-38, %v1337
        %v1339 = vsel %vm1336, %v1338, %v1334
        %v1340 = vmul.f32 1.0, %v1339
        %v1341 = vrcp.pop %v1085
        %v1342 = vmul.f32 %v1085, %v1341
        %v1343 = vsub.f32 1.0, %v1342
        %v1344 = vmul.f32 %v1341, %v1343
        %v1345 = vadd.f32 %v1341, %v1344
        %vm1346 = vweird.f32 %v1085
        %vm1347 = vweird.f32 %v1341
        %vm1348 = vmor %vm1346, %vm1347
        %v1349 = vsel %vm1348, %v1341, %v1345
        %v1350 = vand.u32 2147483647, %v1085
        %vm1351 = vcmp.eq.f32.partialorder %v1350, 8.507059e+37
        %v1352 = vand.u32 %v1085, 2147483648
        %v1353 = vor.u32 1.1754944e-38, %v1352
        %v1354 = vsel %vm1351, %v1353, %v1349
        %v1355 = vmul.f32 1.0, %v1354
        %v1356 = vrcp.pop %v1086
        %v1357 = vmul.f32 %v1086, %v1356
        %v1358 = vsub.f32 1.0, %v1357
        %v1359 = vmul.f32 %v1356, %v1358
        %v1360 = vadd.f32 %v1356, %v1359
        %vm1361 = vweird.f32 %v1086
        %vm1362 = vweird.f32 %v1356
        %vm1363 = vmor %vm1361, %vm1362
        %v1364 = vsel %vm1363, %v1356, %v1360
        %v1365 = vand.u32 2147483647, %v1086
        %vm1366 = vcmp.eq.f32.partialorder %v1365, 8.507059e+37
        %v1367 = vand.u32 %v1086, 2147483648
        %v1368 = vor.u32 1.1754944e-38, %v1367
        %v1369 = vsel %vm1366, %v1368, %v1364
        %v1370 = vmul.f32 1.0, %v1369
        %v1371 = vrcp.pop %v1087
        %v1372 = vmul.f32 %v1087, %v1371
        %v1373 = vsub.f32 1.0, %v1372
        %v1374 = vmul.f32 %v1371, %v1373
        %v1375 = vadd.f32 %v1371, %v1374
        %vm1376 = vweird.f32 %v1087
        %vm1377 = vweird.f32 %v1371
        %vm1378 = vmor %vm1376, %vm1377
        %v1379 = vsel %vm1378, %v1371, %v1375
        %v1380 = vand.u32 2147483647, %v1087
        %vm1381 = vcmp.eq.f32.partialorder %v1380, 8.507059e+37
        %v1382 = vand.u32 %v1087, 2147483648
        %v1383 = vor.u32 1.1754944e-38, %v1382
        %v1384 = vsel %vm1381, %v1383, %v1379
        %v1385 = vmul.f32 1.0, %v1384
        %v1386 = vrcp.pop %v1088
        %v1387 = vmul.f32 %v1088, %v1386
        %v1388 = vsub.f32 1.0, %v1387
        %v1389 = vmul.f32 %v1386, %v1388
        %v1390 = vadd.f32 %v1386, %v1389
        %vm1391 = vweird.f32 %v1088
        %vm1392 = vweird.f32 %v1386
        %vm1393 = vmor %vm1391, %vm1392
        %v1394 = vsel %vm1393, %v1386, %v1390
        %v1395 = vand.u32 2147483647, %v1088
        %vm1396 = vcmp.eq.f32.partialorder %v1395, 8.507059e+37
        %v1397 = vand.u32 %v1088, 2147483648
        %v1398 = vor.u32 1.1754944e-38, %v1397
        %v1399 = vsel %vm1396, %v1398, %v1394
        %v1400 = vmul.f32 1.0, %v1399
        %v1401 = vrcp.pop %v1089
        %v1402 = vmul.f32 %v1089, %v1401
        %v1403 = vsub.f32 1.0, %v1402
        %v1404 = vmul.f32 %v1401, %v1403
        %v1405 = vadd.f32 %v1401, %v1404
        %vm1406 = vweird.f32 %v1089
        %vm1407 = vweird.f32 %v1401
        %vm1408 = vmor %vm1406, %vm1407
        %v1409 = vsel %vm1408, %v1401, %v1405
        %v1410 = vand.u32 2147483647, %v1089
        %vm1411 = vcmp.eq.f32.partialorder %v1410, 8.507059e+37
        %v1412 = vand.u32 %v1089, 2147483648
        %v1413 = vor.u32 1.1754944e-38, %v1412
        %v1414 = vsel %vm1411, %v1413, %v1409
        %v1415 = vmul.f32 1.0, %v1414
        %v1416 = vrcp.pop %v1090
        %v1417 = vmul.f32 %v1090, %v1416
        %v1418 = vsub.f32 1.0, %v1417
        %v1419 = vmul.f32 %v1416, %v1418
        %v1420 = vadd.f32 %v1416, %v1419
        %vm1421 = vweird.f32 %v1090
        %vm1422 = vweird.f32 %v1416
        %vm1423 = vmor %vm1421, %vm1422
        %v1424 = vsel %vm1423, %v1416, %v1420
        %v1425 = vand.u32 2147483647, %v1090
        %vm1426 = vcmp.eq.f32.partialorder %v1425, 8.507059e+37
        %v1427 = vand.u32 %v1090, 2147483648
        %v1428 = vor.u32 1.1754944e-38, %v1427
        %v1429 = vsel %vm1426, %v1428, %v1424
        %v1430 = vmul.f32 1.0, %v1429
        %v1431 = vrcp.pop %v1091
        %v1432 = vmul.f32 %v1091, %v1431
        %v1433 = vsub.f32 1.0, %v1432
        %v1434 = vmul.f32 %v1431, %v1433
        %v1435 = vadd.f32 %v1431, %v1434
        %vm1436 = vweird.f32 %v1091
        %vm1437 = vweird.f32 %v1431
        %vm1438 = vmor %vm1436, %vm1437
        %v1439 = vsel %vm1438, %v1431, %v1435
        %v1440 = vand.u32 2147483647, %v1091
        %vm1441 = vcmp.eq.f32.partialorder %v1440, 8.507059e+37
        %v1442 = vand.u32 %v1091, 2147483648
        %v1443 = vor.u32 1.1754944e-38, %v1442
        %v1444 = vsel %vm1441, %v1443, %v1439
        %v1445 = vmul.f32 1.0, %v1444
        %v1446 = vrcp.pop %v1092
        %v1447 = vmul.f32 %v1092, %v1446
        %v1448 = vsub.f32 1.0, %v1447
        %v1449 = vmul.f32 %v1446, %v1448
        %v1450 = vadd.f32 %v1446, %v1449
        %vm1451 = vweird.f32 %v1092
        %vm1452 = vweird.f32 %v1446
        %vm1453 = vmor %vm1451, %vm1452
        %v1454 = vsel %vm1453, %v1446, %v1450
        %v1455 = vand.u32 2147483647, %v1092
        %vm1456 = vcmp.eq.f32.partialorder %v1455, 8.507059e+37
        %v1457 = vand.u32 %v1092, 2147483648
        %v1458 = vor.u32 1.1754944e-38, %v1457
        %v1459 = vsel %vm1456, %v1458, %v1454
        %v1460 = vmul.f32 1.0, %v1459
        %v1461 = vrcp.pop %v1093
        %v1462 = vmul.f32 %v1093, %v1461
        %v1463 = vsub.f32 1.0, %v1462
        %v1464 = vmul.f32 %v1461, %v1463
        %v1465 = vadd.f32 %v1461, %v1464
        %vm1466 = vweird.f32 %v1093
        %vm1467 = vweird.f32 %v1461
        %vm1468 = vmor %vm1466, %vm1467
        %v1469 = vsel %vm1468, %v1461, %v1465
        %v1470 = vand.u32 2147483647, %v1093
        %vm1471 = vcmp.eq.f32.partialorder %v1470, 8.507059e+37
        %v1472 = vand.u32 %v1093, 2147483648
        %v1473 = vor.u32 1.1754944e-38, %v1472
        %v1474 = vsel %vm1471, %v1473, %v1469
        %v1475 = vmul.f32 1.0, %v1474
        %v1476 = vrcp.pop %v1094
        %v1477 = vmul.f32 %v1094, %v1476
        %v1478 = vsub.f32 1.0, %v1477
        %v1479 = vmul.f32 %v1476, %v1478
        %v1480 = vadd.f32 %v1476, %v1479
        %vm1481 = vweird.f32 %v1094
        %vm1482 = vweird.f32 %v1476
        %vm1483 = vmor %vm1481, %vm1482
        %v1484 = vsel %vm1483, %v1476, %v1480
        %v1485 = vand.u32 2147483647, %v1094
        %vm1486 = vcmp.eq.f32.partialorder %v1485, 8.507059e+37
        %v1487 = vand.u32 %v1094, 2147483648
        %v1488 = vor.u32 1.1754944e-38, %v1487
        %v1489 = vsel %vm1486, %v1488, %v1484
        %v1490 = vmul.f32 1.0, %v1489
        %v1491 = vrcp.pop %v1095
        %v1492 = vmul.f32 %v1095, %v1491
        %v1493 = vsub.f32 1.0, %v1492
        %v1494 = vmul.f32 %v1491, %v1493
        %v1495 = vadd.f32 %v1491, %v1494
        %vm1496 = vweird.f32 %v1095
        %vm1497 = vweird.f32 %v1491
        %vm1498 = vmor %vm1496, %vm1497
        %v1499 = vsel %vm1498, %v1491, %v1495
        %v1500 = vand.u32 2147483647, %v1095
        %vm1501 = vcmp.eq.f32.partialorder %v1500, 8.507059e+37
        %v1502 = vand.u32 %v1095, 2147483648
        %v1503 = vor.u32 1.1754944e-38, %v1502
        %v1504 = vsel %vm1501, %v1503, %v1499
        %v1505 = vmul.f32 1.0, %v1504
        %v1506 = vrcp.pop %v1096
        %v1507 = vmul.f32 %v1096, %v1506
        %v1508 = vsub.f32 1.0, %v1507
        %v1509 = vmul.f32 %v1506, %v1508
        %v1510 = vadd.f32 %v1506, %v1509
        %vm1511 = vweird.f32 %v1096
        %vm1512 = vweird.f32 %v1506
        %vm1513 = vmor %vm1511, %vm1512
        %v1514 = vsel %vm1513, %v1506, %v1510
        %v1515 = vand.u32 2147483647, %v1096
        %vm1516 = vcmp.eq.f32.partialorder %v1515, 8.507059e+37
        %v1517 = vand.u32 %v1096, 2147483648
        %v1518 = vor.u32 1.1754944e-38, %v1517
        %v1519 = vsel %vm1516, %v1518, %v1514
        %v1520 = vmul.f32 1.0, %v1519
        %v1521 = vrcp.pop %v1097
        %v1522 = vmul.f32 %v1097, %v1521
        %v1523 = vsub.f32 1.0, %v1522
        %v1524 = vmul.f32 %v1521, %v1523
        %v1525 = vadd.f32 %v1521, %v1524
        %vm1526 = vweird.f32 %v1097
        %vm1527 = vweird.f32 %v1521
        %vm1528 = vmor %vm1526, %vm1527
        %v1529 = vsel %vm1528, %v1521, %v1525
        %v1530 = vand.u32 2147483647, %v1097
        %vm1531 = vcmp.eq.f32.partialorder %v1530, 8.507059e+37
        %v1532 = vand.u32 %v1097, 2147483648
        %v1533 = vor.u32 1.1754944e-38, %v1532
        %v1534 = vsel %vm1531, %v1533, %v1529
        %v1535 = vmul.f32 1.0, %v1534
        %v1536 = vrcp.pop %v1098
        %v1537 = vmul.f32 %v1098, %v1536
        %v1538 = vsub.f32 1.0, %v1537
        %v1539 = vmul.f32 %v1536, %v1538
        %v1540 = vadd.f32 %v1536, %v1539
        %vm1541 = vweird.f32 %v1098
        %vm1542 = vweird.f32 %v1536
        %vm1543 = vmor %vm1541, %vm1542
        %v1544 = vsel %vm1543, %v1536, %v1540
        %v1545 = vand.u32 2147483647, %v1098
        %vm1546 = vcmp.eq.f32.partialorder %v1545, 8.507059e+37
        %v1547 = vand.u32 %v1098, 2147483648
        %v1548 = vor.u32 1.1754944e-38, %v1547
        %v1549 = vsel %vm1546, %v1548, %v1544
        %v1550 = vmul.f32 1.0, %v1549
        %v1551 = vrcp.pop %v1099
        %v1552 = vmul.f32 %v1099, %v1551
        %v1553 = vsub.f32 1.0, %v1552
        %v1554 = vmul.f32 %v1551, %v1553
        %v1555 = vadd.f32 %v1551, %v1554
        %vm1556 = vweird.f32 %v1099
        %vm1557 = vweird.f32 %v1551
        %vm1558 = vmor %vm1556, %vm1557
        %v1559 = vsel %vm1558, %v1551, %v1555
        %v1560 = vand.u32 2147483647, %v1099
        %vm1561 = vcmp.eq.f32.partialorder %v1560, 8.507059e+37
        %v1562 = vand.u32 %v1099, 2147483648
        %v1563 = vor.u32 1.1754944e-38, %v1562
        %v1564 = vsel %vm1561, %v1563, %v1559
        %v1565 = vmul.f32 1.0, %v1564
        %v1566 = vrcp.pop %v1100
        %v1567 = vmul.f32 %v1100, %v1566
        %v1568 = vsub.f32 1.0, %v1567
        %v1569 = vmul.f32 %v1566, %v1568
        %v1570 = vadd.f32 %v1566, %v1569
        %vm1571 = vweird.f32 %v1100
        %vm1572 = vweird.f32 %v1566
        %vm1573 = vmor %vm1571, %vm1572
        %v1574 = vsel %vm1573, %v1566, %v1570
        %v1575 = vand.u32 2147483647, %v1100
        %vm1576 = vcmp.eq.f32.partialorder %v1575, 8.507059e+37
        %v1577 = vand.u32 %v1100, 2147483648
        %v1578 = vor.u32 1.1754944e-38, %v1577
        %v1579 = vsel %vm1576, %v1578, %v1574
        %v1580 = vmul.f32 1.0, %v1579
        %v1581 = vmul.f32 %v523, %v1115
        %v1582 = vmul.f32 %v525, %v1130
        %v1583 = vmul.f32 %v528, %v1145
        %v1584 = vmul.f32 %v530, %v1160
        %v1585 = vmul.f32 %v533, %v1175
        %v1586 = vmul.f32 %v535, %v1190
        %v1587 = vmul.f32 %v538, %v1205
        %v1588 = vmul.f32 %v540, %v1220
        %v1589 = vmul.f32 %v543, %v1235
        %v1590 = vmul.f32 %v545, %v1250
        %v1591 = vmul.f32 %v548, %v1265
        %v1592 = vmul.f32 %v550, %v1280
        %v1593 = vmul.f32 %v553, %v1295
        %v1594 = vmul.f32 %v555, %v1310
        %v1595 = vmul.f32 %v558, %v1325
        %v1596 = vmul.f32 %v560, %v1340
        %v1597 = vmul.f32 %v563, %v1355
        %v1598 = vmul.f32 %v565, %v1370
        %v1599 = vmul.f32 %v568, %v1385
        %v1600 = vmul.f32 %v570, %v1400
        %v1601 = vmul.f32 %v573, %v1415
        %v1602 = vmul.f32 %v575, %v1430
        %v1603 = vmul.f32 %v578, %v1445
        %v1604 = vmul.f32 %v580, %v1460
        %v1605 = vmul.f32 %v583, %v1475
        %v1606 = vmul.f32 %v585, %v1490
        %v1607 = vmul.f32 %v588, %v1505
        %v1608 = vmul.f32 %v590, %v1520
        %v1609 = vmul.f32 %v593, %v1535
        %v1610 = vmul.f32 %v595, %v1550
        %v1611 = vmul.f32 %v598, %v1565
        %v1612 = vmul.f32 %v600, %v1580
        %v1613 = vadd.f32 %v1581, %v894
        %v1614 = vadd.f32 %v1582, %v896
        %v1615 = vadd.f32 %v1583, %v899
        %v1616 = vadd.f32 %v1584, %v901
        %v1617 = vadd.f32 %v1585, %v904
        %v1618 = vadd.f32 %v1586, %v906
        %v1619 = vadd.f32 %v1587, %v909
        %v1620 = vadd.f32 %v1588, %v911
        %v1621 = vadd.f32 %v1589, %v914
        %v1622 = vadd.f32 %v1590, %v916
        %v1623 = vadd.f32 %v1591, %v919
        %v1624 = vadd.f32 %v1592, %v921
        %v1625 = vadd.f32 %v1593, %v924
        %v1626 = vadd.f32 %v1594, %v926
        %v1627 = vadd.f32 %v1595, %v929
        %v1628 = vadd.f32 %v1596, %v931
        %v1629 = vadd.f32 %v1597, %v934
        %v1630 = vadd.f32 %v1598, %v936
        %v1631 = vadd.f32 %v1599, %v939
        %v1632 = vadd.f32 %v1600, %v941
        %v1633 = vadd.f32 %v1601, %v944
        %v1634 = vadd.f32 %v1602, %v946
        %v1635 = vadd.f32 %v1603, %v949
        %v1636 = vadd.f32 %v1604, %v951
        %v1637 = vadd.f32 %v1605, %v954
        %v1638 = vadd.f32 %v1606, %v956
        %v1639 = vadd.f32 %v1607, %v959
        %v1640 = vadd.f32 %v1608, %v961
        %v1641 = vadd.f32 %v1609, %v964
        %v1642 = vadd.f32 %v1610, %v966
        %v1643 = vadd.f32 %v1611, %v969
        %v1644 = vadd.f32 %v1612, %v971
        %s1645 = smul.u32 %s16, 256
        %v1646 = vlaneseq
        %v1647 = vshrl.u32 %v1646, 7
        %v1648 = vadd.s32 %v1647, 8
        %v1649 = vadd.s32 %v1647, 16
        %v1650 = vadd.s32 %v1647, 24
        %v1651 = vadd.s32 %v1647, 32
        %v1652 = vadd.s32 %v1647, 40
        %v1653 = vadd.s32 %v1647, 48
        %v1654 = vadd.s32 %v1647, 56
        %v1655 = vadd.s32 %v1647, 64
        %v1656 = vadd.s32 %v1647, 72
        %v1657 = vadd.s32 %v1647, 80
        %v1658 = vadd.s32 %v1647, 88
        %v1659 = vadd.s32 %v1647, 96
        %v1660 = vadd.s32 %v1647, 104
        %v1661 = vadd.s32 %v1647, 112
        %v1662 = vadd.s32 %v1647, 120
        %v1663 = vadd.s32 %v1647, 128
        %v1664 = vadd.s32 %v1647, 136
        %v1665 = vadd.s32 %v1647, 144
        %v1666 = vadd.s32 %v1647, 152
        %v1667 = vadd.s32 %v1647, 160
        %v1668 = vadd.s32 %v1647, 168
        %v1669 = vadd.s32 %v1647, 176
        %v1670 = vadd.s32 %v1647, 184
        %v1671 = vadd.s32 %v1647, 192
        %v1672 = vadd.s32 %v1647, 200
        %v1673 = vadd.s32 %v1647, 208
        %v1674 = vadd.s32 %v1647, 216
        %v1675 = vadd.s32 %v1647, 224
        %v1676 = vadd.s32 %v1647, 232
        %v1677 = vadd.s32 %v1647, 240
        %v1678 = vadd.s32 %v1647, 248
        %v1679 = vstv %s1645
        %v1680 = vadd.s32 %v1679, %v1647
        %v1681 = vadd.s32 %v1679, %v1648
        %v1682 = vadd.s32 %v1679, %v1649
        %v1683 = vadd.s32 %v1679, %v1650
        %v1684 = vadd.s32 %v1679, %v1651
        %v1685 = vadd.s32 %v1679, %v1652
        %v1686 = vadd.s32 %v1679, %v1653
        %v1687 = vadd.s32 %v1679, %v1654
        %v1688 = vadd.s32 %v1679, %v1655
        %v1689 = vadd.s32 %v1679, %v1656
        %v1690 = vadd.s32 %v1679, %v1657
        %v1691 = vadd.s32 %v1679, %v1658
        %v1692 = vadd.s32 %v1679, %v1659
        %v1693 = vadd.s32 %v1679, %v1660
        %v1694 = vadd.s32 %v1679, %v1661
        %v1695 = vadd.s32 %v1679, %v1662
        %v1696 = vadd.s32 %v1679, %v1663
        %v1697 = vadd.s32 %v1679, %v1664
        %v1698 = vadd.s32 %v1679, %v1665
        %v1699 = vadd.s32 %v1679, %v1666
        %v1700 = vadd.s32 %v1679, %v1667
        %v1701 = vadd.s32 %v1679, %v1668
        %v1702 = vadd.s32 %v1679, %v1669
        %v1703 = vadd.s32 %v1679, %v1670
        %v1704 = vadd.s32 %v1679, %v1671
        %v1705 = vadd.s32 %v1679, %v1672
        %v1706 = vadd.s32 %v1679, %v1673
        %v1707 = vadd.s32 %v1679, %v1674
        %v1708 = vadd.s32 %v1679, %v1675
        %v1709 = vadd.s32 %v1679, %v1676
        %v1710 = vadd.s32 %v1679, %v1677
        %v1711 = vadd.s32 %v1679, %v1678
        %vm1712 = vcmp.lt.s32.totalorder %v1680, 0
        %v1713 = vsub.s32 0, %v1680
        %v1714 = vsel %vm1712, %v1713, %v1680
        %v1715 = vand.u32 %v1714, 65535
        %v1716 = vshrl.u32 %v1714, 16
        %v1718 = vmul.u32 %v1715, 65281
        %v1719 = vmul.u32 %v1715, 65280
        %v1720 = vmul.u32 %v1716, 65281
        %v1721 = vmul.u32 %v1716, 65280
        %v1722 = vshll.u32 %v1719, 16
        %v1723 = vshrl.u32 %v1719, 16
        %v1724 = vshll.u32 %v1720, 16
        %v1725 = vshrl.u32 %v1720, 16
        %vm1726 = vc.u32 %v1718, %v1722
        %v1727 = vsel %vm1726, 1, 0
        %v1728 = vadd.s32 %v1718, %v1722
        %v1729 = vadd.s32 %v1721, %v1727
        %vm1730 = vc.u32 %v1728, %v1724
        %v1731 = vsel %vm1730, 1, 0
        %v1732 = vadd.s32 %v1728, %v1724
        %v1733 = vadd.s32 %v1729, %v1731
        %v1734 = vadd.s32 %v1733, %v1723
        %v1735 = vadd.s32 %v1734, %v1725
        %v1736 = vshrl.u32 %v1735, 8
        %v1737 = vmul.u32 %v1736, 257
        %v1738 = vsub.s32 %v1714, %v1737
        %v1739 = vsub.s32 0, %v1738
        %v1740 = vsel %vm1712, %v1739, %v1738
        %vm1741 = vcmp.lt.s32.totalorder %v1681, 0
        %v1742 = vsub.s32 0, %v1681
        %v1743 = vsel %vm1741, %v1742, %v1681
        %v1744 = vand.u32 %v1743, 65535
        %v1745 = vshrl.u32 %v1743, 16
        %v1747 = vmul.u32 %v1744, 65281
        %v1748 = vmul.u32 %v1744, 65280
        %v1749 = vmul.u32 %v1745, 65281
        %v1750 = vmul.u32 %v1745, 65280
        %v1751 = vshll.u32 %v1748, 16
        %v1752 = vshrl.u32 %v1748, 16
        %v1753 = vshll.u32 %v1749, 16
        %v1754 = vshrl.u32 %v1749, 16
        %vm1755 = vc.u32 %v1747, %v1751
        %v1756 = vsel %vm1755, 1, 0
        %v1757 = vadd.s32 %v1747, %v1751
        %v1758 = vadd.s32 %v1750, %v1756
        %vm1759 = vc.u32 %v1757, %v1753
        %v1760 = vsel %vm1759, 1, 0
        %v1761 = vadd.s32 %v1757, %v1753
        %v1762 = vadd.s32 %v1758, %v1760
        %v1763 = vadd.s32 %v1762, %v1752
        %v1764 = vadd.s32 %v1763, %v1754
        %v1765 = vshrl.u32 %v1764, 8
        %v1766 = vmul.u32 %v1765, 257
        %v1767 = vsub.s32 %v1743, %v1766
        %v1768 = vsub.s32 0, %v1767
        %v1769 = vsel %vm1741, %v1768, %v1767
        %vm1770 = vcmp.lt.s32.totalorder %v1682, 0
        %v1771 = vsub.s32 0, %v1682
        %v1772 = vsel %vm1770, %v1771, %v1682
        %v1773 = vand.u32 %v1772, 65535
        %v1774 = vshrl.u32 %v1772, 16
        %v1776 = vmul.u32 %v1773, 65281
        %v1777 = vmul.u32 %v1773, 65280
        %v1778 = vmul.u32 %v1774, 65281
        %v1779 = vmul.u32 %v1774, 65280
        %v1780 = vshll.u32 %v1777, 16
        %v1781 = vshrl.u32 %v1777, 16
        %v1782 = vshll.u32 %v1778, 16
        %v1783 = vshrl.u32 %v1778, 16
        %vm1784 = vc.u32 %v1776, %v1780
        %v1785 = vsel %vm1784, 1, 0
        %v1786 = vadd.s32 %v1776, %v1780
        %v1787 = vadd.s32 %v1779, %v1785
        %vm1788 = vc.u32 %v1786, %v1782
        %v1789 = vsel %vm1788, 1, 0
        %v1790 = vadd.s32 %v1786, %v1782
        %v1791 = vadd.s32 %v1787, %v1789
        %v1792 = vadd.s32 %v1791, %v1781
        %v1793 = vadd.s32 %v1792, %v1783
        %v1794 = vshrl.u32 %v1793, 8
        %v1795 = vmul.u32 %v1794, 257
        %v1796 = vsub.s32 %v1772, %v1795
        %v1797 = vsub.s32 0, %v1796
        %v1798 = vsel %vm1770, %v1797, %v1796
        %vm1799 = vcmp.lt.s32.totalorder %v1683, 0
        %v1800 = vsub.s32 0, %v1683
        %v1801 = vsel %vm1799, %v1800, %v1683
        %v1802 = vand.u32 %v1801, 65535
        %v1803 = vshrl.u32 %v1801, 16
        %v1805 = vmul.u32 %v1802, 65281
        %v1806 = vmul.u32 %v1802, 65280
        %v1807 = vmul.u32 %v1803, 65281
        %v1808 = vmul.u32 %v1803, 65280
        %v1809 = vshll.u32 %v1806, 16
        %v1810 = vshrl.u32 %v1806, 16
        %v1811 = vshll.u32 %v1807, 16
        %v1812 = vshrl.u32 %v1807, 16
        %vm1813 = vc.u32 %v1805, %v1809
        %v1814 = vsel %vm1813, 1, 0
        %v1815 = vadd.s32 %v1805, %v1809
        %v1816 = vadd.s32 %v1808, %v1814
        %vm1817 = vc.u32 %v1815, %v1811
        %v1818 = vsel %vm1817, 1, 0
        %v1819 = vadd.s32 %v1815, %v1811
        %v1820 = vadd.s32 %v1816, %v1818
        %v1821 = vadd.s32 %v1820, %v1810
        %v1822 = vadd.s32 %v1821, %v1812
        %v1823 = vshrl.u32 %v1822, 8
        %v1824 = vmul.u32 %v1823, 257
        %v1825 = vsub.s32 %v1801, %v1824
        %v1826 = vsub.s32 0, %v1825
        %v1827 = vsel %vm1799, %v1826, %v1825
        %vm1828 = vcmp.lt.s32.totalorder %v1684, 0
        %v1829 = vsub.s32 0, %v1684
        %v1830 = vsel %vm1828, %v1829, %v1684
        %v1831 = vand.u32 %v1830, 65535
        %v1832 = vshrl.u32 %v1830, 16
        %v1834 = vmul.u32 %v1831, 65281
        %v1835 = vmul.u32 %v1831, 65280
        %v1836 = vmul.u32 %v1832, 65281
        %v1837 = vmul.u32 %v1832, 65280
        %v1838 = vshll.u32 %v1835, 16
        %v1839 = vshrl.u32 %v1835, 16
        %v1840 = vshll.u32 %v1836, 16
        %v1841 = vshrl.u32 %v1836, 16
        %vm1842 = vc.u32 %v1834, %v1838
        %v1843 = vsel %vm1842, 1, 0
        %v1844 = vadd.s32 %v1834, %v1838
        %v1845 = vadd.s32 %v1837, %v1843
        %vm1846 = vc.u32 %v1844, %v1840
        %v1847 = vsel %vm1846, 1, 0
        %v1848 = vadd.s32 %v1844, %v1840
        %v1849 = vadd.s32 %v1845, %v1847
        %v1850 = vadd.s32 %v1849, %v1839
        %v1851 = vadd.s32 %v1850, %v1841
        %v1852 = vshrl.u32 %v1851, 8
        %v1853 = vmul.u32 %v1852, 257
        %v1854 = vsub.s32 %v1830, %v1853
        %v1855 = vsub.s32 0, %v1854
        %v1856 = vsel %vm1828, %v1855, %v1854
        %vm1857 = vcmp.lt.s32.totalorder %v1685, 0
        %v1858 = vsub.s32 0, %v1685
        %v1859 = vsel %vm1857, %v1858, %v1685
        %v1860 = vand.u32 %v1859, 65535
        %v1861 = vshrl.u32 %v1859, 16
        %v1863 = vmul.u32 %v1860, 65281
        %v1864 = vmul.u32 %v1860, 65280
        %v1865 = vmul.u32 %v1861, 65281
        %v1866 = vmul.u32 %v1861, 65280
        %v1867 = vshll.u32 %v1864, 16
        %v1868 = vshrl.u32 %v1864, 16
        %v1869 = vshll.u32 %v1865, 16
        %v1870 = vshrl.u32 %v1865, 16
        %vm1871 = vc.u32 %v1863, %v1867
        %v1872 = vsel %vm1871, 1, 0
        %v1873 = vadd.s32 %v1863, %v1867
        %v1874 = vadd.s32 %v1866, %v1872
        %vm1875 = vc.u32 %v1873, %v1869
        %v1876 = vsel %vm1875, 1, 0
        %v1877 = vadd.s32 %v1873, %v1869
        %v1878 = vadd.s32 %v1874, %v1876
        %v1879 = vadd.s32 %v1878, %v1868
        %v1880 = vadd.s32 %v1879, %v1870
        %v1881 = vshrl.u32 %v1880, 8
        %v1882 = vmul.u32 %v1881, 257
        %v1883 = vsub.s32 %v1859, %v1882
        %v1884 = vsub.s32 0, %v1883
        %v1885 = vsel %vm1857, %v1884, %v1883
        %vm1886 = vcmp.lt.s32.totalorder %v1686, 0
        %v1887 = vsub.s32 0, %v1686
        %v1888 = vsel %vm1886, %v1887, %v1686
        %v1889 = vand.u32 %v1888, 65535
        %v1890 = vshrl.u32 %v1888, 16
        %v1892 = vmul.u32 %v1889, 65281
        %v1893 = vmul.u32 %v1889, 65280
        %v1894 = vmul.u32 %v1890, 65281
        %v1895 = vmul.u32 %v1890, 65280
        %v1896 = vshll.u32 %v1893, 16
        %v1897 = vshrl.u32 %v1893, 16
        %v1898 = vshll.u32 %v1894, 16
        %v1899 = vshrl.u32 %v1894, 16
        %vm1900 = vc.u32 %v1892, %v1896
        %v1901 = vsel %vm1900, 1, 0
        %v1902 = vadd.s32 %v1892, %v1896
        %v1903 = vadd.s32 %v1895, %v1901
        %vm1904 = vc.u32 %v1902, %v1898
        %v1905 = vsel %vm1904, 1, 0
        %v1906 = vadd.s32 %v1902, %v1898
        %v1907 = vadd.s32 %v1903, %v1905
        %v1908 = vadd.s32 %v1907, %v1897
        %v1909 = vadd.s32 %v1908, %v1899
        %v1910 = vshrl.u32 %v1909, 8
        %v1911 = vmul.u32 %v1910, 257
        %v1912 = vsub.s32 %v1888, %v1911
        %v1913 = vsub.s32 0, %v1912
        %v1914 = vsel %vm1886, %v1913, %v1912
        %vm1915 = vcmp.lt.s32.totalorder %v1687, 0
        %v1916 = vsub.s32 0, %v1687
        %v1917 = vsel %vm1915, %v1916, %v1687
        %v1918 = vand.u32 %v1917, 65535
        %v1919 = vshrl.u32 %v1917, 16
        %v1921 = vmul.u32 %v1918, 65281
        %v1922 = vmul.u32 %v1918, 65280
        %v1923 = vmul.u32 %v1919, 65281
        %v1924 = vmul.u32 %v1919, 65280
        %v1925 = vshll.u32 %v1922, 16
        %v1926 = vshrl.u32 %v1922, 16
        %v1927 = vshll.u32 %v1923, 16
        %v1928 = vshrl.u32 %v1923, 16
        %vm1929 = vc.u32 %v1921, %v1925
        %v1930 = vsel %vm1929, 1, 0
        %v1931 = vadd.s32 %v1921, %v1925
        %v1932 = vadd.s32 %v1924, %v1930
        %vm1933 = vc.u32 %v1931, %v1927
        %v1934 = vsel %vm1933, 1, 0
        %v1935 = vadd.s32 %v1931, %v1927
        %v1936 = vadd.s32 %v1932, %v1934
        %v1937 = vadd.s32 %v1936, %v1926
        %v1938 = vadd.s32 %v1937, %v1928
        %v1939 = vshrl.u32 %v1938, 8
        %v1940 = vmul.u32 %v1939, 257
        %v1941 = vsub.s32 %v1917, %v1940
        %v1942 = vsub.s32 0, %v1941
        %v1943 = vsel %vm1915, %v1942, %v1941
        %vm1944 = vcmp.lt.s32.totalorder %v1688, 0
        %v1945 = vsub.s32 0, %v1688
        %v1946 = vsel %vm1944, %v1945, %v1688
        %v1947 = vand.u32 %v1946, 65535
        %v1948 = vshrl.u32 %v1946, 16
        %v1950 = vmul.u32 %v1947, 65281
        %v1951 = vmul.u32 %v1947, 65280
        %v1952 = vmul.u32 %v1948, 65281
        %v1953 = vmul.u32 %v1948, 65280
        %v1954 = vshll.u32 %v1951, 16
        %v1955 = vshrl.u32 %v1951, 16
        %v1956 = vshll.u32 %v1952, 16
        %v1957 = vshrl.u32 %v1952, 16
        %vm1958 = vc.u32 %v1950, %v1954
        %v1959 = vsel %vm1958, 1, 0
        %v1960 = vadd.s32 %v1950, %v1954
        %v1961 = vadd.s32 %v1953, %v1959
        %vm1962 = vc.u32 %v1960, %v1956
        %v1963 = vsel %vm1962, 1, 0
        %v1964 = vadd.s32 %v1960, %v1956
        %v1965 = vadd.s32 %v1961, %v1963
        %v1966 = vadd.s32 %v1965, %v1955
        %v1967 = vadd.s32 %v1966, %v1957
        %v1968 = vshrl.u32 %v1967, 8
        %v1969 = vmul.u32 %v1968, 257
        %v1970 = vsub.s32 %v1946, %v1969
        %v1971 = vsub.s32 0, %v1970
        %v1972 = vsel %vm1944, %v1971, %v1970
        %vm1973 = vcmp.lt.s32.totalorder %v1689, 0
        %v1974 = vsub.s32 0, %v1689
        %v1975 = vsel %vm1973, %v1974, %v1689
        %v1976 = vand.u32 %v1975, 65535
        %v1977 = vshrl.u32 %v1975, 16
        %v1979 = vmul.u32 %v1976, 65281
        %v1980 = vmul.u32 %v1976, 65280
        %v1981 = vmul.u32 %v1977, 65281
        %v1982 = vmul.u32 %v1977, 65280
        %v1983 = vshll.u32 %v1980, 16
        %v1984 = vshrl.u32 %v1980, 16
        %v1985 = vshll.u32 %v1981, 16
        %v1986 = vshrl.u32 %v1981, 16
        %vm1987 = vc.u32 %v1979, %v1983
        %v1988 = vsel %vm1987, 1, 0
        %v1989 = vadd.s32 %v1979, %v1983
        %v1990 = vadd.s32 %v1982, %v1988
        %vm1991 = vc.u32 %v1989, %v1985
        %v1992 = vsel %vm1991, 1, 0
        %v1993 = vadd.s32 %v1989, %v1985
        %v1994 = vadd.s32 %v1990, %v1992
        %v1995 = vadd.s32 %v1994, %v1984
        %v1996 = vadd.s32 %v1995, %v1986
        %v1997 = vshrl.u32 %v1996, 8
        %v1998 = vmul.u32 %v1997, 257
        %v1999 = vsub.s32 %v1975, %v1998
        %v2000 = vsub.s32 0, %v1999
        %v2001 = vsel %vm1973, %v2000, %v1999
        %vm2002 = vcmp.lt.s32.totalorder %v1690, 0
        %v2003 = vsub.s32 0, %v1690
        %v2004 = vsel %vm2002, %v2003, %v1690
        %v2005 = vand.u32 %v2004, 65535
        %v2006 = vshrl.u32 %v2004, 16
        %v2008 = vmul.u32 %v2005, 65281
        %v2009 = vmul.u32 %v2005, 65280
        %v2010 = vmul.u32 %v2006, 65281
        %v2011 = vmul.u32 %v2006, 65280
        %v2012 = vshll.u32 %v2009, 16
        %v2013 = vshrl.u32 %v2009, 16
        %v2014 = vshll.u32 %v2010, 16
        %v2015 = vshrl.u32 %v2010, 16
        %vm2016 = vc.u32 %v2008, %v2012
        %v2017 = vsel %vm2016, 1, 0
        %v2018 = vadd.s32 %v2008, %v2012
        %v2019 = vadd.s32 %v2011, %v2017
        %vm2020 = vc.u32 %v2018, %v2014
        %v2021 = vsel %vm2020, 1, 0
        %v2022 = vadd.s32 %v2018, %v2014
        %v2023 = vadd.s32 %v2019, %v2021
        %v2024 = vadd.s32 %v2023, %v2013
        %v2025 = vadd.s32 %v2024, %v2015
        %v2026 = vshrl.u32 %v2025, 8
        %v2027 = vmul.u32 %v2026, 257
        %v2028 = vsub.s32 %v2004, %v2027
        %v2029 = vsub.s32 0, %v2028
        %v2030 = vsel %vm2002, %v2029, %v2028
        %vm2031 = vcmp.lt.s32.totalorder %v1691, 0
        %v2032 = vsub.s32 0, %v1691
        %v2033 = vsel %vm2031, %v2032, %v1691
        %v2034 = vand.u32 %v2033, 65535
        %v2035 = vshrl.u32 %v2033, 16
        %v2037 = vmul.u32 %v2034, 65281
        %v2038 = vmul.u32 %v2034, 65280
        %v2039 = vmul.u32 %v2035, 65281
        %v2040 = vmul.u32 %v2035, 65280
        %v2041 = vshll.u32 %v2038, 16
        %v2042 = vshrl.u32 %v2038, 16
        %v2043 = vshll.u32 %v2039, 16
        %v2044 = vshrl.u32 %v2039, 16
        %vm2045 = vc.u32 %v2037, %v2041
        %v2046 = vsel %vm2045, 1, 0
        %v2047 = vadd.s32 %v2037, %v2041
        %v2048 = vadd.s32 %v2040, %v2046
        %vm2049 = vc.u32 %v2047, %v2043
        %v2050 = vsel %vm2049, 1, 0
        %v2051 = vadd.s32 %v2047, %v2043
        %v2052 = vadd.s32 %v2048, %v2050
        %v2053 = vadd.s32 %v2052, %v2042
        %v2054 = vadd.s32 %v2053, %v2044
        %v2055 = vshrl.u32 %v2054, 8
        %v2056 = vmul.u32 %v2055, 257
        %v2057 = vsub.s32 %v2033, %v2056
        %v2058 = vsub.s32 0, %v2057
        %v2059 = vsel %vm2031, %v2058, %v2057
        %vm2060 = vcmp.lt.s32.totalorder %v1692, 0
        %v2061 = vsub.s32 0, %v1692
        %v2062 = vsel %vm2060, %v2061, %v1692
        %v2063 = vand.u32 %v2062, 65535
        %v2064 = vshrl.u32 %v2062, 16
        %v2066 = vmul.u32 %v2063, 65281
        %v2067 = vmul.u32 %v2063, 65280
        %v2068 = vmul.u32 %v2064, 65281
        %v2069 = vmul.u32 %v2064, 65280
        %v2070 = vshll.u32 %v2067, 16
        %v2071 = vshrl.u32 %v2067, 16
        %v2072 = vshll.u32 %v2068, 16
        %v2073 = vshrl.u32 %v2068, 16
        %vm2074 = vc.u32 %v2066, %v2070
        %v2075 = vsel %vm2074, 1, 0
        %v2076 = vadd.s32 %v2066, %v2070
        %v2077 = vadd.s32 %v2069, %v2075
        %vm2078 = vc.u32 %v2076, %v2072
        %v2079 = vsel %vm2078, 1, 0
        %v2080 = vadd.s32 %v2076, %v2072
        %v2081 = vadd.s32 %v2077, %v2079
        %v2082 = vadd.s32 %v2081, %v2071
        %v2083 = vadd.s32 %v2082, %v2073
        %v2084 = vshrl.u32 %v2083, 8
        %v2085 = vmul.u32 %v2084, 257
        %v2086 = vsub.s32 %v2062, %v2085
        %v2087 = vsub.s32 0, %v2086
        %v2088 = vsel %vm2060, %v2087, %v2086
        %vm2089 = vcmp.lt.s32.totalorder %v1693, 0
        %v2090 = vsub.s32 0, %v1693
        %v2091 = vsel %vm2089, %v2090, %v1693
        %v2092 = vand.u32 %v2091, 65535
        %v2093 = vshrl.u32 %v2091, 16
        %v2095 = vmul.u32 %v2092, 65281
        %v2096 = vmul.u32 %v2092, 65280
        %v2097 = vmul.u32 %v2093, 65281
        %v2098 = vmul.u32 %v2093, 65280
        %v2099 = vshll.u32 %v2096, 16
        %v2100 = vshrl.u32 %v2096, 16
        %v2101 = vshll.u32 %v2097, 16
        %v2102 = vshrl.u32 %v2097, 16
        %vm2103 = vc.u32 %v2095, %v2099
        %v2104 = vsel %vm2103, 1, 0
        %v2105 = vadd.s32 %v2095, %v2099
        %v2106 = vadd.s32 %v2098, %v2104
        %vm2107 = vc.u32 %v2105, %v2101
        %v2108 = vsel %vm2107, 1, 0
        %v2109 = vadd.s32 %v2105, %v2101
        %v2110 = vadd.s32 %v2106, %v2108
        %v2111 = vadd.s32 %v2110, %v2100
        %v2112 = vadd.s32 %v2111, %v2102
        %v2113 = vshrl.u32 %v2112, 8
        %v2114 = vmul.u32 %v2113, 257
        %v2115 = vsub.s32 %v2091, %v2114
        %v2116 = vsub.s32 0, %v2115
        %v2117 = vsel %vm2089, %v2116, %v2115
        %vm2118 = vcmp.lt.s32.totalorder %v1694, 0
        %v2119 = vsub.s32 0, %v1694
        %v2120 = vsel %vm2118, %v2119, %v1694
        %v2121 = vand.u32 %v2120, 65535
        %v2122 = vshrl.u32 %v2120, 16
        %v2124 = vmul.u32 %v2121, 65281
        %v2125 = vmul.u32 %v2121, 65280
        %v2126 = vmul.u32 %v2122, 65281
        %v2127 = vmul.u32 %v2122, 65280
        %v2128 = vshll.u32 %v2125, 16
        %v2129 = vshrl.u32 %v2125, 16
        %v2130 = vshll.u32 %v2126, 16
        %v2131 = vshrl.u32 %v2126, 16
        %vm2132 = vc.u32 %v2124, %v2128
        %v2133 = vsel %vm2132, 1, 0
        %v2134 = vadd.s32 %v2124, %v2128
        %v2135 = vadd.s32 %v2127, %v2133
        %vm2136 = vc.u32 %v2134, %v2130
        %v2137 = vsel %vm2136, 1, 0
        %v2138 = vadd.s32 %v2134, %v2130
        %v2139 = vadd.s32 %v2135, %v2137
        %v2140 = vadd.s32 %v2139, %v2129
        %v2141 = vadd.s32 %v2140, %v2131
        %v2142 = vshrl.u32 %v2141, 8
        %v2143 = vmul.u32 %v2142, 257
        %v2144 = vsub.s32 %v2120, %v2143
        %v2145 = vsub.s32 0, %v2144
        %v2146 = vsel %vm2118, %v2145, %v2144
        %vm2147 = vcmp.lt.s32.totalorder %v1695, 0
        %v2148 = vsub.s32 0, %v1695
        %v2149 = vsel %vm2147, %v2148, %v1695
        %v2150 = vand.u32 %v2149, 65535
        %v2151 = vshrl.u32 %v2149, 16
        %v2153 = vmul.u32 %v2150, 65281
        %v2154 = vmul.u32 %v2150, 65280
        %v2155 = vmul.u32 %v2151, 65281
        %v2156 = vmul.u32 %v2151, 65280
        %v2157 = vshll.u32 %v2154, 16
        %v2158 = vshrl.u32 %v2154, 16
        %v2159 = vshll.u32 %v2155, 16
        %v2160 = vshrl.u32 %v2155, 16
        %vm2161 = vc.u32 %v2153, %v2157
        %v2162 = vsel %vm2161, 1, 0
        %v2163 = vadd.s32 %v2153, %v2157
        %v2164 = vadd.s32 %v2156, %v2162
        %vm2165 = vc.u32 %v2163, %v2159
        %v2166 = vsel %vm2165, 1, 0
        %v2167 = vadd.s32 %v2163, %v2159
        %v2168 = vadd.s32 %v2164, %v2166
        %v2169 = vadd.s32 %v2168, %v2158
        %v2170 = vadd.s32 %v2169, %v2160
        %v2171 = vshrl.u32 %v2170, 8
        %v2172 = vmul.u32 %v2171, 257
        %v2173 = vsub.s32 %v2149, %v2172
        %v2174 = vsub.s32 0, %v2173
        %v2175 = vsel %vm2147, %v2174, %v2173
        %vm2176 = vcmp.lt.s32.totalorder %v1696, 0
        %v2177 = vsub.s32 0, %v1696
        %v2178 = vsel %vm2176, %v2177, %v1696
        %v2179 = vand.u32 %v2178, 65535
        %v2180 = vshrl.u32 %v2178, 16
        %v2182 = vmul.u32 %v2179, 65281
        %v2183 = vmul.u32 %v2179, 65280
        %v2184 = vmul.u32 %v2180, 65281
        %v2185 = vmul.u32 %v2180, 65280
        %v2186 = vshll.u32 %v2183, 16
        %v2187 = vshrl.u32 %v2183, 16
        %v2188 = vshll.u32 %v2184, 16
        %v2189 = vshrl.u32 %v2184, 16
        %vm2190 = vc.u32 %v2182, %v2186
        %v2191 = vsel %vm2190, 1, 0
        %v2192 = vadd.s32 %v2182, %v2186
        %v2193 = vadd.s32 %v2185, %v2191
        %vm2194 = vc.u32 %v2192, %v2188
        %v2195 = vsel %vm2194, 1, 0
        %v2196 = vadd.s32 %v2192, %v2188
        %v2197 = vadd.s32 %v2193, %v2195
        %v2198 = vadd.s32 %v2197, %v2187
        %v2199 = vadd.s32 %v2198, %v2189
        %v2200 = vshrl.u32 %v2199, 8
        %v2201 = vmul.u32 %v2200, 257
        %v2202 = vsub.s32 %v2178, %v2201
        %v2203 = vsub.s32 0, %v2202
        %v2204 = vsel %vm2176, %v2203, %v2202
        %vm2205 = vcmp.lt.s32.totalorder %v1697, 0
        %v2206 = vsub.s32 0, %v1697
        %v2207 = vsel %vm2205, %v2206, %v1697
        %v2208 = vand.u32 %v2207, 65535
        %v2209 = vshrl.u32 %v2207, 16
        %v2211 = vmul.u32 %v2208, 65281
        %v2212 = vmul.u32 %v2208, 65280
        %v2213 = vmul.u32 %v2209, 65281
        %v2214 = vmul.u32 %v2209, 65280
        %v2215 = vshll.u32 %v2212, 16
        %v2216 = vshrl.u32 %v2212, 16
        %v2217 = vshll.u32 %v2213, 16
        %v2218 = vshrl.u32 %v2213, 16
        %vm2219 = vc.u32 %v2211, %v2215
        %v2220 = vsel %vm2219, 1, 0
        %v2221 = vadd.s32 %v2211, %v2215
        %v2222 = vadd.s32 %v2214, %v2220
        %vm2223 = vc.u32 %v2221, %v2217
        %v2224 = vsel %vm2223, 1, 0
        %v2225 = vadd.s32 %v2221, %v2217
        %v2226 = vadd.s32 %v2222, %v2224
        %v2227 = vadd.s32 %v2226, %v2216
        %v2228 = vadd.s32 %v2227, %v2218
        %v2229 = vshrl.u32 %v2228, 8
        %v2230 = vmul.u32 %v2229, 257
        %v2231 = vsub.s32 %v2207, %v2230
        %v2232 = vsub.s32 0, %v2231
        %v2233 = vsel %vm2205, %v2232, %v2231
        %vm2234 = vcmp.lt.s32.totalorder %v1698, 0
        %v2235 = vsub.s32 0, %v1698
        %v2236 = vsel %vm2234, %v2235, %v1698
        %v2237 = vand.u32 %v2236, 65535
        %v2238 = vshrl.u32 %v2236, 16
        %v2240 = vmul.u32 %v2237, 65281
        %v2241 = vmul.u32 %v2237, 65280
        %v2242 = vmul.u32 %v2238, 65281
        %v2243 = vmul.u32 %v2238, 65280
        %v2244 = vshll.u32 %v2241, 16
        %v2245 = vshrl.u32 %v2241, 16
        %v2246 = vshll.u32 %v2242, 16
        %v2247 = vshrl.u32 %v2242, 16
        %vm2248 = vc.u32 %v2240, %v2244
        %v2249 = vsel %vm2248, 1, 0
        %v2250 = vadd.s32 %v2240, %v2244
        %v2251 = vadd.s32 %v2243, %v2249
        %vm2252 = vc.u32 %v2250, %v2246
        %v2253 = vsel %vm2252, 1, 0
        %v2254 = vadd.s32 %v2250, %v2246
        %v2255 = vadd.s32 %v2251, %v2253
        %v2256 = vadd.s32 %v2255, %v2245
        %v2257 = vadd.s32 %v2256, %v2247
        %v2258 = vshrl.u32 %v2257, 8
        %v2259 = vmul.u32 %v2258, 257
        %v2260 = vsub.s32 %v2236, %v2259
        %v2261 = vsub.s32 0, %v2260
        %v2262 = vsel %vm2234, %v2261, %v2260
        %vm2263 = vcmp.lt.s32.totalorder %v1699, 0
        %v2264 = vsub.s32 0, %v1699
        %v2265 = vsel %vm2263, %v2264, %v1699
        %v2266 = vand.u32 %v2265, 65535
        %v2267 = vshrl.u32 %v2265, 16
        %v2269 = vmul.u32 %v2266, 65281
        %v2270 = vmul.u32 %v2266, 65280
        %v2271 = vmul.u32 %v2267, 65281
        %v2272 = vmul.u32 %v2267, 65280
        %v2273 = vshll.u32 %v2270, 16
        %v2274 = vshrl.u32 %v2270, 16
        %v2275 = vshll.u32 %v2271, 16
        %v2276 = vshrl.u32 %v2271, 16
        %vm2277 = vc.u32 %v2269, %v2273
        %v2278 = vsel %vm2277, 1, 0
        %v2279 = vadd.s32 %v2269, %v2273
        %v2280 = vadd.s32 %v2272, %v2278
        %vm2281 = vc.u32 %v2279, %v2275
        %v2282 = vsel %vm2281, 1, 0
        %v2283 = vadd.s32 %v2279, %v2275
        %v2284 = vadd.s32 %v2280, %v2282
        %v2285 = vadd.s32 %v2284, %v2274
        %v2286 = vadd.s32 %v2285, %v2276
        %v2287 = vshrl.u32 %v2286, 8
        %v2288 = vmul.u32 %v2287, 257
        %v2289 = vsub.s32 %v2265, %v2288
        %v2290 = vsub.s32 0, %v2289
        %v2291 = vsel %vm2263, %v2290, %v2289
        %vm2292 = vcmp.lt.s32.totalorder %v1700, 0
        %v2293 = vsub.s32 0, %v1700
        %v2294 = vsel %vm2292, %v2293, %v1700
        %v2295 = vand.u32 %v2294, 65535
        %v2296 = vshrl.u32 %v2294, 16
        %v2298 = vmul.u32 %v2295, 65281
        %v2299 = vmul.u32 %v2295, 65280
        %v2300 = vmul.u32 %v2296, 65281
        %v2301 = vmul.u32 %v2296, 65280
        %v2302 = vshll.u32 %v2299, 16
        %v2303 = vshrl.u32 %v2299, 16
        %v2304 = vshll.u32 %v2300, 16
        %v2305 = vshrl.u32 %v2300, 16
        %vm2306 = vc.u32 %v2298, %v2302
        %v2307 = vsel %vm2306, 1, 0
        %v2308 = vadd.s32 %v2298, %v2302
        %v2309 = vadd.s32 %v2301, %v2307
        %vm2310 = vc.u32 %v2308, %v2304
        %v2311 = vsel %vm2310, 1, 0
        %v2312 = vadd.s32 %v2308, %v2304
        %v2313 = vadd.s32 %v2309, %v2311
        %v2314 = vadd.s32 %v2313, %v2303
        %v2315 = vadd.s32 %v2314, %v2305
        %v2316 = vshrl.u32 %v2315, 8
        %v2317 = vmul.u32 %v2316, 257
        %v2318 = vsub.s32 %v2294, %v2317
        %v2319 = vsub.s32 0, %v2318
        %v2320 = vsel %vm2292, %v2319, %v2318
        %vm2321 = vcmp.lt.s32.totalorder %v1701, 0
        %v2322 = vsub.s32 0, %v1701
        %v2323 = vsel %vm2321, %v2322, %v1701
        %v2324 = vand.u32 %v2323, 65535
        %v2325 = vshrl.u32 %v2323, 16
        %v2327 = vmul.u32 %v2324, 65281
        %v2328 = vmul.u32 %v2324, 65280
        %v2329 = vmul.u32 %v2325, 65281
        %v2330 = vmul.u32 %v2325, 65280
        %v2331 = vshll.u32 %v2328, 16
        %v2332 = vshrl.u32 %v2328, 16
        %v2333 = vshll.u32 %v2329, 16
        %v2334 = vshrl.u32 %v2329, 16
        %vm2335 = vc.u32 %v2327, %v2331
        %v2336 = vsel %vm2335, 1, 0
        %v2337 = vadd.s32 %v2327, %v2331
        %v2338 = vadd.s32 %v2330, %v2336
        %vm2339 = vc.u32 %v2337, %v2333
        %v2340 = vsel %vm2339, 1, 0
        %v2341 = vadd.s32 %v2337, %v2333
        %v2342 = vadd.s32 %v2338, %v2340
        %v2343 = vadd.s32 %v2342, %v2332
        %v2344 = vadd.s32 %v2343, %v2334
        %v2345 = vshrl.u32 %v2344, 8
        %v2346 = vmul.u32 %v2345, 257
        %v2347 = vsub.s32 %v2323, %v2346
        %v2348 = vsub.s32 0, %v2347
        %v2349 = vsel %vm2321, %v2348, %v2347
        %vm2350 = vcmp.lt.s32.totalorder %v1702, 0
        %v2351 = vsub.s32 0, %v1702
        %v2352 = vsel %vm2350, %v2351, %v1702
        %v2353 = vand.u32 %v2352, 65535
        %v2354 = vshrl.u32 %v2352, 16
        %v2356 = vmul.u32 %v2353, 65281
        %v2357 = vmul.u32 %v2353, 65280
        %v2358 = vmul.u32 %v2354, 65281
        %v2359 = vmul.u32 %v2354, 65280
        %v2360 = vshll.u32 %v2357, 16
        %v2361 = vshrl.u32 %v2357, 16
        %v2362 = vshll.u32 %v2358, 16
        %v2363 = vshrl.u32 %v2358, 16
        %vm2364 = vc.u32 %v2356, %v2360
        %v2365 = vsel %vm2364, 1, 0
        %v2366 = vadd.s32 %v2356, %v2360
        %v2367 = vadd.s32 %v2359, %v2365
        %vm2368 = vc.u32 %v2366, %v2362
        %v2369 = vsel %vm2368, 1, 0
        %v2370 = vadd.s32 %v2366, %v2362
        %v2371 = vadd.s32 %v2367, %v2369
        %v2372 = vadd.s32 %v2371, %v2361
        %v2373 = vadd.s32 %v2372, %v2363
        %v2374 = vshrl.u32 %v2373, 8
        %v2375 = vmul.u32 %v2374, 257
        %v2376 = vsub.s32 %v2352, %v2375
        %v2377 = vsub.s32 0, %v2376
        %v2378 = vsel %vm2350, %v2377, %v2376
        %vm2379 = vcmp.lt.s32.totalorder %v1703, 0
        %v2380 = vsub.s32 0, %v1703
        %v2381 = vsel %vm2379, %v2380, %v1703
        %v2382 = vand.u32 %v2381, 65535
        %v2383 = vshrl.u32 %v2381, 16
        %v2385 = vmul.u32 %v2382, 65281
        %v2386 = vmul.u32 %v2382, 65280
        %v2387 = vmul.u32 %v2383, 65281
        %v2388 = vmul.u32 %v2383, 65280
        %v2389 = vshll.u32 %v2386, 16
        %v2390 = vshrl.u32 %v2386, 16
        %v2391 = vshll.u32 %v2387, 16
        %v2392 = vshrl.u32 %v2387, 16
        %vm2393 = vc.u32 %v2385, %v2389
        %v2394 = vsel %vm2393, 1, 0
        %v2395 = vadd.s32 %v2385, %v2389
        %v2396 = vadd.s32 %v2388, %v2394
        %vm2397 = vc.u32 %v2395, %v2391
        %v2398 = vsel %vm2397, 1, 0
        %v2399 = vadd.s32 %v2395, %v2391
        %v2400 = vadd.s32 %v2396, %v2398
        %v2401 = vadd.s32 %v2400, %v2390
        %v2402 = vadd.s32 %v2401, %v2392
        %v2403 = vshrl.u32 %v2402, 8
        %v2404 = vmul.u32 %v2403, 257
        %v2405 = vsub.s32 %v2381, %v2404
        %v2406 = vsub.s32 0, %v2405
        %v2407 = vsel %vm2379, %v2406, %v2405
        %vm2408 = vcmp.lt.s32.totalorder %v1704, 0
        %v2409 = vsub.s32 0, %v1704
        %v2410 = vsel %vm2408, %v2409, %v1704
        %v2411 = vand.u32 %v2410, 65535
        %v2412 = vshrl.u32 %v2410, 16
        %v2414 = vmul.u32 %v2411, 65281
        %v2415 = vmul.u32 %v2411, 65280
        %v2416 = vmul.u32 %v2412, 65281
        %v2417 = vmul.u32 %v2412, 65280
        %v2418 = vshll.u32 %v2415, 16
        %v2419 = vshrl.u32 %v2415, 16
        %v2420 = vshll.u32 %v2416, 16
        %v2421 = vshrl.u32 %v2416, 16
        %vm2422 = vc.u32 %v2414, %v2418
        %v2423 = vsel %vm2422, 1, 0
        %v2424 = vadd.s32 %v2414, %v2418
        %v2425 = vadd.s32 %v2417, %v2423
        %vm2426 = vc.u32 %v2424, %v2420
        %v2427 = vsel %vm2426, 1, 0
        %v2428 = vadd.s32 %v2424, %v2420
        %v2429 = vadd.s32 %v2425, %v2427
        %v2430 = vadd.s32 %v2429, %v2419
        %v2431 = vadd.s32 %v2430, %v2421
        %v2432 = vshrl.u32 %v2431, 8
        %v2433 = vmul.u32 %v2432, 257
        %v2434 = vsub.s32 %v2410, %v2433
        %v2435 = vsub.s32 0, %v2434
        %v2436 = vsel %vm2408, %v2435, %v2434
        %vm2437 = vcmp.lt.s32.totalorder %v1705, 0
        %v2438 = vsub.s32 0, %v1705
        %v2439 = vsel %vm2437, %v2438, %v1705
        %v2440 = vand.u32 %v2439, 65535
        %v2441 = vshrl.u32 %v2439, 16
        %v2443 = vmul.u32 %v2440, 65281
        %v2444 = vmul.u32 %v2440, 65280
        %v2445 = vmul.u32 %v2441, 65281
        %v2446 = vmul.u32 %v2441, 65280
        %v2447 = vshll.u32 %v2444, 16
        %v2448 = vshrl.u32 %v2444, 16
        %v2449 = vshll.u32 %v2445, 16
        %v2450 = vshrl.u32 %v2445, 16
        %vm2451 = vc.u32 %v2443, %v2447
        %v2452 = vsel %vm2451, 1, 0
        %v2453 = vadd.s32 %v2443, %v2447
        %v2454 = vadd.s32 %v2446, %v2452
        %vm2455 = vc.u32 %v2453, %v2449
        %v2456 = vsel %vm2455, 1, 0
        %v2457 = vadd.s32 %v2453, %v2449
        %v2458 = vadd.s32 %v2454, %v2456
        %v2459 = vadd.s32 %v2458, %v2448
        %v2460 = vadd.s32 %v2459, %v2450
        %v2461 = vshrl.u32 %v2460, 8
        %v2462 = vmul.u32 %v2461, 257
        %v2463 = vsub.s32 %v2439, %v2462
        %v2464 = vsub.s32 0, %v2463
        %v2465 = vsel %vm2437, %v2464, %v2463
        %vm2466 = vcmp.lt.s32.totalorder %v1706, 0
        %v2467 = vsub.s32 0, %v1706
        %v2468 = vsel %vm2466, %v2467, %v1706
        %v2469 = vand.u32 %v2468, 65535
        %v2470 = vshrl.u32 %v2468, 16
        %v2472 = vmul.u32 %v2469, 65281
        %v2473 = vmul.u32 %v2469, 65280
        %v2474 = vmul.u32 %v2470, 65281
        %v2475 = vmul.u32 %v2470, 65280
        %v2476 = vshll.u32 %v2473, 16
        %v2477 = vshrl.u32 %v2473, 16
        %v2478 = vshll.u32 %v2474, 16
        %v2479 = vshrl.u32 %v2474, 16
        %vm2480 = vc.u32 %v2472, %v2476
        %v2481 = vsel %vm2480, 1, 0
        %v2482 = vadd.s32 %v2472, %v2476
        %v2483 = vadd.s32 %v2475, %v2481
        %vm2484 = vc.u32 %v2482, %v2478
        %v2485 = vsel %vm2484, 1, 0
        %v2486 = vadd.s32 %v2482, %v2478
        %v2487 = vadd.s32 %v2483, %v2485
        %v2488 = vadd.s32 %v2487, %v2477
        %v2489 = vadd.s32 %v2488, %v2479
        %v2490 = vshrl.u32 %v2489, 8
        %v2491 = vmul.u32 %v2490, 257
        %v2492 = vsub.s32 %v2468, %v2491
        %v2493 = vsub.s32 0, %v2492
        %v2494 = vsel %vm2466, %v2493, %v2492
        %vm2495 = vcmp.lt.s32.totalorder %v1707, 0
        %v2496 = vsub.s32 0, %v1707
        %v2497 = vsel %vm2495, %v2496, %v1707
        %v2498 = vand.u32 %v2497, 65535
        %v2499 = vshrl.u32 %v2497, 16
        %v2501 = vmul.u32 %v2498, 65281
        %v2502 = vmul.u32 %v2498, 65280
        %v2503 = vmul.u32 %v2499, 65281
        %v2504 = vmul.u32 %v2499, 65280
        %v2505 = vshll.u32 %v2502, 16
        %v2506 = vshrl.u32 %v2502, 16
        %v2507 = vshll.u32 %v2503, 16
        %v2508 = vshrl.u32 %v2503, 16
        %vm2509 = vc.u32 %v2501, %v2505
        %v2510 = vsel %vm2509, 1, 0
        %v2511 = vadd.s32 %v2501, %v2505
        %v2512 = vadd.s32 %v2504, %v2510
        %vm2513 = vc.u32 %v2511, %v2507
        %v2514 = vsel %vm2513, 1, 0
        %v2515 = vadd.s32 %v2511, %v2507
        %v2516 = vadd.s32 %v2512, %v2514
        %v2517 = vadd.s32 %v2516, %v2506
        %v2518 = vadd.s32 %v2517, %v2508
        %v2519 = vshrl.u32 %v2518, 8
        %v2520 = vmul.u32 %v2519, 257
        %v2521 = vsub.s32 %v2497, %v2520
        %v2522 = vsub.s32 0, %v2521
        %v2523 = vsel %vm2495, %v2522, %v2521
        %vm2524 = vcmp.lt.s32.totalorder %v1708, 0
        %v2525 = vsub.s32 0, %v1708
        %v2526 = vsel %vm2524, %v2525, %v1708
        %v2527 = vand.u32 %v2526, 65535
        %v2528 = vshrl.u32 %v2526, 16
        %v2530 = vmul.u32 %v2527, 65281
        %v2531 = vmul.u32 %v2527, 65280
        %v2532 = vmul.u32 %v2528, 65281
        %v2533 = vmul.u32 %v2528, 65280
        %v2534 = vshll.u32 %v2531, 16
        %v2535 = vshrl.u32 %v2531, 16
        %v2536 = vshll.u32 %v2532, 16
        %v2537 = vshrl.u32 %v2532, 16
        %vm2538 = vc.u32 %v2530, %v2534
        %v2539 = vsel %vm2538, 1, 0
        %v2540 = vadd.s32 %v2530, %v2534
        %v2541 = vadd.s32 %v2533, %v2539
        %vm2542 = vc.u32 %v2540, %v2536
        %v2543 = vsel %vm2542, 1, 0
        %v2544 = vadd.s32 %v2540, %v2536
        %v2545 = vadd.s32 %v2541, %v2543
        %v2546 = vadd.s32 %v2545, %v2535
        %v2547 = vadd.s32 %v2546, %v2537
        %v2548 = vshrl.u32 %v2547, 8
        %v2549 = vmul.u32 %v2548, 257
        %v2550 = vsub.s32 %v2526, %v2549
        %v2551 = vsub.s32 0, %v2550
        %v2552 = vsel %vm2524, %v2551, %v2550
        %vm2553 = vcmp.lt.s32.totalorder %v1709, 0
        %v2554 = vsub.s32 0, %v1709
        %v2555 = vsel %vm2553, %v2554, %v1709
        %v2556 = vand.u32 %v2555, 65535
        %v2557 = vshrl.u32 %v2555, 16
        %v2559 = vmul.u32 %v2556, 65281
        %v2560 = vmul.u32 %v2556, 65280
        %v2561 = vmul.u32 %v2557, 65281
        %v2562 = vmul.u32 %v2557, 65280
        %v2563 = vshll.u32 %v2560, 16
        %v2564 = vshrl.u32 %v2560, 16
        %v2565 = vshll.u32 %v2561, 16
        %v2566 = vshrl.u32 %v2561, 16
        %vm2567 = vc.u32 %v2559, %v2563
        %v2568 = vsel %vm2567, 1, 0
        %v2569 = vadd.s32 %v2559, %v2563
        %v2570 = vadd.s32 %v2562, %v2568
        %vm2571 = vc.u32 %v2569, %v2565
        %v2572 = vsel %vm2571, 1, 0
        %v2573 = vadd.s32 %v2569, %v2565
        %v2574 = vadd.s32 %v2570, %v2572
        %v2575 = vadd.s32 %v2574, %v2564
        %v2576 = vadd.s32 %v2575, %v2566
        %v2577 = vshrl.u32 %v2576, 8
        %v2578 = vmul.u32 %v2577, 257
        %v2579 = vsub.s32 %v2555, %v2578
        %v2580 = vsub.s32 0, %v2579
        %v2581 = vsel %vm2553, %v2580, %v2579
        %vm2582 = vcmp.lt.s32.totalorder %v1710, 0
        %v2583 = vsub.s32 0, %v1710
        %v2584 = vsel %vm2582, %v2583, %v1710
        %v2585 = vand.u32 %v2584, 65535
        %v2586 = vshrl.u32 %v2584, 16
        %v2588 = vmul.u32 %v2585, 65281
        %v2589 = vmul.u32 %v2585, 65280
        %v2590 = vmul.u32 %v2586, 65281
        %v2591 = vmul.u32 %v2586, 65280
        %v2592 = vshll.u32 %v2589, 16
        %v2593 = vshrl.u32 %v2589, 16
        %v2594 = vshll.u32 %v2590, 16
        %v2595 = vshrl.u32 %v2590, 16
        %vm2596 = vc.u32 %v2588, %v2592
        %v2597 = vsel %vm2596, 1, 0
        %v2598 = vadd.s32 %v2588, %v2592
        %v2599 = vadd.s32 %v2591, %v2597
        %vm2600 = vc.u32 %v2598, %v2594
        %v2601 = vsel %vm2600, 1, 0
        %v2602 = vadd.s32 %v2598, %v2594
        %v2603 = vadd.s32 %v2599, %v2601
        %v2604 = vadd.s32 %v2603, %v2593
        %v2605 = vadd.s32 %v2604, %v2595
        %v2606 = vshrl.u32 %v2605, 8
        %v2607 = vmul.u32 %v2606, 257
        %v2608 = vsub.s32 %v2584, %v2607
        %v2609 = vsub.s32 0, %v2608
        %v2610 = vsel %vm2582, %v2609, %v2608
        %vm2611 = vcmp.lt.s32.totalorder %v1711, 0
        %v2612 = vsub.s32 0, %v1711
        %v2613 = vsel %vm2611, %v2612, %v1711
        %v2614 = vand.u32 %v2613, 65535
        %v2615 = vshrl.u32 %v2613, 16
        %v2617 = vmul.u32 %v2614, 65281
        %v2618 = vmul.u32 %v2614, 65280
        %v2619 = vmul.u32 %v2615, 65281
        %v2620 = vmul.u32 %v2615, 65280
        %v2621 = vshll.u32 %v2618, 16
        %v2622 = vshrl.u32 %v2618, 16
        %v2623 = vshll.u32 %v2619, 16
        %v2624 = vshrl.u32 %v2619, 16
        %vm2625 = vc.u32 %v2617, %v2621
        %v2626 = vsel %vm2625, 1, 0
        %v2627 = vadd.s32 %v2617, %v2621
        %v2628 = vadd.s32 %v2620, %v2626
        %vm2629 = vc.u32 %v2627, %v2623
        %v2630 = vsel %vm2629, 1, 0
        %v2631 = vadd.s32 %v2627, %v2623
        %v2632 = vadd.s32 %v2628, %v2630
        %v2633 = vadd.s32 %v2632, %v2622
        %v2634 = vadd.s32 %v2633, %v2624
        %v2635 = vshrl.u32 %v2634, 8
        %v2636 = vmul.u32 %v2635, 257
        %v2637 = vsub.s32 %v2613, %v2636
        %v2638 = vsub.s32 0, %v2637
        %v2639 = vsel %vm2611, %v2638, %v2637
        %vm2640 = vcmp.ne.s32.totalorder %v1740, 0
        %vm2641 = vcmp.ne.s32.totalorder %v1769, 0
        %vm2642 = vcmp.ne.s32.totalorder %v1798, 0
        %vm2643 = vcmp.ne.s32.totalorder %v1827, 0
        %vm2644 = vcmp.ne.s32.totalorder %v1856, 0
        %vm2645 = vcmp.ne.s32.totalorder %v1885, 0
        %vm2646 = vcmp.ne.s32.totalorder %v1914, 0
        %vm2647 = vcmp.ne.s32.totalorder %v1943, 0
        %vm2648 = vcmp.ne.s32.totalorder %v1972, 0
        %vm2649 = vcmp.ne.s32.totalorder %v2001, 0
        %vm2650 = vcmp.ne.s32.totalorder %v2030, 0
        %vm2651 = vcmp.ne.s32.totalorder %v2059, 0
        %vm2652 = vcmp.ne.s32.totalorder %v2088, 0
        %vm2653 = vcmp.ne.s32.totalorder %v2117, 0
        %vm2654 = vcmp.ne.s32.totalorder %v2146, 0
        %vm2655 = vcmp.ne.s32.totalorder %v2175, 0
        %vm2656 = vcmp.ne.s32.totalorder %v2204, 0
        %vm2657 = vcmp.ne.s32.totalorder %v2233, 0
        %vm2658 = vcmp.ne.s32.totalorder %v2262, 0
        %vm2659 = vcmp.ne.s32.totalorder %v2291, 0
        %vm2660 = vcmp.ne.s32.totalorder %v2320, 0
        %vm2661 = vcmp.ne.s32.totalorder %v2349, 0
        %vm2662 = vcmp.ne.s32.totalorder %v2378, 0
        %vm2663 = vcmp.ne.s32.totalorder %v2407, 0
        %vm2664 = vcmp.ne.s32.totalorder %v2436, 0
        %vm2665 = vcmp.ne.s32.totalorder %v2465, 0
        %vm2666 = vcmp.ne.s32.totalorder %v2494, 0
        %vm2667 = vcmp.ne.s32.totalorder %v2523, 0
        %vm2668 = vcmp.ne.s32.totalorder %v2552, 0
        %vm2669 = vcmp.ne.s32.totalorder %v2581, 0
        %vm2670 = vcmp.ne.s32.totalorder %v2610, 0
        %vm2671 = vcmp.ne.s32.totalorder %v2639, 0
        %vm2672 = vcmp.lt.s32.totalorder %v1740, 0
        %vm2673 = vcmp.lt.s32.totalorder %v1769, 0
        %vm2674 = vcmp.lt.s32.totalorder %v1798, 0
        %vm2675 = vcmp.lt.s32.totalorder %v1827, 0
        %vm2676 = vcmp.lt.s32.totalorder %v1856, 0
        %vm2677 = vcmp.lt.s32.totalorder %v1885, 0
        %vm2678 = vcmp.lt.s32.totalorder %v1914, 0
        %vm2679 = vcmp.lt.s32.totalorder %v1943, 0
        %vm2680 = vcmp.lt.s32.totalorder %v1972, 0
        %vm2681 = vcmp.lt.s32.totalorder %v2001, 0
        %vm2682 = vcmp.lt.s32.totalorder %v2030, 0
        %vm2683 = vcmp.lt.s32.totalorder %v2059, 0
        %vm2684 = vcmp.lt.s32.totalorder %v2088, 0
        %vm2685 = vcmp.lt.s32.totalorder %v2117, 0
        %vm2686 = vcmp.lt.s32.totalorder %v2146, 0
        %vm2687 = vcmp.lt.s32.totalorder %v2175, 0
        %vm2688 = vcmp.lt.s32.totalorder %v2204, 0
        %vm2689 = vcmp.lt.s32.totalorder %v2233, 0
        %vm2690 = vcmp.lt.s32.totalorder %v2262, 0
        %vm2691 = vcmp.lt.s32.totalorder %v2291, 0
        %vm2692 = vcmp.lt.s32.totalorder %v2320, 0
        %vm2693 = vcmp.lt.s32.totalorder %v2349, 0
        %vm2694 = vcmp.lt.s32.totalorder %v2378, 0
        %vm2695 = vcmp.lt.s32.totalorder %v2407, 0
        %vm2696 = vcmp.lt.s32.totalorder %v2436, 0
        %vm2697 = vcmp.lt.s32.totalorder %v2465, 0
        %vm2698 = vcmp.lt.s32.totalorder %v2494, 0
        %vm2699 = vcmp.lt.s32.totalorder %v2523, 0
        %vm2700 = vcmp.lt.s32.totalorder %v2552, 0
        %vm2701 = vcmp.lt.s32.totalorder %v2581, 0
        %vm2702 = vcmp.lt.s32.totalorder %v2610, 0
        %vm2703 = vcmp.lt.s32.totalorder %v2639, 0
        %vm2704 = vmand %vm2672, %vm2640
        %vm2705 = vmand %vm2673, %vm2641
        %vm2706 = vmand %vm2674, %vm2642
        %vm2707 = vmand %vm2675, %vm2643
        %vm2708 = vmand %vm2676, %vm2644
        %vm2709 = vmand %vm2677, %vm2645
        %vm2710 = vmand %vm2678, %vm2646
        %vm2711 = vmand %vm2679, %vm2647
        %vm2712 = vmand %vm2680, %vm2648
        %vm2713 = vmand %vm2681, %vm2649
        %vm2714 = vmand %vm2682, %vm2650
        %vm2715 = vmand %vm2683, %vm2651
        %vm2716 = vmand %vm2684, %vm2652
        %vm2717 = vmand %vm2685, %vm2653
        %vm2718 = vmand %vm2686, %vm2654
        %vm2719 = vmand %vm2687, %vm2655
        %vm2720 = vmand %vm2688, %vm2656
        %vm2721 = vmand %vm2689, %vm2657
        %vm2722 = vmand %vm2690, %vm2658
        %vm2723 = vmand %vm2691, %vm2659
        %vm2724 = vmand %vm2692, %vm2660
        %vm2725 = vmand %vm2693, %vm2661
        %vm2726 = vmand %vm2694, %vm2662
        %vm2727 = vmand %vm2695, %vm2663
        %vm2728 = vmand %vm2696, %vm2664
        %vm2729 = vmand %vm2697, %vm2665
        %vm2730 = vmand %vm2698, %vm2666
        %vm2731 = vmand %vm2699, %vm2667
        %vm2732 = vmand %vm2700, %vm2668
        %vm2733 = vmand %vm2701, %vm2669
        %vm2734 = vmand %vm2702, %vm2670
        %vm2735 = vmand %vm2703, %vm2671
        %v2736 = vadd.s32 %v1740, 257
        %v2737 = vadd.s32 %v1769, 257
        %v2738 = vadd.s32 %v1798, 257
        %v2739 = vadd.s32 %v1827, 257
        %v2740 = vadd.s32 %v1856, 257
        %v2741 = vadd.s32 %v1885, 257
        %v2742 = vadd.s32 %v1914, 257
        %v2743 = vadd.s32 %v1943, 257
        %v2744 = vadd.s32 %v1972, 257
        %v2745 = vadd.s32 %v2001, 257
        %v2746 = vadd.s32 %v2030, 257
        %v2747 = vadd.s32 %v2059, 257
        %v2748 = vadd.s32 %v2088, 257
        %v2749 = vadd.s32 %v2117, 257
        %v2750 = vadd.s32 %v2146, 257
        %v2751 = vadd.s32 %v2175, 257
        %v2752 = vadd.s32 %v2204, 257
        %v2753 = vadd.s32 %v2233, 257
        %v2754 = vadd.s32 %v2262, 257
        %v2755 = vadd.s32 %v2291, 257
        %v2756 = vadd.s32 %v2320, 257
        %v2757 = vadd.s32 %v2349, 257
        %v2758 = vadd.s32 %v2378, 257
        %v2759 = vadd.s32 %v2407, 257
        %v2760 = vadd.s32 %v2436, 257
        %v2761 = vadd.s32 %v2465, 257
        %v2762 = vadd.s32 %v2494, 257
        %v2763 = vadd.s32 %v2523, 257
        %v2764 = vadd.s32 %v2552, 257
        %v2765 = vadd.s32 %v2581, 257
        %v2766 = vadd.s32 %v2610, 257
        %v2767 = vadd.s32 %v2639, 257
        %v2768 = vsel %vm2704, %v2736, %v1740
        %v2769 = vsel %vm2705, %v2737, %v1769
        %v2770 = vsel %vm2706, %v2738, %v1798
        %v2771 = vsel %vm2707, %v2739, %v1827
        %v2772 = vsel %vm2708, %v2740, %v1856
        %v2773 = vsel %vm2709, %v2741, %v1885
        %v2774 = vsel %vm2710, %v2742, %v1914
        %v2775 = vsel %vm2711, %v2743, %v1943
        %v2776 = vsel %vm2712, %v2744, %v1972
        %v2777 = vsel %vm2713, %v2745, %v2001
        %v2778 = vsel %vm2714, %v2746, %v2030
        %v2779 = vsel %vm2715, %v2747, %v2059
        %v2780 = vsel %vm2716, %v2748, %v2088
        %v2781 = vsel %vm2717, %v2749, %v2117
        %v2782 = vsel %vm2718, %v2750, %v2146
        %v2783 = vsel %vm2719, %v2751, %v2175
        %v2784 = vsel %vm2720, %v2752, %v2204
        %v2785 = vsel %vm2721, %v2753, %v2233
        %v2786 = vsel %vm2722, %v2754, %v2262
        %v2787 = vsel %vm2723, %v2755, %v2291
        %v2788 = vsel %vm2724, %v2756, %v2320
        %v2789 = vsel %vm2725, %v2757, %v2349
        %v2790 = vsel %vm2726, %v2758, %v2378
        %v2791 = vsel %vm2727, %v2759, %v2407
        %v2792 = vsel %vm2728, %v2760, %v2436
        %v2793 = vsel %vm2729, %v2761, %v2465
        %v2794 = vsel %vm2730, %v2762, %v2494
        %v2795 = vsel %vm2731, %v2763, %v2523
        %v2796 = vsel %vm2732, %v2764, %v2552
        %v2797 = vsel %vm2733, %v2765, %v2581
        %v2798 = vsel %vm2734, %v2766, %v2610
        %v2799 = vsel %vm2735, %v2767, %v2639
        %vm2800 = vcmp.eq.s32.totalorder %v2768, 0
        %vm2801 = vcmp.eq.s32.totalorder %v2769, 0
        %vm2802 = vcmp.eq.s32.totalorder %v2770, 0
        %vm2803 = vcmp.eq.s32.totalorder %v2771, 0
        %vm2804 = vcmp.eq.s32.totalorder %v2772, 0
        %vm2805 = vcmp.eq.s32.totalorder %v2773, 0
        %vm2806 = vcmp.eq.s32.totalorder %v2774, 0
        %vm2807 = vcmp.eq.s32.totalorder %v2775, 0
        %vm2808 = vcmp.eq.s32.totalorder %v2776, 0
        %vm2809 = vcmp.eq.s32.totalorder %v2777, 0
        %vm2810 = vcmp.eq.s32.totalorder %v2778, 0
        %vm2811 = vcmp.eq.s32.totalorder %v2779, 0
        %vm2812 = vcmp.eq.s32.totalorder %v2780, 0
        %vm2813 = vcmp.eq.s32.totalorder %v2781, 0
        %vm2814 = vcmp.eq.s32.totalorder %v2782, 0
        %vm2815 = vcmp.eq.s32.totalorder %v2783, 0
        %vm2816 = vcmp.eq.s32.totalorder %v2784, 0
        %vm2817 = vcmp.eq.s32.totalorder %v2785, 0
        %vm2818 = vcmp.eq.s32.totalorder %v2786, 0
        %vm2819 = vcmp.eq.s32.totalorder %v2787, 0
        %vm2820 = vcmp.eq.s32.totalorder %v2788, 0
        %vm2821 = vcmp.eq.s32.totalorder %v2789, 0
        %vm2822 = vcmp.eq.s32.totalorder %v2790, 0
        %vm2823 = vcmp.eq.s32.totalorder %v2791, 0
        %vm2824 = vcmp.eq.s32.totalorder %v2792, 0
        %vm2825 = vcmp.eq.s32.totalorder %v2793, 0
        %vm2826 = vcmp.eq.s32.totalorder %v2794, 0
        %vm2827 = vcmp.eq.s32.totalorder %v2795, 0
        %vm2828 = vcmp.eq.s32.totalorder %v2796, 0
        %vm2829 = vcmp.eq.s32.totalorder %v2797, 0
        %vm2830 = vcmp.eq.s32.totalorder %v2798, 0
        %vm2831 = vcmp.eq.s32.totalorder %v2799, 0
        %v2832 = vunpack.c.l.bf16 %v289
        %v2833 = vunpack.c.l.bf16 %v290
        %v2834 = vunpack.c.l.bf16 %v291
        %v2835 = vunpack.c.l.bf16 %v292
        %v2836 = vunpack.c.l.bf16 %v293
        %v2837 = vunpack.c.l.bf16 %v294
        %v2838 = vunpack.c.l.bf16 %v295
        %v2839 = vunpack.c.l.bf16 %v296
        %v2840 = vunpack.c.l.bf16 %v297
        %v2841 = vunpack.c.l.bf16 %v298
        %v2842 = vunpack.c.l.bf16 %v299
        %v2843 = vunpack.c.l.bf16 %v300
        %v2844 = vunpack.c.l.bf16 %v301
        %v2845 = vunpack.c.l.bf16 %v302
        %v2846 = vunpack.c.l.bf16 %v303
        %v2847 = vunpack.c.l.bf16 %v304
        %v2848 = vunpack.c.l.bf16 %v305
        %v2849 = vunpack.c.l.bf16 %v306
        %v2850 = vunpack.c.l.bf16 %v307
        %v2851 = vunpack.c.l.bf16 %v308
        %v2852 = vunpack.c.l.bf16 %v309
        %v2853 = vunpack.c.l.bf16 %v310
        %v2854 = vunpack.c.l.bf16 %v311
        %v2855 = vunpack.c.l.bf16 %v312
        %v2856 = vunpack.c.l.bf16 %v313
        %v2857 = vunpack.c.l.bf16 %v314
        %v2858 = vunpack.c.l.bf16 %v315
        %v2859 = vunpack.c.l.bf16 %v316
        %v2860 = vunpack.c.l.bf16 %v317
        %v2861 = vunpack.c.l.bf16 %v318
        %v2862 = vunpack.c.l.bf16 %v319
        %v2863 = vunpack.c.l.bf16 %v320
        %v2864 = vsel %vm2800, 1, 0
        %v2865 = vsel %vm2801, 1, 0
        %v2866 = vsel %vm2802, 1, 0
        %v2867 = vsel %vm2803, 1, 0
        %v2868 = vsel %vm2804, 1, 0
        %v2869 = vsel %vm2805, 1, 0
        %v2870 = vsel %vm2806, 1, 0
        %v2871 = vsel %vm2807, 1, 0
        %v2872 = vsel %vm2808, 1, 0
        %v2873 = vsel %vm2809, 1, 0
        %v2874 = vsel %vm2810, 1, 0
        %v2875 = vsel %vm2811, 1, 0
        %v2876 = vsel %vm2812, 1, 0
        %v2877 = vsel %vm2813, 1, 0
        %v2878 = vsel %vm2814, 1, 0
        %v2879 = vsel %vm2815, 1, 0
        %v2880 = vsel %vm2816, 1, 0
        %v2881 = vsel %vm2817, 1, 0
        %v2882 = vsel %vm2818, 1, 0
        %v2883 = vsel %vm2819, 1, 0
        %v2884 = vsel %vm2820, 1, 0
        %v2885 = vsel %vm2821, 1, 0
        %v2886 = vsel %vm2822, 1, 0
        %v2887 = vsel %vm2823, 1, 0
        %v2888 = vsel %vm2824, 1, 0
        %v2889 = vsel %vm2825, 1, 0
        %v2890 = vsel %vm2826, 1, 0
        %v2891 = vsel %vm2827, 1, 0
        %v2892 = vsel %vm2828, 1, 0
        %v2893 = vsel %vm2829, 1, 0
        %v2894 = vsel %vm2830, 1, 0
        %v2895 = vsel %vm2831, 1, 0
        %vm2896 = vcmp.eq.s32.totalorder %v2864, 1
        %vm2897 = vcmp.eq.s32.totalorder %v2865, 1
        %vm2898 = vcmp.eq.s32.totalorder %v2866, 1
        %vm2899 = vcmp.eq.s32.totalorder %v2867, 1
        %vm2900 = vcmp.eq.s32.totalorder %v2868, 1
        %vm2901 = vcmp.eq.s32.totalorder %v2869, 1
        %vm2902 = vcmp.eq.s32.totalorder %v2870, 1
        %vm2903 = vcmp.eq.s32.totalorder %v2871, 1
        %vm2904 = vcmp.eq.s32.totalorder %v2872, 1
        %vm2905 = vcmp.eq.s32.totalorder %v2873, 1
        %vm2906 = vcmp.eq.s32.totalorder %v2874, 1
        %vm2907 = vcmp.eq.s32.totalorder %v2875, 1
        %vm2908 = vcmp.eq.s32.totalorder %v2876, 1
        %vm2909 = vcmp.eq.s32.totalorder %v2877, 1
        %vm2910 = vcmp.eq.s32.totalorder %v2878, 1
        %vm2911 = vcmp.eq.s32.totalorder %v2879, 1
        %vm2912 = vcmp.eq.s32.totalorder %v2880, 1
        %vm2913 = vcmp.eq.s32.totalorder %v2881, 1
        %vm2914 = vcmp.eq.s32.totalorder %v2882, 1
        %vm2915 = vcmp.eq.s32.totalorder %v2883, 1
        %vm2916 = vcmp.eq.s32.totalorder %v2884, 1
        %vm2917 = vcmp.eq.s32.totalorder %v2885, 1
        %vm2918 = vcmp.eq.s32.totalorder %v2886, 1
        %vm2919 = vcmp.eq.s32.totalorder %v2887, 1
        %vm2920 = vcmp.eq.s32.totalorder %v2888, 1
        %vm2921 = vcmp.eq.s32.totalorder %v2889, 1
        %vm2922 = vcmp.eq.s32.totalorder %v2890, 1
        %vm2923 = vcmp.eq.s32.totalorder %v2891, 1
        %vm2924 = vcmp.eq.s32.totalorder %v2892, 1
        %vm2925 = vcmp.eq.s32.totalorder %v2893, 1
        %vm2926 = vcmp.eq.s32.totalorder %v2894, 1
        %vm2927 = vcmp.eq.s32.totalorder %v2895, 1
        %v2928 = vsel %vm2896, %v2832, %v1613
        %v2929 = vsel %vm2897, %v2833, %v1614
        %v2930 = vsel %vm2898, %v2834, %v1615
        %v2931 = vsel %vm2899, %v2835, %v1616
        %v2932 = vsel %vm2900, %v2836, %v1617
        %v2933 = vsel %vm2901, %v2837, %v1618
        %v2934 = vsel %vm2902, %v2838, %v1619
        %v2935 = vsel %vm2903, %v2839, %v1620
        %v2936 = vsel %vm2904, %v2840, %v1621
        %v2937 = vsel %vm2905, %v2841, %v1622
        %v2938 = vsel %vm2906, %v2842, %v1623
        %v2939 = vsel %vm2907, %v2843, %v1624
        %v2940 = vsel %vm2908, %v2844, %v1625
        %v2941 = vsel %vm2909, %v2845, %v1626
        %v2942 = vsel %vm2910, %v2846, %v1627
        %v2943 = vsel %vm2911, %v2847, %v1628
        %v2944 = vsel %vm2912, %v2848, %v1629
        %v2945 = vsel %vm2913, %v2849, %v1630
        %v2946 = vsel %vm2914, %v2850, %v1631
        %v2947 = vsel %vm2915, %v2851, %v1632
        %v2948 = vsel %vm2916, %v2852, %v1633
        %v2949 = vsel %vm2917, %v2853, %v1634
        %v2950 = vsel %vm2918, %v2854, %v1635
        %v2951 = vsel %vm2919, %v2855, %v1636
        %v2952 = vsel %vm2920, %v2856, %v1637
        %v2953 = vsel %vm2921, %v2857, %v1638
        %v2954 = vsel %vm2922, %v2858, %v1639
        %v2955 = vsel %vm2923, %v2859, %v1640
        %v2956 = vsel %vm2924, %v2860, %v1641
        %v2957 = vsel %vm2925, %v2861, %v1642
        %v2958 = vsel %vm2926, %v2862, %v1643
        %v2959 = vsel %vm2927, %v2863, %v1644
        %vm2960 = vcmp.lt.s32.totalorder %v1680, 514
        %vm2961 = vcmp.lt.s32.totalorder %v1681, 514
        %vm2962 = vcmp.lt.s32.totalorder %v1682, 514
        %vm2963 = vcmp.lt.s32.totalorder %v1683, 514
        %vm2964 = vcmp.lt.s32.totalorder %v1684, 514
        %vm2965 = vcmp.lt.s32.totalorder %v1685, 514
        %vm2966 = vcmp.lt.s32.totalorder %v1686, 514
        %vm2967 = vcmp.lt.s32.totalorder %v1687, 514
        %vm2968 = vcmp.lt.s32.totalorder %v1688, 514
        %vm2969 = vcmp.lt.s32.totalorder %v1689, 514
        %vm2970 = vcmp.lt.s32.totalorder %v1690, 514
        %vm2971 = vcmp.lt.s32.totalorder %v1691, 514
        %vm2972 = vcmp.lt.s32.totalorder %v1692, 514
        %vm2973 = vcmp.lt.s32.totalorder %v1693, 514
        %vm2974 = vcmp.lt.s32.totalorder %v1694, 514
        %vm2975 = vcmp.lt.s32.totalorder %v1695, 514
        %vm2976 = vcmp.lt.s32.totalorder %v1696, 514
        %vm2977 = vcmp.lt.s32.totalorder %v1697, 514
        %vm2978 = vcmp.lt.s32.totalorder %v1698, 514
        %vm2979 = vcmp.lt.s32.totalorder %v1699, 514
        %vm2980 = vcmp.lt.s32.totalorder %v1700, 514
        %vm2981 = vcmp.lt.s32.totalorder %v1701, 514
        %vm2982 = vcmp.lt.s32.totalorder %v1702, 514
        %vm2983 = vcmp.lt.s32.totalorder %v1703, 514
        %vm2984 = vcmp.lt.s32.totalorder %v1704, 514
        %vm2985 = vcmp.lt.s32.totalorder %v1705, 514
        %vm2986 = vcmp.lt.s32.totalorder %v1706, 514
        %vm2987 = vcmp.lt.s32.totalorder %v1707, 514
        %vm2988 = vcmp.lt.s32.totalorder %v1708, 514
        %vm2989 = vcmp.lt.s32.totalorder %v1709, 514
        %vm2990 = vcmp.lt.s32.totalorder %v1710, 514
        %vm2991 = vcmp.lt.s32.totalorder %v1711, 514
        %v2992 = vsel %vm2960, 1, 0
        %v2993 = vsel %vm2961, 1, 0
        %v2994 = vsel %vm2962, 1, 0
        %v2995 = vsel %vm2963, 1, 0
        %v2996 = vsel %vm2964, 1, 0
        %v2997 = vsel %vm2965, 1, 0
        %v2998 = vsel %vm2966, 1, 0
        %v2999 = vsel %vm2967, 1, 0
        %v3000 = vsel %vm2968, 1, 0
        %v3001 = vsel %vm2969, 1, 0
        %v3002 = vsel %vm2970, 1, 0
        %v3003 = vsel %vm2971, 1, 0
        %v3004 = vsel %vm2972, 1, 0
        %v3005 = vsel %vm2973, 1, 0
        %v3006 = vsel %vm2974, 1, 0
        %v3007 = vsel %vm2975, 1, 0
        %v3008 = vsel %vm2976, 1, 0
        %v3009 = vsel %vm2977, 1, 0
        %v3010 = vsel %vm2978, 1, 0
        %v3011 = vsel %vm2979, 1, 0
        %v3012 = vsel %vm2980, 1, 0
        %v3013 = vsel %vm2981, 1, 0
        %v3014 = vsel %vm2982, 1, 0
        %v3015 = vsel %vm2983, 1, 0
        %v3016 = vsel %vm2984, 1, 0
        %v3017 = vsel %vm2985, 1, 0
        %v3018 = vsel %vm2986, 1, 0
        %v3019 = vsel %vm2987, 1, 0
        %v3020 = vsel %vm2988, 1, 0
        %v3021 = vsel %vm2989, 1, 0
        %v3022 = vsel %vm2990, 1, 0
        %v3023 = vsel %vm2991, 1, 0
        %vm3024 = vcmp.eq.s32.totalorder %v2992, 1
        %vm3025 = vcmp.eq.s32.totalorder %v2993, 1
        %vm3026 = vcmp.eq.s32.totalorder %v2994, 1
        %vm3027 = vcmp.eq.s32.totalorder %v2995, 1
        %vm3028 = vcmp.eq.s32.totalorder %v2996, 1
        %vm3029 = vcmp.eq.s32.totalorder %v2997, 1
        %vm3030 = vcmp.eq.s32.totalorder %v2998, 1
        %vm3031 = vcmp.eq.s32.totalorder %v2999, 1
        %vm3032 = vcmp.eq.s32.totalorder %v3000, 1
        %vm3033 = vcmp.eq.s32.totalorder %v3001, 1
        %vm3034 = vcmp.eq.s32.totalorder %v3002, 1
        %vm3035 = vcmp.eq.s32.totalorder %v3003, 1
        %vm3036 = vcmp.eq.s32.totalorder %v3004, 1
        %vm3037 = vcmp.eq.s32.totalorder %v3005, 1
        %vm3038 = vcmp.eq.s32.totalorder %v3006, 1
        %vm3039 = vcmp.eq.s32.totalorder %v3007, 1
        %vm3040 = vcmp.eq.s32.totalorder %v3008, 1
        %vm3041 = vcmp.eq.s32.totalorder %v3009, 1
        %vm3042 = vcmp.eq.s32.totalorder %v3010, 1
        %vm3043 = vcmp.eq.s32.totalorder %v3011, 1
        %vm3044 = vcmp.eq.s32.totalorder %v3012, 1
        %vm3045 = vcmp.eq.s32.totalorder %v3013, 1
        %vm3046 = vcmp.eq.s32.totalorder %v3014, 1
        %vm3047 = vcmp.eq.s32.totalorder %v3015, 1
        %vm3048 = vcmp.eq.s32.totalorder %v3016, 1
        %vm3049 = vcmp.eq.s32.totalorder %v3017, 1
        %vm3050 = vcmp.eq.s32.totalorder %v3018, 1
        %vm3051 = vcmp.eq.s32.totalorder %v3019, 1
        %vm3052 = vcmp.eq.s32.totalorder %v3020, 1
        %vm3053 = vcmp.eq.s32.totalorder %v3021, 1
        %vm3054 = vcmp.eq.s32.totalorder %v3022, 1
        %vm3055 = vcmp.eq.s32.totalorder %v3023, 1
        %v3056 = vsel %vm3024, %v2928, 0.0
        %v3057 = vsel %vm3025, %v2929, 0.0
        %v3058 = vsel %vm3026, %v2930, 0.0
        %v3059 = vsel %vm3027, %v2931, 0.0
        %v3060 = vsel %vm3028, %v2932, 0.0
        %v3061 = vsel %vm3029, %v2933, 0.0
        %v3062 = vsel %vm3030, %v2934, 0.0
        %v3063 = vsel %vm3031, %v2935, 0.0
        %v3064 = vsel %vm3032, %v2936, 0.0
        %v3065 = vsel %vm3033, %v2937, 0.0
        %v3066 = vsel %vm3034, %v2938, 0.0
        %v3067 = vsel %vm3035, %v2939, 0.0
        %v3068 = vsel %vm3036, %v2940, 0.0
        %v3069 = vsel %vm3037, %v2941, 0.0
        %v3070 = vsel %vm3038, %v2942, 0.0
        %v3071 = vsel %vm3039, %v2943, 0.0
        %v3072 = vsel %vm3040, %v2944, 0.0
        %v3073 = vsel %vm3041, %v2945, 0.0
        %v3074 = vsel %vm3042, %v2946, 0.0
        %v3075 = vsel %vm3043, %v2947, 0.0
        %v3076 = vsel %vm3044, %v2948, 0.0
        %v3077 = vsel %vm3045, %v2949, 0.0
        %v3078 = vsel %vm3046, %v2950, 0.0
        %v3079 = vsel %vm3047, %v2951, 0.0
        %v3080 = vsel %vm3048, %v2952, 0.0
        %v3081 = vsel %vm3049, %v2953, 0.0
        %v3082 = vsel %vm3050, %v2954, 0.0
        %v3083 = vsel %vm3051, %v2955, 0.0
        %v3084 = vsel %vm3052, %v2956, 0.0
        %v3085 = vsel %vm3053, %v2957, 0.0
        %v3086 = vsel %vm3054, %v2958, 0.0
        %v3087 = vsel %vm3055, %v2959, 0.0
        %v3088 = vpack.c.bf16 %v3056, %v3056
        %v3089 = vpack.c.bf16 %v3057, %v3057
        %v3090 = vpack.c.bf16 %v3058, %v3058
        %v3091 = vpack.c.bf16 %v3059, %v3059
        %v3092 = vpack.c.bf16 %v3060, %v3060
        %v3093 = vpack.c.bf16 %v3061, %v3061
        %v3094 = vpack.c.bf16 %v3062, %v3062
        %v3095 = vpack.c.bf16 %v3063, %v3063
        %v3096 = vpack.c.bf16 %v3064, %v3064
        %v3097 = vpack.c.bf16 %v3065, %v3065
        %v3098 = vpack.c.bf16 %v3066, %v3066
        %v3099 = vpack.c.bf16 %v3067, %v3067
        %v3100 = vpack.c.bf16 %v3068, %v3068
        %v3101 = vpack.c.bf16 %v3069, %v3069
        %v3102 = vpack.c.bf16 %v3070, %v3070
        %v3103 = vpack.c.bf16 %v3071, %v3071
        %v3104 = vpack.c.bf16 %v3072, %v3072
        %v3105 = vpack.c.bf16 %v3073, %v3073
        %v3106 = vpack.c.bf16 %v3074, %v3074
        %v3107 = vpack.c.bf16 %v3075, %v3075
        %v3108 = vpack.c.bf16 %v3076, %v3076
        %v3109 = vpack.c.bf16 %v3077, %v3077
        %v3110 = vpack.c.bf16 %v3078, %v3078
        %v3111 = vpack.c.bf16 %v3079, %v3079
        %v3112 = vpack.c.bf16 %v3080, %v3080
        %v3113 = vpack.c.bf16 %v3081, %v3081
        %v3114 = vpack.c.bf16 %v3082, %v3082
        %v3115 = vpack.c.bf16 %v3083, %v3083
        %v3116 = vpack.c.bf16 %v3084, %v3084
        %v3117 = vpack.c.bf16 %v3085, %v3085
        %v3118 = vpack.c.bf16 %v3086, %v3086
        %v3119 = vpack.c.bf16 %v3087, %v3087
        %3120 = vst [vmem:[%s254] sm:$0xf] %v3088
        %3121 = vst [vmem:[%s254 + $0x4] sm:$0xf] %v3089
        %3122 = vst [vmem:[%s254 + $0x8] sm:$0xf] %v3090
        %3123 = vst [vmem:[%s254 + $0xc] sm:$0xf] %v3091
        %3124 = vst [vmem:[%s254 + $0x10] sm:$0xf] %v3092
        %3125 = vst [vmem:[%s254 + $0x14] sm:$0xf] %v3093
        %3126 = vst [vmem:[%s254 + $0x18] sm:$0xf] %v3094
        %3127 = vst [vmem:[%s254 + $0x1c] sm:$0xf] %v3095
        %3128 = vst [vmem:[%s254 + $0x20] sm:$0xf] %v3096
        %3129 = vst [vmem:[%s254 + $0x24] sm:$0xf] %v3097
        %3130 = vst [vmem:[%s254 + $0x28] sm:$0xf] %v3098
        %3131 = vst [vmem:[%s254 + $0x2c] sm:$0xf] %v3099
        %3132 = vst [vmem:[%s254 + $0x30] sm:$0xf] %v3100
        %3133 = vst [vmem:[%s254 + $0x34] sm:$0xf] %v3101
        %3134 = vst [vmem:[%s254 + $0x38] sm:$0xf] %v3102
        %3135 = vst [vmem:[%s254 + $0x3c] sm:$0xf] %v3103
        %3136 = vst [vmem:[%s254 + $0x40] sm:$0xf] %v3104
        %3137 = vst [vmem:[%s254 + $0x44] sm:$0xf] %v3105
        %3138 = vst [vmem:[%s254 + $0x48] sm:$0xf] %v3106
        %3139 = vst [vmem:[%s254 + $0x4c] sm:$0xf] %v3107
        %3140 = vst [vmem:[%s254 + $0x50] sm:$0xf] %v3108
        %3141 = vst [vmem:[%s254 + $0x54] sm:$0xf] %v3109
        %3142 = vst [vmem:[%s254 + $0x58] sm:$0xf] %v3110
        %3143 = vst [vmem:[%s254 + $0x5c] sm:$0xf] %v3111
        %3144 = vst [vmem:[%s254 + $0x60] sm:$0xf] %v3112
        %3145 = vst [vmem:[%s254 + $0x64] sm:$0xf] %v3113
        %3146 = vst [vmem:[%s254 + $0x68] sm:$0xf] %v3114
        %3147 = vst [vmem:[%s254 + $0x6c] sm:$0xf] %v3115
        %3148 = vst [vmem:[%s254 + $0x70] sm:$0xf] %v3116
        %3149 = vst [vmem:[%s254 + $0x74] sm:$0xf] %v3117
        %3150 = vst [vmem:[%s254 + $0x78] sm:$0xf] %v3118
        %3151 = vst [vmem:[%s254 + $0x7c] sm:$0xf] %v3119
        %s3152 = sand.u32 %s139, 1
        %s3153 = sand.u32 %s139, 1
        %s3154 = smul.addr %s3153, 128
        %s3155 = scalar_lea.vmem [#allocation2], %s3154
        // Predicated region
        $region41: #{pmaa_adapter_forward.1} parent=39 // pred_check
          %p3156 = pneg %p149
        $region42: #{pmaa_adapter_forward.1} parent=39 // pred_check_branch
          %3158 = sbr.rel (%p3156) target = $region44
        $region43: #{pmaa_adapter_forward.1} parent=39 // pred_region
          %s3159 = smul.u32 32, %s16
          %s3160 = ssub.s32 65, %s3159
          %p3161 = scmp.lt.s32.totalorder %s3160, 32
          %s3162 = scalar_select %p3161, %s3160, 32
          %s3163 = smul.u32 4, %s3162
          %p3164 = scmp.ne.s32.totalorder 0, %s3163
          %s3165 = smul.addr %s3159, 4
          %s3166 = scalar_lea.vmem %s5, %s3165
          // Predicated region
          $region45: #{pmaa_adapter_forward.1} parent=43 // pred_check
            %p3167 = pneg %p3164
          $region46: #{pmaa_adapter_forward.1} parent=43 // pred_check_branch
            %3169 = sbr.rel (%p3167) target = $region48
          $region47: #{pmaa_adapter_forward.1} parent=43 // pred_region
            // Predicated region
            $region49: #{pmaa_adapter_forward.1} parent=47 // pred_check
              _
            $region50: #{pmaa_adapter_forward.1} parent=47 // pred_check_branch
              %3171 = sbr.rel target = $region52
            $region51: #{pmaa_adapter_forward.1} parent=47 // pred_region
              // Predicated region
              $region71: #{pmaa_adapter_forward.1} parent=51 // pred_check
                _
              $region72: #{pmaa_adapter_forward.1} parent=51 // pred_check_branch
                %3283 = sbr.rel (0) target = $region74
              $region73: #{pmaa_adapter_forward.1} parent=51 // pred_region
                %s3285 = ssub.s32 16, 1
                %s3286 = sshrl.u32 %s3162, 5
                // While loop
                $region75: #{pmaa_adapter_forward.1} parent=73 // loop_pre_header
                  _
                $region76: #{pmaa_adapter_forward.1} parent=73 // loop_header
                  %s3288 = sphi 0, %s3290
                  %p3289 = scmp.ge.s32.totalorder %s3288, %s3286
                  %s3293 = sphi 0, %s3362
                  %s3294 = sphi %s3155, %s3365
                  %s3295 = sphi %s3166, %s3366
                $region77: #{pmaa_adapter_forward.1} parent=73 // loop_header_branch
                  %3292 = sbr.rel (%p3289) target = $region81
                $region78: #{pmaa_adapter_forward.1} parent=73 // loop_body
                  %v3296 = vld [vmem:[%s3294] sm:%s3285]
                  %3297 = vst [vmem:[%s3295] sm:%s3285] %v3296
                  %v3298 = vld [vmem:[%s3294 + $0x4] sm:%s3285]
                  %3299 = vst [vmem:[%s3295 + $0x4] sm:%s3285] %v3298
                  %v3300 = vld [vmem:[%s3294 + $0x8] sm:%s3285]
                  %3301 = vst [vmem:[%s3295 + $0x8] sm:%s3285] %v3300
                  %v3302 = vld [vmem:[%s3294 + $0xc] sm:%s3285]
                  %3303 = vst [vmem:[%s3295 + $0xc] sm:%s3285] %v3302
                  %v3304 = vld [vmem:[%s3294 + $0x10] sm:%s3285]
                  %3305 = vst [vmem:[%s3295 + $0x10] sm:%s3285] %v3304
                  %v3306 = vld [vmem:[%s3294 + $0x14] sm:%s3285]
                  %3307 = vst [vmem:[%s3295 + $0x14] sm:%s3285] %v3306
                  %v3308 = vld [vmem:[%s3294 + $0x18] sm:%s3285]
                  %3309 = vst [vmem:[%s3295 + $0x18] sm:%s3285] %v3308
                  %v3310 = vld [vmem:[%s3294 + $0x1c] sm:%s3285]
                  %3311 = vst [vmem:[%s3295 + $0x1c] sm:%s3285] %v3310
                  %v3312 = vld [vmem:[%s3294 + $0x20] sm:%s3285]
                  %3313 = vst [vmem:[%s3295 + $0x20] sm:%s3285] %v3312
                  %v3314 = vld [vmem:[%s3294 + $0x24] sm:%s3285]
                  %3315 = vst [vmem:[%s3295 + $0x24] sm:%s3285] %v3314
                  %v3316 = vld [vmem:[%s3294 + $0x28] sm:%s3285]
                  %3317 = vst [vmem:[%s3295 + $0x28] sm:%s3285] %v3316
                  %v3318 = vld [vmem:[%s3294 + $0x2c] sm:%s3285]
                  %3319 = vst [vmem:[%s3295 + $0x2c] sm:%s3285] %v3318
                  %v3320 = vld [vmem:[%s3294 + $0x30] sm:%s3285]
                  %3321 = vst [vmem:[%s3295 + $0x30] sm:%s3285] %v3320
                  %v3322 = vld [vmem:[%s3294 + $0x34] sm:%s3285]
                  %3323 = vst [vmem:[%s3295 + $0x34] sm:%s3285] %v3322
                  %v3324 = vld [vmem:[%s3294 + $0x38] sm:%s3285]
                  %3325 = vst [vmem:[%s3295 + $0x38] sm:%s3285] %v3324
                  %v3326 = vld [vmem:[%s3294 + $0x3c] sm:%s3285]
                  %3327 = vst [vmem:[%s3295 + $0x3c] sm:%s3285] %v3326
                  %v3328 = vld [vmem:[%s3294 + $0x40] sm:%s3285]
                  %3329 = vst [vmem:[%s3295 + $0x40] sm:%s3285] %v3328
                  %v3330 = vld [vmem:[%s3294 + $0x44] sm:%s3285]
                  %3331 = vst [vmem:[%s3295 + $0x44] sm:%s3285] %v3330
                  %v3332 = vld [vmem:[%s3294 + $0x48] sm:%s3285]
                  %3333 = vst [vmem:[%s3295 + $0x48] sm:%s3285] %v3332
                  %v3334 = vld [vmem:[%s3294 + $0x4c] sm:%s3285]
                  %3335 = vst [vmem:[%s3295 + $0x4c] sm:%s3285] %v3334
                  %v3336 = vld [vmem:[%s3294 + $0x50] sm:%s3285]
                  %3337 = vst [vmem:[%s3295 + $0x50] sm:%s3285] %v3336
                  %v3338 = vld [vmem:[%s3294 + $0x54] sm:%s3285]
                  %3339 = vst [vmem:[%s3295 + $0x54] sm:%s3285] %v3338
                  %v3340 = vld [vmem:[%s3294 + $0x58] sm:%s3285]
                  %3341 = vst [vmem:[%s3295 + $0x58] sm:%s3285] %v3340
                  %v3342 = vld [vmem:[%s3294 + $0x5c] sm:%s3285]
                  %3343 = vst [vmem:[%s3295 + $0x5c] sm:%s3285] %v3342
                  %v3344 = vld [vmem:[%s3294 + $0x60] sm:%s3285]
                  %3345 = vst [vmem:[%s3295 + $0x60] sm:%s3285] %v3344
                  %v3346 = vld [vmem:[%s3294 + $0x64] sm:%s3285]
                  %3347 = vst [vmem:[%s3295 + $0x64] sm:%s3285] %v3346
                  %v3348 = vld [vmem:[%s3294 + $0x68] sm:%s3285]
                  %3349 = vst [vmem:[%s3295 + $0x68] sm:%s3285] %v3348
                  %v3350 = vld [vmem:[%s3294 + $0x6c] sm:%s3285]
                  %3351 = vst [vmem:[%s3295 + $0x6c] sm:%s3285] %v3350
                  %v3352 = vld [vmem:[%s3294 + $0x70] sm:%s3285]
                  %3353 = vst [vmem:[%s3295 + $0x70] sm:%s3285] %v3352
                  %v3354 = vld [vmem:[%s3294 + $0x74] sm:%s3285]
                  %3355 = vst [vmem:[%s3295 + $0x74] sm:%s3285] %v3354
                  %v3356 = vld [vmem:[%s3294 + $0x78] sm:%s3285]
                  %3357 = vst [vmem:[%s3295 + $0x78] sm:%s3285] %v3356
                  %v3358 = vld [vmem:[%s3294 + $0x7c] sm:%s3285]
                  %3359 = vst [vmem:[%s3295 + $0x7c] sm:%s3285] %v3358
                  %s3360 = sadd.s32 1, %s3293
                  %p3361 = scmp.ge.s32.totalorder %s3360, %s3286
                  %s3362 = scalar_select %p3361, 0, %s3360
                  %s3363 = smul.u32 %s3362, 128
                  %s3364 = smul.u32 %s3362, 128
                  %s3365 = scalar_lea.vmem %s3155, %s3363 [#allocation2]
                  %s3366 = scalar_lea.vmem %s3166, %s3364
                $region79: #{pmaa_adapter_forward.1} parent=73 // loop_footer
                  %s3290 = sadd.s32 %s3288, 1
                $region80: #{pmaa_adapter_forward.1} parent=73 // loop_footer_branch
                  %3287 = sbr.rel target = $region76
                $region81: #{pmaa_adapter_forward.1} parent=73 // loop_exit
                  _
                %s3367 = sshrl.u32 %s3162, 5
                %s3368 = sand.u32 %s3162, 31
                %s3369 = smul.u32 %s3367, 32
                %s3370 = smul.u32 4, %s3369
                %s3371 = scalar_lea.vmem %s3155, %s3370 [#allocation2]
                %s3372 = smul.u32 4, %s3369
                %s3373 = scalar_lea.vmem %s3166, %s3372
                // While loop
                $region82: #{pmaa_adapter_forward.1} parent=73 // loop_pre_header
                  _
                $region83: #{pmaa_adapter_forward.1} parent=73 // loop_header
                  %s3375 = sphi 0, %s3377
                  %p3376 = scmp.ge.s32.totalorder %s3375, %s3368
                  %s3380 = sphi 0, %s3387
                  %s3381 = sphi %s3371, %s3390
                  %s3382 = sphi %s3373, %s3391
                $region84: #{pmaa_adapter_forward.1} parent=73 // loop_header_branch
                  %3379 = sbr.rel (%p3376) target = $region88
                $region85: #{pmaa_adapter_forward.1} parent=73 // loop_body
                  %v3383 = vld [vmem:[%s3381] sm:%s3285]
                  %3384 = vst [vmem:[%s3382] sm:%s3285] %v3383
                  %s3385 = sadd.s32 1, %s3380
                  %p3386 = scmp.ge.s32.totalorder %s3385, %s3368
                  %s3387 = scalar_select %p3386, 0, %s3385
                  %s3388 = smul.u32 %s3387, 4
                  %s3389 = smul.u32 %s3387, 4
                  %s3390 = scalar_lea.vmem %s3371, %s3388 [#allocation2]
                  %s3391 = scalar_lea.vmem %s3373, %s3389
                $region86: #{pmaa_adapter_forward.1} parent=73 // loop_footer
                  %s3377 = sadd.s32 %s3375, 1
                $region87: #{pmaa_adapter_forward.1} parent=73 // loop_footer_branch
                  %3374 = sbr.rel target = $region83
                $region88: #{pmaa_adapter_forward.1} parent=73 // loop_exit
                  _
              $region74: #{pmaa_adapter_forward.1} parent=51 // pred_fallthru
                _
            $region52: #{pmaa_adapter_forward.1} parent=47 // pred_fallthru
              _
            // Predicated region
            $region53: #{pmaa_adapter_forward.1} parent=47 // pred_check
              _
            $region54: #{pmaa_adapter_forward.1} parent=47 // pred_check_branch
              %3173 = sbr.rel (0) target = $region56
            $region55: #{pmaa_adapter_forward.1} parent=47 // pred_region
              %s3175 = ssub.s32 16, 1
              %s3176 = sshrl.u32 %s3162, 5
              // While loop
              $region57: #{pmaa_adapter_forward.1} parent=55 // loop_pre_header
                _
              $region58: #{pmaa_adapter_forward.1} parent=55 // loop_header
                %s3178 = sphi 0, %s3180
                %p3179 = scmp.ge.s32.totalorder %s3178, %s3176
                %s3183 = sphi 0, %s3252
                %s3184 = sphi %s3155, %s3255
                %s3185 = sphi %s3166, %s3256
              $region59: #{pmaa_adapter_forward.1} parent=55 // loop_header_branch
                %3182 = sbr.rel (%p3179) target = $region63
              $region60: #{pmaa_adapter_forward.1} parent=55 // loop_body
                %v3186 = vld [vmem:[%s3184] sm:%s3175]
                %3187 = vst [vmem:[%s3185] sm:%s3175] %v3186
                %v3188 = vld [vmem:[%s3184 + $0x4] sm:%s3175]
                %3189 = vst [vmem:[%s3185 + $0x4] sm:%s3175] %v3188
                %v3190 = vld [vmem:[%s3184 + $0x8] sm:%s3175]
                %3191 = vst [vmem:[%s3185 + $0x8] sm:%s3175] %v3190
                %v3192 = vld [vmem:[%s3184 + $0xc] sm:%s3175]
                %3193 = vst [vmem:[%s3185 + $0xc] sm:%s3175] %v3192
                %v3194 = vld [vmem:[%s3184 + $0x10] sm:%s3175]
                %3195 = vst [vmem:[%s3185 + $0x10] sm:%s3175] %v3194
                %v3196 = vld [vmem:[%s3184 + $0x14] sm:%s3175]
                %3197 = vst [vmem:[%s3185 + $0x14] sm:%s3175] %v3196
                %v3198 = vld [vmem:[%s3184 + $0x18] sm:%s3175]
                %3199 = vst [vmem:[%s3185 + $0x18] sm:%s3175] %v3198
                %v3200 = vld [vmem:[%s3184 + $0x1c] sm:%s3175]
                %3201 = vst [vmem:[%s3185 + $0x1c] sm:%s3175] %v3200
                %v3202 = vld [vmem:[%s3184 + $0x20] sm:%s3175]
                %3203 = vst [vmem:[%s3185 + $0x20] sm:%s3175] %v3202
                %v3204 = vld [vmem:[%s3184 + $0x24] sm:%s3175]
                %3205 = vst [vmem:[%s3185 + $0x24] sm:%s3175] %v3204
                %v3206 = vld [vmem:[%s3184 + $0x28] sm:%s3175]
                %3207 = vst [vmem:[%s3185 + $0x28] sm:%s3175] %v3206
                %v3208 = vld [vmem:[%s3184 + $0x2c] sm:%s3175]
                %3209 = vst [vmem:[%s3185 + $0x2c] sm:%s3175] %v3208
                %v3210 = vld [vmem:[%s3184 + $0x30] sm:%s3175]
                %3211 = vst [vmem:[%s3185 + $0x30] sm:%s3175] %v3210
                %v3212 = vld [vmem:[%s3184 + $0x34] sm:%s3175]
                %3213 = vst [vmem:[%s3185 + $0x34] sm:%s3175] %v3212
                %v3214 = vld [vmem:[%s3184 + $0x38] sm:%s3175]
                %3215 = vst [vmem:[%s3185 + $0x38] sm:%s3175] %v3214
                %v3216 = vld [vmem:[%s3184 + $0x3c] sm:%s3175]
                %3217 = vst [vmem:[%s3185 + $0x3c] sm:%s3175] %v3216
                %v3218 = vld [vmem:[%s3184 + $0x40] sm:%s3175]
                %3219 = vst [vmem:[%s3185 + $0x40] sm:%s3175] %v3218
                %v3220 = vld [vmem:[%s3184 + $0x44] sm:%s3175]
                %3221 = vst [vmem:[%s3185 + $0x44] sm:%s3175] %v3220
                %v3222 = vld [vmem:[%s3184 + $0x48] sm:%s3175]
                %3223 = vst [vmem:[%s3185 + $0x48] sm:%s3175] %v3222
                %v3224 = vld [vmem:[%s3184 + $0x4c] sm:%s3175]
                %3225 = vst [vmem:[%s3185 + $0x4c] sm:%s3175] %v3224
                %v3226 = vld [vmem:[%s3184 + $0x50] sm:%s3175]
                %3227 = vst [vmem:[%s3185 + $0x50] sm:%s3175] %v3226
                %v3228 = vld [vmem:[%s3184 + $0x54] sm:%s3175]
                %3229 = vst [vmem:[%s3185 + $0x54] sm:%s3175] %v3228
                %v3230 = vld [vmem:[%s3184 + $0x58] sm:%s3175]
                %3231 = vst [vmem:[%s3185 + $0x58] sm:%s3175] %v3230
                %v3232 = vld [vmem:[%s3184 + $0x5c] sm:%s3175]
                %3233 = vst [vmem:[%s3185 + $0x5c] sm:%s3175] %v3232
                %v3234 = vld [vmem:[%s3184 + $0x60] sm:%s3175]
                %3235 = vst [vmem:[%s3185 + $0x60] sm:%s3175] %v3234
                %v3236 = vld [vmem:[%s3184 + $0x64] sm:%s3175]
                %3237 = vst [vmem:[%s3185 + $0x64] sm:%s3175] %v3236
                %v3238 = vld [vmem:[%s3184 + $0x68] sm:%s3175]
                %3239 = vst [vmem:[%s3185 + $0x68] sm:%s3175] %v3238
                %v3240 = vld [vmem:[%s3184 + $0x6c] sm:%s3175]
                %3241 = vst [vmem:[%s3185 + $0x6c] sm:%s3175] %v3240
                %v3242 = vld [vmem:[%s3184 + $0x70] sm:%s3175]
                %3243 = vst [vmem:[%s3185 + $0x70] sm:%s3175] %v3242
                %v3244 = vld [vmem:[%s3184 + $0x74] sm:%s3175]
                %3245 = vst [vmem:[%s3185 + $0x74] sm:%s3175] %v3244
                %v3246 = vld [vmem:[%s3184 + $0x78] sm:%s3175]
                %3247 = vst [vmem:[%s3185 + $0x78] sm:%s3175] %v3246
                %v3248 = vld [vmem:[%s3184 + $0x7c] sm:%s3175]
                %3249 = vst [vmem:[%s3185 + $0x7c] sm:%s3175] %v3248
                %s3250 = sadd.s32 1, %s3183
                %p3251 = scmp.ge.s32.totalorder %s3250, %s3176
                %s3252 = scalar_select %p3251, 0, %s3250
                %s3253 = smul.u32 %s3252, 128
                %s3254 = smul.u32 %s3252, 128
                %s3255 = scalar_lea.vmem %s3155, %s3253 [#allocation2]
                %s3256 = scalar_lea.vmem %s3166, %s3254
              $region61: #{pmaa_adapter_forward.1} parent=55 // loop_footer
                %s3180 = sadd.s32 %s3178, 1
              $region62: #{pmaa_adapter_forward.1} parent=55 // loop_footer_branch
                %3177 = sbr.rel target = $region58
              $region63: #{pmaa_adapter_forward.1} parent=55 // loop_exit
                _
              %s3257 = sshrl.u32 %s3162, 5
              %s3258 = sand.u32 %s3162, 31
              %s3259 = smul.u32 %s3257, 32
              %s3260 = smul.u32 4, %s3259
              %s3261 = scalar_lea.vmem %s3155, %s3260 [#allocation2]
              %s3262 = smul.u32 4, %s3259
              %s3263 = scalar_lea.vmem %s3166, %s3262
              // While loop
              $region64: #{pmaa_adapter_forward.1} parent=55 // loop_pre_header
                _
              $region65: #{pmaa_adapter_forward.1} parent=55 // loop_header
                %s3265 = sphi 0, %s3267
                %p3266 = scmp.ge.s32.totalorder %s3265, %s3258
                %s3270 = sphi 0, %s3277
                %s3271 = sphi %s3261, %s3280
                %s3272 = sphi %s3263, %s3281
              $region66: #{pmaa_adapter_forward.1} parent=55 // loop_header_branch
                %3269 = sbr.rel (%p3266) target = $region70
              $region67: #{pmaa_adapter_forward.1} parent=55 // loop_body
                %v3273 = vld [vmem:[%s3271] sm:%s3175]
                %3274 = vst [vmem:[%s3272] sm:%s3175] %v3273
                %s3275 = sadd.s32 1, %s3270
                %p3276 = scmp.ge.s32.totalorder %s3275, %s3258
                %s3277 = scalar_select %p3276, 0, %s3275
                %s3278 = smul.u32 %s3277, 4
                %s3279 = smul.u32 %s3277, 4
                %s3280 = scalar_lea.vmem %s3261, %s3278 [#allocation2]
                %s3281 = scalar_lea.vmem %s3263, %s3279
              $region68: #{pmaa_adapter_forward.1} parent=55 // loop_footer
                %s3267 = sadd.s32 %s3265, 1
              $region69: #{pmaa_adapter_forward.1} parent=55 // loop_footer_branch
                %3264 = sbr.rel target = $region65
              $region70: #{pmaa_adapter_forward.1} parent=55 // loop_exit
                _
            $region56: #{pmaa_adapter_forward.1} parent=47 // pred_fallthru
              _
          $region48: #{pmaa_adapter_forward.1} parent=43 // pred_fallthru
            _
          %3392 = vnop
        $region44: #{pmaa_adapter_forward.1} parent=39 // pred_fallthru
          _
      $region40: #{pmaa_adapter_forward.1} parent=5 // pred_fallthru
        _
      %p3393 = scmp.le.s32.totalorder 2, %s11
      // Predicated region
      $region89: #{pmaa_adapter_forward.1} parent=5 // pred_check
        %p3394 = pneg %p3393
      $region90: #{pmaa_adapter_forward.1} parent=5 // pred_check_branch
        %3396 = sbr.rel (%p3394) target = $region92
      $region91: #{pmaa_adapter_forward.1} parent=5 // pred_region
        %s3397 = ssub.s32 %s11, 2
        // Predicated region
        $region93: #{pmaa_adapter_forward.1} parent=91 // pred_check
          %p3398 = pneg %p155
        $region94: #{pmaa_adapter_forward.1} parent=91 // pred_check_branch
          %3400 = sbr.rel (%p3398) target = $region96
        $region95: #{pmaa_adapter_forward.1} parent=91 // pred_region
          %s3401 = sand.u32 %s140, 1
          %s3402 = sand.u32 %s140, 1
          %s3403 = smul.addr %s3402, 128
          %s3404 = scalar_lea.vmem [#allocation2], %s3403
        $region96: #{pmaa_adapter_forward.1} parent=91 // pred_fallthru
          _
      $region92: #{pmaa_adapter_forward.1} parent=5 // pred_fallthru
        _
    $region6: #{pmaa_adapter_forward.1} parent=1 // loop_footer
      %s15 = sadd.s32 1, %s11
    $region7: #{pmaa_adapter_forward.1} parent=1 // loop_footer_branch
      %10 = sbr.rel target = $region3
    $region8: #{pmaa_adapter_forward.1} parent=1 // loop_exit
      _

</llo_original>
